<compile_context>
chip_gen: v6e
topology: v6e:2x2x1
jax: 0.10.0
libtpu: 0.0.40
codegen_flags: <defaults>
</compile_context>

<pallas_src>
import functools

import jax
import jax.numpy as jnp
from jax.experimental import pallas as pl
from jax.experimental.pallas import tpu as pltpu


# ------------------------- fused attention-pair kernel ---------------------- #

def _attn_pair_kernel(q_ref, k_ref, v_ref, w1_ref, b1_ref, out_ref,
                      s_scr, ta_scr, *, n_valid, mask_rows):
    """Both attention branches for one (batch, V-column-tile) pair.

    Grid: (batch, N column tiles, N row chunks); last axis is the serial
    reduction carrying (running max S, gathered column TA) in VMEM scratch.

    q_ref/k_ref : (1, c, TR)   row chunk of Q / K
    v_ref       : (1, c, TN)   column tile of V
    w1_ref      : (c, 2c)      1x1 conv weight
    b1_ref      : (c, 1)       1x1 conv bias
    out_ref     : (1, 3, c, TN)  [C_v ; C_k ; V]  (conv2 input layout)
    s_scr       : (2, 1, TN)   running column max per branch
    ta_scr      : (2, c, TN)   running gathered Q/K column per branch
    """
    ir = pl.program_id(2)
    nr = pl.num_programs(2)
    c = v_ref.shape[1]
    tr = q_ref.shape[2]
    tn = v_ref.shape[2]

    @pl.when(ir == 0)
    def _init():
        s_scr[...] = jnp.full(s_scr.shape, -jnp.inf, jnp.float32)
        ta_scr[...] = jnp.zeros(ta_scr.shape, jnp.float32)

    vt = v_ref[0]                                              # (c, TN)
    qc = q_ref[0]                                              # (c, TR)
    kc = k_ref[0]                                              # (c, TR)

    # Merged MXU push for both branches: (c, 2*TR)^T @ (c, TN) -> (2*TR, TN).
    lhs = jnp.concatenate([qc, kc], axis=1)                    # (c, 2*TR)
    t2 = jax.lax.dot_general(lhs, vt, (((0,), (0,)), ((), ())),
                             preferred_element_type=jnp.float32)

    iota = jax.lax.broadcasted_iota(jnp.int32, (tr, tn), 0)
    if mask_rows:
        row_ok = (ir * tr + iota) < n_valid                    # padded rows -> -inf

    for br, chunk in enumerate((qc, kc)):                      # unrolled: Q, K
        t = t2[br * tr:(br + 1) * tr, :]                       # (TR, TN)
        if mask_rows:
            t = jnp.where(row_ok, t, -jnp.inf)
        loc_max = jnp.max(t, axis=0, keepdims=True)            # (1, TN)
        # first-index argmax inside the chunk (torch.max tie-break)
        loc_arg = jnp.min(jnp.where(t == loc_max, iota, tr),
                          axis=0, keepdims=True)               # (1, TN)
        onehot = (iota == loc_arg).astype(jnp.float32)         # (TR, TN)
        cand = jnp.dot(chunk, onehot,
                       preferred_element_type=jnp.float32)     # (c, TN)
        # Online merge: strict ">" keeps the earlier chunk on exact ties, so the
        # global result is still the first argmax.
        s_prev = s_scr[br]                                     # (1, TN)
        upd = loc_max > s_prev
        s_scr[br] = jnp.where(upd, loc_max, s_prev)
        ta_scr[br] = jnp.where(upd, cand, ta_scr[br])

    @pl.when(ir == nr - 1)
    def _finalize():
        w1 = w1_ref[...]                                       # (c, 2c)
        b1 = b1_ref[...]                                       # (c, 1)
        wa = w1[:, :c]
        wb = w1[:, c:]
        wv = jnp.dot(wa, vt, preferred_element_type=jnp.float32) + b1  # shared
        for br in range(2):
            conv = wv + jnp.dot(wb, ta_scr[br],
                                preferred_element_type=jnp.float32)    # (c, TN)
            out_ref[0, br] = (conv * s_scr[br]).astype(out_ref.dtype)
        out_ref[0, 2] = vt.astype(out_ref.dtype)               # V pass-through


def _attention_pair(qf, kf, vf, w1, b1, *, tn, tr, n_valid):
    b, c, n_pad = qf.shape
    grid = (b, n_pad // tn, n_pad // tr)
    kernel = functools.partial(_attn_pair_kernel, n_valid=n_valid,
                               mask_rows=(n_pad != n_valid))
    return pl.pallas_call(
        kernel,
        out_shape=jax.ShapeDtypeStruct((b, 3, c, n_pad), jnp.float32),
        grid=grid,
        in_specs=[
            pl.BlockSpec((1, c, tr), lambda ib, ij, ir: (ib, 0, ir)),
            pl.BlockSpec((1, c, tr), lambda ib, ij, ir: (ib, 0, ir)),
            pl.BlockSpec((1, c, tn), lambda ib, ij, ir: (ib, 0, ij)),
            pl.BlockSpec((c, 2 * c), lambda ib, ij, ir: (0, 0)),
            pl.BlockSpec((c, 1), lambda ib, ij, ir: (0, 0)),
        ],
        out_specs=pl.BlockSpec((1, 3, c, tn), lambda ib, ij, ir: (ib, 0, 0, ij)),
        scratch_shapes=[
            pltpu.VMEM((2, 1, tn), jnp.float32),    # running max S per branch
            pltpu.VMEM((2, c, tn), jnp.float32),    # running gathered TA per branch
        ],
        compiler_params=pltpu.CompilerParams(
            dimension_semantics=("parallel", "parallel", "arbitrary"),
            vmem_limit_bytes=32 * 1024 * 1024),
    )(qf, kf, vf, w1, b1.reshape(c, 1))


# --------------------- conv2 (3x3) + folded BN + ReLU kernel ----------------- #

def _conv2_bn_relu_kernel(x_ref, top_ref, bot_ref, w_ref, scale_ref, shift_ref,
                          out_ref, pad_ref, *, wp, w_img):
    """3x3 conv (pad=1) + BN (folded, inference) + ReLU for one row tile.

    The zero padding is built inside the kernel: the TR image rows (plus the
    one-row halos supplied as tiny inputs) are copied into a flat VMEM buffer
    laid out as padded rows of width wp = w+2, so every 3x3 tap is a contiguous
    window at a static offset.  The conv is 9 accumulating K=3c matmuls.

    x_ref   : (1, 3c, TR, w)     main image rows of this tile
    top_ref : (1, 1, 3c, w)      row above the tile (zeros at the image top)
    bot_ref : (1, 1, 3c, w)      row below the tile (zeros at the image bottom)
    w_ref   : (9, c, 3c)         per-tap weights, tap index k = ky*3 + kx
    scale   : (c, 1)             gamma / sqrt(var + eps)
    shift   : (c, 1)             beta + (conv_bias - mean) * scale
    out_ref : (1, 1, c, TR*wp)   conv output over padded column positions
    pad_ref : (3c, (TR+2)*wp+2)  flat padded row-tile buffer
    """
    c3 = x_ref.shape[1]
    tr_rows = x_ref.shape[2]
    tile = tr_rows * wp
    c_out = out_ref.shape[2]

    # Logical padded element (row lr, padded-col cp) lives at flat 1 + lr*wp + cp.
    pad_ref[...] = jnp.zeros(pad_ref.shape, jnp.float32)       # zero margins
    pad_ref[:, 2:2 + w_img] = top_ref[0, 0]                    # halo row above
    for lr in range(tr_rows):                                  # main rows
        off = (lr + 1) * wp + 2
        pad_ref[:, off:off + w_img] = x_ref[0, :, lr, :]
    off = (tr_rows + 1) * wp + 2
    pad_ref[:, off:off + w_img] = bot_ref[0, 0]                # halo row below

    # 3x3 conv as 9 accumulating matmuls on contiguous shifted windows
    # (no (9*3c, N) stack scratch, no stack write pass).
    acc = jnp.zeros((c_out, tile), jnp.float32)
    k = 0
    for ky in range(3):
        for kx in range(3):
            win = pad_ref[:, ky * wp + kx: ky * wp + kx + tile]      # (3c, tile)
            acc = acc + jnp.dot(w_ref[k], win,
                                preferred_element_type=jnp.float32)  # (c, tile)
            k += 1
    y = acc * scale_ref[...] + shift_ref[...]
    out_ref[0, 0] = jnp.maximum(y, 0.0).astype(out_ref.dtype)


def _conv2_bn_relu(x4, halo_top, halo_bot, w2_flat, scale, shift, *, wp, tr_rows):
    b, c3, h, w = x4.shape
    c = w2_flat.shape[1]
    n_tiles = h // tr_rows
    tile = tr_rows * wp
    kernel = functools.partial(_conv2_bn_relu_kernel, wp=wp, w_img=w)
    return pl.pallas_call(
        kernel,
        out_shape=jax.ShapeDtypeStruct((b, n_tiles, c, tile), jnp.float32),
        grid=(b, n_tiles),
        in_specs=[
            pl.BlockSpec((1, c3, tr_rows, w), lambda ib, jr: (ib, 0, jr, 0)),
            pl.BlockSpec((1, 1, c3, w), lambda ib, jr: (ib, jr, 0, 0)),
            pl.BlockSpec((1, 1, c3, w), lambda ib, jr: (ib, jr, 0, 0)),
            pl.BlockSpec((9, c, c3), lambda ib, jr: (0, 0, 0)),
            pl.BlockSpec((c, 1), lambda ib, jr: (0, 0)),
            pl.BlockSpec((c, 1), lambda ib, jr: (0, 0)),
        ],
        out_specs=pl.BlockSpec((1, 1, c, tile), lambda ib, jr: (ib, jr, 0, 0)),
        scratch_shapes=[pltpu.VMEM((c3, (tr_rows + 2) * wp + 2), jnp.float32)],
        compiler_params=pltpu.CompilerParams(
            dimension_semantics=("parallel", "parallel"),
            vmem_limit_bytes=32 * 1024 * 1024),
    )(x4, halo_top, halo_bot, w2_flat, scale, shift)


# ------------------------------- tile pickers -------------------------------- #

def _pick_div_tile(n_pad, cap):
    """Largest multiple-of-128 tile <= cap that divides n_pad (n_pad % 128 == 0)."""
    t = min(cap, n_pad)
    t -= t % 128
    t = max(t, 128)
    while t > 128 and n_pad % t:
        t -= 128
    return t


def _pick_row_tile(h, wp, budget_lanes=8192):
    """Largest divisor of h that is a multiple of 8 (or h itself) within budget."""
    cands = sorted({d for d in range(1, h + 1)
                    if h % d == 0 and (d % 8 == 0 or d == h)}, reverse=True)
    for d in cands:
        if d * wp <= budget_lanes:
            return d
    return cands[-1]


# ------------------------------- forward pass -------------------------------- #

@jax.jit
def attention_block_forward(v_rgb, k_dep, q_flo, params, eps=1e-5):
    """Pallas implementation of Attention_block.forward (inputs NCHW)."""
    b, c, h, w = q_flo.shape
    n = h * w
    n_pad = ((n + 127) // 128) * 128

    qf = q_flo.reshape(b, c, n)
    kf = k_dep.reshape(b, c, n)
    vf = v_rgb.reshape(b, c, n)
    if n_pad != n:
        padw = ((0, 0), (0, 0), (0, n_pad - n))
        qf = jnp.pad(qf, padw)   # padded rows are masked to -inf inside the kernel
        kf = jnp.pad(kf, padw)
        vf = jnp.pad(vf, padw)   # padded columns only produce cropped outputs

    tn = _pick_div_tile(n_pad, 1024)   # V column tile (lane-dense output width)
    tr = _pick_div_tile(n_pad, 256)    # Q/K row chunk (reduction axis)

    # Fused dual-branch attention; output is the full conv2 input [C_v; C_k; V].
    x3 = _attention_pair(qf, kf, vf, params["w1"], params["b1"],
                         tn=tn, tr=tr, n_valid=n)
    if n_pad != n:
        x3 = x3[:, :, :, :n]
    c3 = 3 * c
    x4 = x3.reshape(b, c3, h, w)

    # conv2 (3x3, pad=1) + folded inference BatchNorm + ReLU, tiled over rows.
    wp = w + 2
    tr_rows = _pick_row_tile(h, wp)
    n_tiles = h // tr_rows

    # Tiny per-tile halo-row arrays (zeros at the image borders) -- replaces the
    # full-slab jnp.pad passes of the previous version.
    zrow = jnp.zeros((b, c3, 1, w), x4.dtype)
    halo_top = jnp.concatenate(
        [zrow, x4[:, :, tr_rows - 1:h - 1:tr_rows, :]], axis=2)
    halo_bot = jnp.concatenate(
        [x4[:, :, tr_rows:h:tr_rows, :], zrow], axis=2)
    halo_top = halo_top.transpose(0, 2, 1, 3)     # (b, n_tiles, 3c, w)
    halo_bot = halo_bot.transpose(0, 2, 1, 3)

    # Per-tap weights: (9, c, 3c) with tap index k = ky*3 + kx.
    w2_flat = jnp.transpose(params["w2"], (2, 3, 0, 1)).reshape(9, c, c3)

    # Fold conv bias + inference BatchNorm into per-channel scale/shift.
    inv = params["bn_gamma"] / jnp.sqrt(params["bn_var"] + eps)
    scale = inv.reshape(c, 1)
    shift = (params["bn_beta"]
             + (params["b2"] - params["bn_mean"]) * inv).reshape(c, 1)

    outp = _conv2_bn_relu(x4, halo_top, halo_bot, w2_flat, scale, shift,
                          wp=wp, tr_rows=tr_rows)
    # (b, n_tiles, c, TR*wp) -> (b, c, h, w+2) -> crop the padded columns.
    outp = outp.reshape(b, n_tiles, c, tr_rows, wp)
    outp = outp.transpose(0, 2, 1, 3, 4).reshape(b, c, h, wp)
    return outp[:, :, :, 1:w + 1]


# ------------------------------ reference (JAX) ------------------------------ #

def attention_block_reference(v_rgb, k_dep, q_flo, params, eps=1e-5):
    b, c, h, w = q_flo.shape
    n = h * w
    vf = v_rgb.reshape(b, c, n)

    def branch(xf):
        t = jnp.einsum("bci,bcj->bij", xf, vf)               # (b, N, N)
        s = t.max(axis=1)                                    # (b, N)
        arg = t.argmax(axis=1)                               # (b, N)
        ta = jnp.take_along_axis(xf, arg[:, None, :], axis=2)
        cat = jnp.concatenate([vf, ta], axis=1)              # (b, 2c, N)
        conv = (jnp.einsum("oi,bin->bon", params["w1"], cat)
                + params["b1"][None, :, None])
        return conv * s[:, None, :]

    c_v = branch(q_flo.reshape(b, c, n))
    c_k = branch(k_dep.reshape(b, c, n))
    x = jnp.concatenate([c_v, c_k, vf], axis=1).reshape(b, 3 * c, h, w)
    out = jax.lax.conv_general_dilated(
        x, params["w2"], (1, 1), ((1, 1), (1, 1)),
        dimension_numbers=("NCHW", "OIHW", "NCHW"))
    out = out + params["b2"][None, :, None, None]
    inv = params["bn_gamma"] / jnp.sqrt(params["bn_var"] + eps)
    out = ((out - params["bn_mean"][None, :, None, None])
           * inv[None, :, None, None]
           + params["bn_beta"][None, :, None, None])
    return jnp.maximum(out, 0.0)


# ---------------------------------- params ----------------------------------- #

def init_params(in_dim, key):
    ks = jax.random.split(key, 8)
    c = in_dim
    return {
        # conv1: Conv2d(2c -> c, k=1)
        "w1": 0.2 * jax.random.normal(ks[0], (c, 2 * c), jnp.float32),
        "b1": 0.1 * jax.random.normal(ks[1], (c,), jnp.float32),
        # conv2: Conv2d(3c -> c, k=3, pad=1)
        "w2": 0.1 * jax.random.normal(ks[2], (c, 3 * c, 3, 3), jnp.float32),
        "b2": 0.1 * jax.random.normal(ks[3], (c,), jnp.float32),
        # BatchNorm2d(c) — inference-mode buffers (deterministic)
        "bn_gamma": 1.0 + 0.1 * jax.random.normal(ks[4], (c,), jnp.float32),
        "bn_beta": 0.1 * jax.random.normal(ks[5], (c,), jnp.float32),
        "bn_mean": 0.1 * jax.random.normal(ks[6], (c,), jnp.float32),
        "bn_var": jax.random.uniform(ks[7], (c,), jnp.float32, 0.5, 1.5),
    }


# ----------------------------------- main ------------------------------------ #

if __name__ == "__main__":
    key = jax.random.PRNGKey(0)
    k_v, k_k, k_q, k_p = jax.random.split(key, 4)

    b, c, h, w = 2, 4, 16, 16          # small shapes; N = 256
    v_rgb = jax.random.normal(k_v, (b, c, h, w), jnp.float32)
    k_dep = jax.random.normal(k_k, (b, c, h, w), jnp.float32)
    q_flo = jax.random.normal(k_q, (b, c, h, w), jnp.float32)
    params = init_params(c, k_p)

    out = attention_block_forward(v_rgb, k_dep, q_flo, params)
    out = jax.block_until_ready(out)

    ref = attention_block_reference(v_rgb, k_dep, q_flo, params)
    ref = jax.block_until_ready(ref)

    assert out.shape == (b, c, h, w)
    assert bool(jnp.all(jnp.isfinite(out)))
    # Allow a tiny fraction of mismatches: float rounding can flip an argmax
    # between two nearly-identical similarity scores.
    close = jnp.isclose(out, ref, rtol=1e-3, atol=1e-3)
    assert float(jnp.mean(close)) > 0.99, "Pallas output diverges from reference"

    print("KERNEL_OK")
</pallas_src>

<mosaic_0001>
module attributes {stable_mosaic.version = 11 : i64} {
  func.func @_attn_pair_kernel(%arg0: i32, %arg1: i32, %arg2: i32, %arg3: memref<1x4x256xf32, #tpu.memory_space<vmem>>, %arg4: memref<1x4x256xf32, #tpu.memory_space<vmem>>, %arg5: memref<1x4x256xf32, #tpu.memory_space<vmem>>, %arg6: memref<4x8xf32, #tpu.memory_space<vmem>>, %arg7: memref<4x1xf32, #tpu.memory_space<vmem>>, %arg8: memref<1x3x4x256xf32, #tpu.memory_space<vmem>>, %arg9: memref<2x1x256xf32, #tpu.memory_space<vmem>>, %arg10: memref<2x4x256xf32, #tpu.memory_space<vmem>>) attributes {dimension_semantics = [#tpu.dimension_semantics<parallel>, #tpu.dimension_semantics<parallel>, #tpu.dimension_semantics<arbitrary>], iteration_bounds = array<i64: 2, 1, 1>, scalar_prefetch = 0 : i64, scratch_operands = 2 : i64, tpu.core_type = #tpu.core_type<tc>, window_params = [{transform_indices = @transform_0, window_bounds = array<i64: 1, 4, 256>}, {transform_indices = @transform_1, window_bounds = array<i64: 1, 4, 256>}, {transform_indices = @transform_2, window_bounds = array<i64: 1, 4, 256>}, {pipeline_mode = #tpu.pipeline_mode<synchronous>, transform_indices = @transform_3, window_bounds = array<i64: 4, 8>}, {pipeline_mode = #tpu.pipeline_mode<synchronous>, transform_indices = @transform_4, window_bounds = array<i64: 4, 1>}, {transform_indices = @transform_5, window_bounds = array<i64: 1, 3, 4, 256>}]} {
    %c0_i32 = arith.constant 0 : i32
    %0 = arith.cmpi eq, %arg2, %c0_i32 : i32
    %1 = arith.extui %0 : i1 to i32
    %c0_i32_0 = arith.constant 0 : i32
    %2 = arith.cmpi ne, %1, %c0_i32_0 : i32
    scf.if %2 {
      %cst_41 = arith.constant 0xFF800000 : f32
      %73 = vector.broadcast %cst_41 : f32 to vector<2x1x256xf32>
      %c0_42 = arith.constant 0 : index
      %c0_43 = arith.constant 0 : index
      %c0_44 = arith.constant 0 : index
      %74 = vector.load %arg9[%c0_42, %c0_43, %c0_44] : memref<2x1x256xf32, #tpu.memory_space<vmem>>, vector<2x1x256xf32>
      tpu.vector_store %arg9[%c0_42, %c0_43, %c0_44], %73 {strides = array<i32>} : memref<2x1x256xf32, #tpu.memory_space<vmem>>, vector<2x1x256xf32>,
      %cst_45 = arith.constant 0.000000e+00 : f32
      %75 = vector.broadcast %cst_45 : f32 to vector<2x4x256xf32>
      %c0_46 = arith.constant 0 : index
      %c0_47 = arith.constant 0 : index
      %c0_48 = arith.constant 0 : index
      %76 = vector.load %arg10[%c0_46, %c0_47, %c0_48] : memref<2x4x256xf32, #tpu.memory_space<vmem>>, vector<2x4x256xf32>
      tpu.vector_store %arg10[%c0_46, %c0_47, %c0_48], %75 {strides = array<i32>} : memref<2x4x256xf32, #tpu.memory_space<vmem>>, vector<2x4x256xf32>,
    } else {
    }
    %c0 = arith.constant 0 : index
    %c0_1 = arith.constant 0 : index
    %c0_2 = arith.constant 0 : index
    %3 = vector.load %arg5[%c0, %c0_1, %c0_2] : memref<1x4x256xf32, #tpu.memory_space<vmem>>, vector<1x4x256xf32>
    %4 = vector.shape_cast %3 : vector<1x4x256xf32> to vector<4x256xf32>
    %c0_3 = arith.constant 0 : index
    %c0_4 = arith.constant 0 : index
    %c0_5 = arith.constant 0 : index
    %5 = vector.load %arg3[%c0_3, %c0_4, %c0_5] : memref<1x4x256xf32, #tpu.memory_space<vmem>>, vector<1x4x256xf32>
    %6 = vector.shape_cast %5 : vector<1x4x256xf32> to vector<4x256xf32>
    %c0_6 = arith.constant 0 : index
    %c0_7 = arith.constant 0 : index
    %c0_8 = arith.constant 0 : index
    %7 = vector.load %arg4[%c0_6, %c0_7, %c0_8] : memref<1x4x256xf32, #tpu.memory_space<vmem>>, vector<1x4x256xf32>
    %8 = vector.shape_cast %7 : vector<1x4x256xf32> to vector<4x256xf32>
    %9 = tpu.concatenate %6, %8 in 1 : vector<4x256xf32>, vector<4x256xf32> -> vector<4x512xf32>
    %cst = arith.constant dense<0.000000e+00> : vector<512x256xf32>
    %10 = tpu.matmul %9, %4, %cst {dimension_numbers = #tpu.dot_dimension_numbers<[0], [0], [1], [1], [0, 1, 1, 1], [], []>} : vector<4x512xf32>, vector<4x256xf32>, vector<512x256xf32> -> vector<512x256xf32>
    %11 = tpu.iota {dimensions = array<i32: 0>} : vector<256x256xi32>
    %12 = vector.extract_strided_slice %10 {offsets = [0, 0], sizes = [256, 256], strides = [1, 1]} : vector<512x256xf32> to vector<256x256xf32>
    %cst_9 = arith.constant dense<0xFF800000> : vector<256xf32>
    %13 = vector.multi_reduction <maximumf>, %12, %cst_9 [0] : vector<256x256xf32> to vector<256xf32>
    %14 = vector.shape_cast %13 : vector<256xf32> to vector<1x256xf32>
    %15 = vector.broadcast %14 : vector<1x256xf32> to vector<256x256xf32>
    %16 = arith.cmpf oeq, %12, %15 : vector<256x256xf32>
    %c256_i32 = arith.constant 256 : i32
    %17 = vector.broadcast %c256_i32 : i32 to vector<256x256xi32>
    %18 = arith.select %16, %11, %17 : vector<256x256xi1>, vector<256x256xi32>
    %cst_10 = arith.constant dense<2147483647> : vector<256xi32>
    %19 = vector.multi_reduction <minsi>, %18, %cst_10 [0] : vector<256x256xi32> to vector<256xi32>
    %20 = vector.shape_cast %19 : vector<256xi32> to vector<1x256xi32>
    %21 = vector.broadcast %20 : vector<1x256xi32> to vector<256x256xi32>
    %22 = arith.cmpi eq, %11, %21 : vector<256x256xi32>
    %23 = arith.extui %22 : vector<256x256xi1> to vector<256x256xi32>
    %24 = arith.sitofp %23 : vector<256x256xi32> to vector<256x256xf32>
    %cst_11 = arith.constant dense<0.000000e+00> : vector<4x256xf32>
    %25 = tpu.matmul %6, %24, %cst_11 {dimension_numbers = #tpu.dot_dimension_numbers<[1], [0], [0], [1], [0, 0, 1, 1], [], []>} : vector<4x256xf32>, vector<256x256xf32>, vector<4x256xf32> -> vector<4x256xf32>
    %c0_12 = arith.constant 0 : index
    %c0_13 = arith.constant 0 : index
    %c0_14 = arith.constant 0 : index
    %26 = vector.load %arg9[%c0_12, %c0_13, %c0_14] : memref<2x1x256xf32, #tpu.memory_space<vmem>>, vector<1x1x256xf32>
    %27 = vector.shape_cast %26 : vector<1x1x256xf32> to vector<1x256xf32>
    %28 = arith.cmpf ogt, %14, %27 : vector<1x256xf32>
    %29 = arith.select %28, %14, %27 : vector<1x256xi1>, vector<1x256xf32>
    %c0_15 = arith.constant 0 : index
    %c0_16 = arith.constant 0 : index
    %c0_17 = arith.constant 0 : index
    %30 = vector.load %arg9[%c0_15, %c0_16, %c0_17] : memref<2x1x256xf32, #tpu.memory_space<vmem>>, vector<1x1x256xf32>
    %31 = vector.shape_cast %30 : vector<1x1x256xf32> to vector<1x256xf32>
    %32 = vector.shape_cast %29 : vector<1x256xf32> to vector<1x1x256xf32>
    tpu.vector_store %arg9[%c0_15, %c0_16, %c0_17], %32 {strides = array<i32>} : memref<2x1x256xf32, #tpu.memory_space<vmem>>, vector<1x1x256xf32>,
    %c0_18 = arith.constant 0 : index
    %c0_19 = arith.constant 0 : index
    %c0_20 = arith.constant 0 : index
    %33 = vector.load %arg10[%c0_18, %c0_19, %c0_20] : memref<2x4x256xf32, #tpu.memory_space<vmem>>, vector<1x4x256xf32>
    %34 = vector.shape_cast %33 : vector<1x4x256xf32> to vector<4x256xf32>
    %35 = vector.shape_cast %28 : vector<1x256xi1> to vector<1x256xi1>
    %36 = vector.broadcast %35 : vector<1x256xi1> to vector<4x256xi1>
    %37 = arith.select %36, %25, %34 : vector<4x256xi1>, vector<4x256xf32>
    %c0_21 = arith.constant 0 : index
    %c0_22 = arith.constant 0 : index
    %c0_23 = arith.constant 0 : index
    %38 = vector.load %arg10[%c0_21, %c0_22, %c0_23] : memref<2x4x256xf32, #tpu.memory_space<vmem>>, vector<1x4x256xf32>
    %39 = vector.shape_cast %38 : vector<1x4x256xf32> to vector<4x256xf32>
    %40 = vector.shape_cast %37 : vector<4x256xf32> to vector<1x4x256xf32>
    tpu.vector_store %arg10[%c0_21, %c0_22, %c0_23], %40 {strides = array<i32>} : memref<2x4x256xf32, #tpu.memory_space<vmem>>, vector<1x4x256xf32>,
    %41 = vector.extract_strided_slice %10 {offsets = [256, 0], sizes = [256, 256], strides = [1, 1]} : vector<512x256xf32> to vector<256x256xf32>
    %cst_24 = arith.constant dense<0xFF800000> : vector<256xf32>
    %42 = vector.multi_reduction <maximumf>, %41, %cst_24 [0] : vector<256x256xf32> to vector<256xf32>
    %43 = vector.shape_cast %42 : vector<256xf32> to vector<1x256xf32>
    %44 = vector.broadcast %43 : vector<1x256xf32> to vector<256x256xf32>
    %45 = arith.cmpf oeq, %41, %44 : vector<256x256xf32>
    %c256_i32_25 = arith.constant 256 : i32
    %46 = vector.broadcast %c256_i32_25 : i32 to vector<256x256xi32>
    %47 = arith.select %45, %11, %46 : vector<256x256xi1>, vector<256x256xi32>
    %cst_26 = arith.constant dense<2147483647> : vector<256xi32>
    %48 = vector.multi_reduction <minsi>, %47, %cst_26 [0] : vector<256x256xi32> to vector<256xi32>
    %49 = vector.shape_cast %48 : vector<256xi32> to vector<1x256xi32>
    %50 = vector.broadcast %49 : vector<1x256xi32> to vector<256x256xi32>
    %51 = arith.cmpi eq, %11, %50 : vector<256x256xi32>
    %52 = arith.extui %51 : vector<256x256xi1> to vector<256x256xi32>
    %53 = arith.sitofp %52 : vector<256x256xi32> to vector<256x256xf32>
    %cst_27 = arith.constant dense<0.000000e+00> : vector<4x256xf32>
    %54 = tpu.matmul %8, %53, %cst_27 {dimension_numbers = #tpu.dot_dimension_numbers<[1], [0], [0], [1], [0, 0, 1, 1], [], []>} : vector<4x256xf32>, vector<256x256xf32>, vector<4x256xf32> -> vector<4x256xf32>
    %c1 = arith.constant 1 : index
    %c0_28 = arith.constant 0 : index
    %c0_29 = arith.constant 0 : index
    %55 = vector.load %arg9[%c1, %c0_28, %c0_29] : memref<2x1x256xf32, #tpu.memory_space<vmem>>, vector<1x1x256xf32>
    %56 = vector.shape_cast %55 : vector<1x1x256xf32> to vector<1x256xf32>
    %57 = arith.cmpf ogt, %43, %56 : vector<1x256xf32>
    %58 = arith.select %57, %43, %56 : vector<1x256xi1>, vector<1x256xf32>
    %c1_30 = arith.constant 1 : index
    %c0_31 = arith.constant 0 : index
    %c0_32 = arith.constant 0 : index
    %59 = vector.load %arg9[%c1_30, %c0_31, %c0_32] : memref<2x1x256xf32, #tpu.memory_space<vmem>>, vector<1x1x256xf32>
    %60 = vector.shape_cast %59 : vector<1x1x256xf32> to vector<1x256xf32>
    %61 = vector.shape_cast %58 : vector<1x256xf32> to vector<1x1x256xf32>
    tpu.vector_store %arg9[%c1_30, %c0_31, %c0_32], %61 {strides = array<i32>} : memref<2x1x256xf32, #tpu.memory_space<vmem>>, vector<1x1x256xf32>,
    %c1_33 = arith.constant 1 : index
    %c0_34 = arith.constant 0 : index
    %c0_35 = arith.constant 0 : index
    %62 = vector.load %arg10[%c1_33, %c0_34, %c0_35] : memref<2x4x256xf32, #tpu.memory_space<vmem>>, vector<1x4x256xf32>
    %63 = vector.shape_cast %62 : vector<1x4x256xf32> to vector<4x256xf32>
    %64 = vector.shape_cast %57 : vector<1x256xi1> to vector<1x256xi1>
    %65 = vector.broadcast %64 : vector<1x256xi1> to vector<4x256xi1>
    %66 = arith.select %65, %54, %63 : vector<4x256xi1>, vector<4x256xf32>
    %c1_36 = arith.constant 1 : index
    %c0_37 = arith.constant 0 : index
    %c0_38 = arith.constant 0 : index
    %67 = vector.load %arg10[%c1_36, %c0_37, %c0_38] : memref<2x4x256xf32, #tpu.memory_space<vmem>>, vector<1x4x256xf32>
    %68 = vector.shape_cast %67 : vector<1x4x256xf32> to vector<4x256xf32>
    %69 = vector.shape_cast %66 : vector<4x256xf32> to vector<1x4x256xf32>
    tpu.vector_store %arg10[%c1_36, %c0_37, %c0_38], %69 {strides = array<i32>} : memref<2x4x256xf32, #tpu.memory_space<vmem>>, vector<1x4x256xf32>,
    %c0_i32_39 = arith.constant 0 : i32
    %70 = arith.cmpi eq, %arg2, %c0_i32_39 : i32
    %71 = arith.extui %70 : i1 to i32
    %c0_i32_40 = arith.constant 0 : i32
    %72 = arith.cmpi ne, %71, %c0_i32_40 : i32
    scf.if %72 {
      %c0_41 = arith.constant 0 : index
      %c0_42 = arith.constant 0 : index
      %73 = vector.load %arg6[%c0_41, %c0_42] : memref<4x8xf32, #tpu.memory_space<vmem>>, vector<4x8xf32>
      %c0_43 = arith.constant 0 : index
      %c0_44 = arith.constant 0 : index
      %74 = vector.load %arg7[%c0_43, %c0_44] : memref<4x1xf32, #tpu.memory_space<vmem>>, vector<4x1xf32>
      %75 = vector.extract_strided_slice %73 {offsets = [0, 0], sizes = [4, 4], strides = [1, 1]} : vector<4x8xf32> to vector<4x4xf32>
      %76 = vector.extract_strided_slice %73 {offsets = [0, 4], sizes = [4, 4], strides = [1, 1]} : vector<4x8xf32> to vector<4x4xf32>
      %cst_45 = arith.constant dense<0.000000e+00> : vector<4x256xf32>
      %77 = tpu.matmul %75, %4, %cst_45 {dimension_numbers = #tpu.dot_dimension_numbers<[1], [0], [0], [1], [0, 0, 1, 1], [], []>} : vector<4x4xf32>, vector<4x256xf32>, vector<4x256xf32> -> vector<4x256xf32>
      %78 = vector.broadcast %74 : vector<4x1xf32> to vector<4x256xf32>
      %79 = arith.addf %77, %78 : vector<4x256xf32>
      %c0_46 = arith.constant 0 : index
      %c0_47 = arith.constant 0 : index
      %c0_48 = arith.constant 0 : index
      %80 = vector.load %arg10[%c0_46, %c0_47, %c0_48] : memref<2x4x256xf32, #tpu.memory_space<vmem>>, vector<1x4x256xf32>
      %81 = vector.shape_cast %80 : vector<1x4x256xf32> to vector<4x256xf32>
      %cst_49 = arith.constant dense<0.000000e+00> : vector<4x256xf32>
      %82 = tpu.matmul %76, %81, %cst_49 {dimension_numbers = #tpu.dot_dimension_numbers<[1], [0], [0], [1], [0, 0, 1, 1], [], []>} : vector<4x4xf32>, vector<4x256xf32>, vector<4x256xf32> -> vector<4x256xf32>
      %83 = arith.addf %79, %82 : vector<4x256xf32>
      %c0_50 = arith.constant 0 : index
      %c0_51 = arith.constant 0 : index
      %c0_52 = arith.constant 0 : index
      %84 = vector.load %arg9[%c0_50, %c0_51, %c0_52] : memref<2x1x256xf32, #tpu.memory_space<vmem>>, vector<1x1x256xf32>
      %85 = vector.shape_cast %84 : vector<1x1x256xf32> to vector<1x256xf32>
      %86 = vector.broadcast %85 : vector<1x256xf32> to vector<4x256xf32>
      %87 = arith.mulf %83, %86 : vector<4x256xf32>
      %c0_53 = arith.constant 0 : index
      %c0_54 = arith.constant 0 : index
      %c0_55 = arith.constant 0 : index
      %c0_56 = arith.constant 0 : index
      %88 = vector.load %arg8[%c0_53, %c0_54, %c0_55, %c0_56] : memref<1x3x4x256xf32, #tpu.memory_space<vmem>>, vector<1x1x4x256xf32>
      %89 = vector.shape_cast %88 : vector<1x1x4x256xf32> to vector<4x256xf32>
      %90 = vector.shape_cast %87 : vector<4x256xf32> to vector<1x1x4x256xf32>
      tpu.vector_store %arg8[%c0_53, %c0_54, %c0_55, %c0_56], %90 {strides = array<i32>} : memref<1x3x4x256xf32, #tpu.memory_space<vmem>>, vector<1x1x4x256xf32>,
      %c1_57 = arith.constant 1 : index
      %c0_58 = arith.constant 0 : index
      %c0_59 = arith.constant 0 : index
      %91 = vector.load %arg10[%c1_57, %c0_58, %c0_59] : memref<2x4x256xf32, #tpu.memory_space<vmem>>, vector<1x4x256xf32>
      %92 = vector.shape_cast %91 : vector<1x4x256xf32> to vector<4x256xf32>
      %cst_60 = arith.constant dense<0.000000e+00> : vector<4x256xf32>
      %93 = tpu.matmul %76, %92, %cst_60 {dimension_numbers = #tpu.dot_dimension_numbers<[1], [0], [0], [1], [0, 0, 1, 1], [], []>} : vector<4x4xf32>, vector<4x256xf32>, vector<4x256xf32> -> vector<4x256xf32>
      %94 = arith.addf %79, %93 : vector<4x256xf32>
      %c1_61 = arith.constant 1 : index
      %c0_62 = arith.constant 0 : index
      %c0_63 = arith.constant 0 : index
      %95 = vector.load %arg9[%c1_61, %c0_62, %c0_63] : memref<2x1x256xf32, #tpu.memory_space<vmem>>, vector<1x1x256xf32>
      %96 = vector.shape_cast %95 : vector<1x1x256xf32> to vector<1x256xf32>
      %97 = vector.broadcast %96 : vector<1x256xf32> to vector<4x256xf32>
      %98 = arith.mulf %94, %97 : vector<4x256xf32>
      %c0_64 = arith.constant 0 : index
      %c1_65 = arith.constant 1 : index
      %c0_66 = arith.constant 0 : index
      %c0_67 = arith.constant 0 : index
      %99 = vector.load %arg8[%c0_64, %c1_65, %c0_66, %c0_67] : memref<1x3x4x256xf32, #tpu.memory_space<vmem>>, vector<1x1x4x256xf32>
      %100 = vector.shape_cast %99 : vector<1x1x4x256xf32> to vector<4x256xf32>
      %101 = vector.shape_cast %98 : vector<4x256xf32> to vector<1x1x4x256xf32>
      tpu.vector_store %arg8[%c0_64, %c1_65, %c0_66, %c0_67], %101 {strides = array<i32>} : memref<1x3x4x256xf32, #tpu.memory_space<vmem>>, vector<1x1x4x256xf32>,
      %c0_68 = arith.constant 0 : index
      %c2 = arith.constant 2 : index
      %c0_69 = arith.constant 0 : index
      %c0_70 = arith.constant 0 : index
      %102 = vector.load %arg8[%c0_68, %c2, %c0_69, %c0_70] : memref<1x3x4x256xf32, #tpu.memory_space<vmem>>, vector<1x1x4x256xf32>
      %103 = vector.shape_cast %102 : vector<1x1x4x256xf32> to vector<4x256xf32>
      %104 = vector.shape_cast %4 : vector<4x256xf32> to vector<1x1x4x256xf32>
      tpu.vector_store %arg8[%c0_68, %c2, %c0_69, %c0_70], %104 {strides = array<i32>} : memref<1x3x4x256xf32, #tpu.memory_space<vmem>>, vector<1x1x4x256xf32>,
    } else {
    }
    return
  }
  func.func @transform_0(%arg0: i32, %arg1: i32, %arg2: i32) -> (i32, i32, i32) {
    %c0_i32 = arith.constant 0 : i32
    %c0_i32_0 = arith.constant 0 : i32
    return %arg0, %c0_i32, %arg2 : i32, i32, i32
  }
  func.func @transform_1(%arg0: i32, %arg1: i32, %arg2: i32) -> (i32, i32, i32) {
    %c0_i32 = arith.constant 0 : i32
    %c0_i32_0 = arith.constant 0 : i32
    return %arg0, %c0_i32, %arg2 : i32, i32, i32
  }
  func.func @transform_2(%arg0: i32, %arg1: i32, %arg2: i32) -> (i32, i32, i32) {
    %c0_i32 = arith.constant 0 : i32
    %c0_i32_0 = arith.constant 0 : i32
    return %arg0, %c0_i32, %arg1 : i32, i32, i32
  }
  func.func @transform_3(%arg0: i32, %arg1: i32, %arg2: i32) -> (i32, i32) {
    %c0_i32 = arith.constant 0 : i32
    %c0_i32_0 = arith.constant 0 : i32
    %c0_i32_1 = arith.constant 0 : i32
    return %c0_i32, %c0_i32_0 : i32, i32
  }
  func.func @transform_4(%arg0: i32, %arg1: i32, %arg2: i32) -> (i32, i32) {
    %c0_i32 = arith.constant 0 : i32
    %c0_i32_0 = arith.constant 0 : i32
    %c0_i32_1 = arith.constant 0 : i32
    return %c0_i32, %c0_i32_0 : i32, i32
  }
  func.func @transform_5(%arg0: i32, %arg1: i32, %arg2: i32) -> (i32, i32, i32, i32) {
    %c0_i32 = arith.constant 0 : i32
    %c0_i32_0 = arith.constant 0 : i32
    %c0_i32_1 = arith.constant 0 : i32
    return %arg0, %c0_i32, %c0_i32_0, %arg1 : i32, i32, i32, i32
  }
}

module attributes {stable_mosaic.version = 11 : i64} {
  func.func @_conv2_bn_relu_kernel(%arg0: i32, %arg1: i32, %arg2: memref<1x12x16x16xf32, #tpu.memory_space<vmem>>, %arg3: memref<1x1x12x16xf32, #tpu.memory_space<vmem>>, %arg4: memref<1x1x12x16xf32, #tpu.memory_space<vmem>>, %arg5: memref<9x4x12xf32, #tpu.memory_space<vmem>>, %arg6: memref<4x1xf32, #tpu.memory_space<vmem>>, %arg7: memref<4x1xf32, #tpu.memory_space<vmem>>, %arg8: memref<1x1x4x288xf32, #tpu.memory_space<vmem>>, %arg9: memref<12x326xf32, #tpu.memory_space<vmem>>) attributes {dimension_semantics = [#tpu.dimension_semantics<parallel>, #tpu.dimension_semantics<parallel>], iteration_bounds = array<i64: 2, 1>, scalar_prefetch = 0 : i64, scratch_operands = 1 : i64, tpu.core_type = #tpu.core_type<tc>, window_params = [{transform_indices = @transform_0, window_bounds = array<i64: 1, 12, 16, 16>}, {transform_indices = @transform_1, window_bounds = array<i64: 1, 1, 12, 16>}, {transform_indices = @transform_2, window_bounds = array<i64: 1, 1, 12, 16>}, {pipeline_mode = #tpu.pipeline_mode<synchronous>, transform_indices = @transform_3, window_bounds = array<i64: 9, 4, 12>}, {pipeline_mode = #tpu.pipeline_mode<synchronous>, transform_indices = @transform_4, window_bounds = array<i64: 4, 1>}, {pipeline_mode = #tpu.pipeline_mode<synchronous>, transform_indices = @transform_5, window_bounds = array<i64: 4, 1>}, {transform_indices = @transform_6, window_bounds = array<i64: 1, 1, 4, 288>}]} {
    %cst = arith.constant 0.000000e+00 : f32
    %0 = vector.broadcast %cst : f32 to vector<12x326xf32>
    %c0 = arith.constant 0 : index
    %c0_0 = arith.constant 0 : index
    %1 = vector.load %arg9[%c0, %c0_0] : memref<12x326xf32, #tpu.memory_space<vmem>>, vector<12x326xf32>
    tpu.vector_store %arg9[%c0, %c0_0], %0 {strides = array<i32>} : memref<12x326xf32, #tpu.memory_space<vmem>>, vector<12x326xf32>,
    %c0_1 = arith.constant 0 : index
    %c0_2 = arith.constant 0 : index
    %c0_3 = arith.constant 0 : index
    %c0_4 = arith.constant 0 : index
    %2 = vector.load %arg3[%c0_1, %c0_2, %c0_3, %c0_4] : memref<1x1x12x16xf32, #tpu.memory_space<vmem>>, vector<1x1x12x16xf32>
    %3 = vector.shape_cast %2 : vector<1x1x12x16xf32> to vector<12x16xf32>
    %c0_5 = arith.constant 0 : index
    %c2 = arith.constant 2 : index
    %4 = vector.load %arg9[%c0_5, %c2] : memref<12x326xf32, #tpu.memory_space<vmem>>, vector<12x16xf32>
    tpu.vector_store %arg9[%c0_5, %c2], %3 {strides = array<i32>} : memref<12x326xf32, #tpu.memory_space<vmem>>, vector<12x16xf32>,
    %c0_6 = arith.constant 0 : index
    %c0_7 = arith.constant 0 : index
    %c0_8 = arith.constant 0 : index
    %c0_9 = arith.constant 0 : index
    %5 = vector.load %arg2[%c0_6, %c0_7, %c0_8, %c0_9] : memref<1x12x16x16xf32, #tpu.memory_space<vmem>>, vector<1x12x1x16xf32>
    %6 = vector.shape_cast %5 : vector<1x12x1x16xf32> to vector<12x16xf32>
    %c0_10 = arith.constant 0 : index
    %c20 = arith.constant 20 : index
    %7 = vector.load %arg9[%c0_10, %c20] : memref<12x326xf32, #tpu.memory_space<vmem>>, vector<12x16xf32>
    tpu.vector_store %arg9[%c0_10, %c20], %6 {strides = array<i32>} : memref<12x326xf32, #tpu.memory_space<vmem>>, vector<12x16xf32>,
    %c0_11 = arith.constant 0 : index
    %c0_12 = arith.constant 0 : index
    %c1 = arith.constant 1 : index
    %c0_13 = arith.constant 0 : index
    %8 = vector.load %arg2[%c0_11, %c0_12, %c1, %c0_13] : memref<1x12x16x16xf32, #tpu.memory_space<vmem>>, vector<1x12x1x16xf32>
    %9 = vector.shape_cast %8 : vector<1x12x1x16xf32> to vector<12x16xf32>
    %c0_14 = arith.constant 0 : index
    %c38 = arith.constant 38 : index
    %10 = vector.load %arg9[%c0_14, %c38] : memref<12x326xf32, #tpu.memory_space<vmem>>, vector<12x16xf32>
    tpu.vector_store %arg9[%c0_14, %c38], %9 {strides = array<i32>} : memref<12x326xf32, #tpu.memory_space<vmem>>, vector<12x16xf32>,
    %c0_15 = arith.constant 0 : index
    %c0_16 = arith.constant 0 : index
    %c2_17 = arith.constant 2 : index
    %c0_18 = arith.constant 0 : index
    %11 = vector.load %arg2[%c0_15, %c0_16, %c2_17, %c0_18] : memref<1x12x16x16xf32, #tpu.memory_space<vmem>>, vector<1x12x1x16xf32>
    %12 = vector.shape_cast %11 : vector<1x12x1x16xf32> to vector<12x16xf32>
    %c0_19 = arith.constant 0 : index
    %c56 = arith.constant 56 : index
    %13 = vector.load %arg9[%c0_19, %c56] : memref<12x326xf32, #tpu.memory_space<vmem>>, vector<12x16xf32>
    tpu.vector_store %arg9[%c0_19, %c56], %12 {strides = array<i32>} : memref<12x326xf32, #tpu.memory_space<vmem>>, vector<12x16xf32>,
    %c0_20 = arith.constant 0 : index
    %c0_21 = arith.constant 0 : index
    %c3 = arith.constant 3 : index
    %c0_22 = arith.constant 0 : index
    %14 = vector.load %arg2[%c0_20, %c0_21, %c3, %c0_22] : memref<1x12x16x16xf32, #tpu.memory_space<vmem>>, vector<1x12x1x16xf32>
    %15 = vector.shape_cast %14 : vector<1x12x1x16xf32> to vector<12x16xf32>
    %c0_23 = arith.constant 0 : index
    %c74 = arith.constant 74 : index
    %16 = vector.load %arg9[%c0_23, %c74] : memref<12x326xf32, #tpu.memory_space<vmem>>, vector<12x16xf32>
    tpu.vector_store %arg9[%c0_23, %c74], %15 {strides = array<i32>} : memref<12x326xf32, #tpu.memory_space<vmem>>, vector<12x16xf32>,
    %c0_24 = arith.constant 0 : index
    %c0_25 = arith.constant 0 : index
    %c4 = arith.constant 4 : index
    %c0_26 = arith.constant 0 : index
    %17 = vector.load %arg2[%c0_24, %c0_25, %c4, %c0_26] : memref<1x12x16x16xf32, #tpu.memory_space<vmem>>, vector<1x12x1x16xf32>
    %18 = vector.shape_cast %17 : vector<1x12x1x16xf32> to vector<12x16xf32>
    %c0_27 = arith.constant 0 : index
    %c92 = arith.constant 92 : index
    %19 = vector.load %arg9[%c0_27, %c92] : memref<12x326xf32, #tpu.memory_space<vmem>>, vector<12x16xf32>
    tpu.vector_store %arg9[%c0_27, %c92], %18 {strides = array<i32>} : memref<12x326xf32, #tpu.memory_space<vmem>>, vector<12x16xf32>,
    %c0_28 = arith.constant 0 : index
    %c0_29 = arith.constant 0 : index
    %c5 = arith.constant 5 : index
    %c0_30 = arith.constant 0 : index
    %20 = vector.load %arg2[%c0_28, %c0_29, %c5, %c0_30] : memref<1x12x16x16xf32, #tpu.memory_space<vmem>>, vector<1x12x1x16xf32>
    %21 = vector.shape_cast %20 : vector<1x12x1x16xf32> to vector<12x16xf32>
    %c0_31 = arith.constant 0 : index
    %c110 = arith.constant 110 : index
    %22 = vector.load %arg9[%c0_31, %c110] : memref<12x326xf32, #tpu.memory_space<vmem>>, vector<12x16xf32>
    tpu.vector_store %arg9[%c0_31, %c110], %21 {strides = array<i32>} : memref<12x326xf32, #tpu.memory_space<vmem>>, vector<12x16xf32>,
    %c0_32 = arith.constant 0 : index
    %c0_33 = arith.constant 0 : index
    %c6 = arith.constant 6 : index
    %c0_34 = arith.constant 0 : index
    %23 = vector.load %arg2[%c0_32, %c0_33, %c6, %c0_34] : memref<1x12x16x16xf32, #tpu.memory_space<vmem>>, vector<1x12x1x16xf32>
    %24 = vector.shape_cast %23 : vector<1x12x1x16xf32> to vector<12x16xf32>
    %c0_35 = arith.constant 0 : index
    %c128 = arith.constant 128 : index
    %25 = vector.load %arg9[%c0_35, %c128] : memref<12x326xf32, #tpu.memory_space<vmem>>, vector<12x16xf32>
    tpu.vector_store %arg9[%c0_35, %c128], %24 {strides = array<i32>} : memref<12x326xf32, #tpu.memory_space<vmem>>, vector<12x16xf32>,
    %c0_36 = arith.constant 0 : index
    %c0_37 = arith.constant 0 : index
    %c7 = arith.constant 7 : index
    %c0_38 = arith.constant 0 : index
    %26 = vector.load %arg2[%c0_36, %c0_37, %c7, %c0_38] : memref<1x12x16x16xf32, #tpu.memory_space<vmem>>, vector<1x12x1x16xf32>
    %27 = vector.shape_cast %26 : vector<1x12x1x16xf32> to vector<12x16xf32>
    %c0_39 = arith.constant 0 : index
    %c146 = arith.constant 146 : index
    %28 = vector.load %arg9[%c0_39, %c146] : memref<12x326xf32, #tpu.memory_space<vmem>>, vector<12x16xf32>
    tpu.vector_store %arg9[%c0_39, %c146], %27 {strides = array<i32>} : memref<12x326xf32, #tpu.memory_space<vmem>>, vector<12x16xf32>,
    %c0_40 = arith.constant 0 : index
    %c0_41 = arith.constant 0 : index
    %c8 = arith.constant 8 : index
    %c0_42 = arith.constant 0 : index
    %29 = vector.load %arg2[%c0_40, %c0_41, %c8, %c0_42] : memref<1x12x16x16xf32, #tpu.memory_space<vmem>>, vector<1x12x1x16xf32>
    %30 = vector.shape_cast %29 : vector<1x12x1x16xf32> to vector<12x16xf32>
    %c0_43 = arith.constant 0 : index
    %c164 = arith.constant 164 : index
    %31 = vector.load %arg9[%c0_43, %c164] : memref<12x326xf32, #tpu.memory_space<vmem>>, vector<12x16xf32>
    tpu.vector_store %arg9[%c0_43, %c164], %30 {strides = array<i32>} : memref<12x326xf32, #tpu.memory_space<vmem>>, vector<12x16xf32>,
    %c0_44 = arith.constant 0 : index
    %c0_45 = arith.constant 0 : index
    %c9 = arith.constant 9 : index
    %c0_46 = arith.constant 0 : index
    %32 = vector.load %arg2[%c0_44, %c0_45, %c9, %c0_46] : memref<1x12x16x16xf32, #tpu.memory_space<vmem>>, vector<1x12x1x16xf32>
    %33 = vector.shape_cast %32 : vector<1x12x1x16xf32> to vector<12x16xf32>
    %c0_47 = arith.constant 0 : index
    %c182 = arith.constant 182 : index
    %34 = vector.load %arg9[%c0_47, %c182] : memref<12x326xf32, #tpu.memory_space<vmem>>, vector<12x16xf32>
    tpu.vector_store %arg9[%c0_47, %c182], %33 {strides = array<i32>} : memref<12x326xf32, #tpu.memory_space<vmem>>, vector<12x16xf32>,
    %c0_48 = arith.constant 0 : index
    %c0_49 = arith.constant 0 : index
    %c10 = arith.constant 10 : index
    %c0_50 = arith.constant 0 : index
    %35 = vector.load %arg2[%c0_48, %c0_49, %c10, %c0_50] : memref<1x12x16x16xf32, #tpu.memory_space<vmem>>, vector<1x12x1x16xf32>
    %36 = vector.shape_cast %35 : vector<1x12x1x16xf32> to vector<12x16xf32>
    %c0_51 = arith.constant 0 : index
    %c200 = arith.constant 200 : index
    %37 = vector.load %arg9[%c0_51, %c200] : memref<12x326xf32, #tpu.memory_space<vmem>>, vector<12x16xf32>
    tpu.vector_store %arg9[%c0_51, %c200], %36 {strides = array<i32>} : memref<12x326xf32, #tpu.memory_space<vmem>>, vector<12x16xf32>,
    %c0_52 = arith.constant 0 : index
    %c0_53 = arith.constant 0 : index
    %c11 = arith.constant 11 : index
    %c0_54 = arith.constant 0 : index
    %38 = vector.load %arg2[%c0_52, %c0_53, %c11, %c0_54] : memref<1x12x16x16xf32, #tpu.memory_space<vmem>>, vector<1x12x1x16xf32>
    %39 = vector.shape_cast %38 : vector<1x12x1x16xf32> to vector<12x16xf32>
    %c0_55 = arith.constant 0 : index
    %c218 = arith.constant 218 : index
    %40 = vector.load %arg9[%c0_55, %c218] : memref<12x326xf32, #tpu.memory_space<vmem>>, vector<12x16xf32>
    tpu.vector_store %arg9[%c0_55, %c218], %39 {strides = array<i32>} : memref<12x326xf32, #tpu.memory_space<vmem>>, vector<12x16xf32>,
    %c0_56 = arith.constant 0 : index
    %c0_57 = arith.constant 0 : index
    %c12 = arith.constant 12 : index
    %c0_58 = arith.constant 0 : index
    %41 = vector.load %arg2[%c0_56, %c0_57, %c12, %c0_58] : memref<1x12x16x16xf32, #tpu.memory_space<vmem>>, vector<1x12x1x16xf32>
    %42 = vector.shape_cast %41 : vector<1x12x1x16xf32> to vector<12x16xf32>
    %c0_59 = arith.constant 0 : index
    %c236 = arith.constant 236 : index
    %43 = vector.load %arg9[%c0_59, %c236] : memref<12x326xf32, #tpu.memory_space<vmem>>, vector<12x16xf32>
    tpu.vector_store %arg9[%c0_59, %c236], %42 {strides = array<i32>} : memref<12x326xf32, #tpu.memory_space<vmem>>, vector<12x16xf32>,
    %c0_60 = arith.constant 0 : index
    %c0_61 = arith.constant 0 : index
    %c13 = arith.constant 13 : index
    %c0_62 = arith.constant 0 : index
    %44 = vector.load %arg2[%c0_60, %c0_61, %c13, %c0_62] : memref<1x12x16x16xf32, #tpu.memory_space<vmem>>, vector<1x12x1x16xf32>
    %45 = vector.shape_cast %44 : vector<1x12x1x16xf32> to vector<12x16xf32>
    %c0_63 = arith.constant 0 : index
    %c254 = arith.constant 254 : index
    %46 = vector.load %arg9[%c0_63, %c254] : memref<12x326xf32, #tpu.memory_space<vmem>>, vector<12x16xf32>
    tpu.vector_store %arg9[%c0_63, %c254], %45 {strides = array<i32>} : memref<12x326xf32, #tpu.memory_space<vmem>>, vector<12x16xf32>,
    %c0_64 = arith.constant 0 : index
    %c0_65 = arith.constant 0 : index
    %c14 = arith.constant 14 : index
    %c0_66 = arith.constant 0 : index
    %47 = vector.load %arg2[%c0_64, %c0_65, %c14, %c0_66] : memref<1x12x16x16xf32, #tpu.memory_space<vmem>>, vector<1x12x1x16xf32>
    %48 = vector.shape_cast %47 : vector<1x12x1x16xf32> to vector<12x16xf32>
    %c0_67 = arith.constant 0 : index
    %c272 = arith.constant 272 : index
    %49 = vector.load %arg9[%c0_67, %c272] : memref<12x326xf32, #tpu.memory_space<vmem>>, vector<12x16xf32>
    tpu.vector_store %arg9[%c0_67, %c272], %48 {strides = array<i32>} : memref<12x326xf32, #tpu.memory_space<vmem>>, vector<12x16xf32>,
    %c0_68 = arith.constant 0 : index
    %c0_69 = arith.constant 0 : index
    %c15 = arith.constant 15 : index
    %c0_70 = arith.constant 0 : index
    %50 = vector.load %arg2[%c0_68, %c0_69, %c15, %c0_70] : memref<1x12x16x16xf32, #tpu.memory_space<vmem>>, vector<1x12x1x16xf32>
    %51 = vector.shape_cast %50 : vector<1x12x1x16xf32> to vector<12x16xf32>
    %c0_71 = arith.constant 0 : index
    %c290 = arith.constant 290 : index
    %52 = vector.load %arg9[%c0_71, %c290] : memref<12x326xf32, #tpu.memory_space<vmem>>, vector<12x16xf32>
    tpu.vector_store %arg9[%c0_71, %c290], %51 {strides = array<i32>} : memref<12x326xf32, #tpu.memory_space<vmem>>, vector<12x16xf32>,
    %c0_72 = arith.constant 0 : index
    %c0_73 = arith.constant 0 : index
    %c0_74 = arith.constant 0 : index
    %c0_75 = arith.constant 0 : index
    %53 = vector.load %arg4[%c0_72, %c0_73, %c0_74, %c0_75] : memref<1x1x12x16xf32, #tpu.memory_space<vmem>>, vector<1x1x12x16xf32>
    %54 = vector.shape_cast %53 : vector<1x1x12x16xf32> to vector<12x16xf32>
    %c0_76 = arith.constant 0 : index
    %c308 = arith.constant 308 : index
    %55 = vector.load %arg9[%c0_76, %c308] : memref<12x326xf32, #tpu.memory_space<vmem>>, vector<12x16xf32>
    tpu.vector_store %arg9[%c0_76, %c308], %54 {strides = array<i32>} : memref<12x326xf32, #tpu.memory_space<vmem>>, vector<12x16xf32>,
    %cst_77 = arith.constant 0.000000e+00 : f32
    %56 = vector.broadcast %cst_77 : f32 to vector<4x288xf32>
    %c0_78 = arith.constant 0 : index
    %c0_79 = arith.constant 0 : index
    %57 = vector.load %arg9[%c0_78, %c0_79] : memref<12x326xf32, #tpu.memory_space<vmem>>, vector<12x288xf32>
    %c0_80 = arith.constant 0 : index
    %c0_81 = arith.constant 0 : index
    %c0_82 = arith.constant 0 : index
    %58 = vector.load %arg5[%c0_80, %c0_81, %c0_82] : memref<9x4x12xf32, #tpu.memory_space<vmem>>, vector<1x4x12xf32>
    %59 = vector.shape_cast %58 : vector<1x4x12xf32> to vector<4x12xf32>
    %cst_83 = arith.constant dense<0.000000e+00> : vector<4x288xf32>
    %60 = tpu.matmul %59, %57, %cst_83 {dimension_numbers = #tpu.dot_dimension_numbers<[1], [0], [0], [1], [0, 0, 1, 1], [], []>} : vector<4x12xf32>, vector<12x288xf32>, vector<4x288xf32> -> vector<4x288xf32>
    %61 = arith.addf %56, %60 : vector<4x288xf32>
    %c0_84 = arith.constant 0 : index
    %c1_85 = arith.constant 1 : index
    %62 = vector.load %arg9[%c0_84, %c1_85] : memref<12x326xf32, #tpu.memory_space<vmem>>, vector<12x288xf32>
    %c1_86 = arith.constant 1 : index
    %c0_87 = arith.constant 0 : index
    %c0_88 = arith.constant 0 : index
    %63 = vector.load %arg5[%c1_86, %c0_87, %c0_88] : memref<9x4x12xf32, #tpu.memory_space<vmem>>, vector<1x4x12xf32>
    %64 = vector.shape_cast %63 : vector<1x4x12xf32> to vector<4x12xf32>
    %cst_89 = arith.constant dense<0.000000e+00> : vector<4x288xf32>
    %65 = tpu.matmul %64, %62, %cst_89 {dimension_numbers = #tpu.dot_dimension_numbers<[1], [0], [0], [1], [0, 0, 1, 1], [], []>} : vector<4x12xf32>, vector<12x288xf32>, vector<4x288xf32> -> vector<4x288xf32>
    %66 = arith.addf %61, %65 : vector<4x288xf32>
    %c0_90 = arith.constant 0 : index
    %c2_91 = arith.constant 2 : index
    %67 = vector.load %arg9[%c0_90, %c2_91] : memref<12x326xf32, #tpu.memory_space<vmem>>, vector<12x288xf32>
    %c2_92 = arith.constant 2 : index
    %c0_93 = arith.constant 0 : index
    %c0_94 = arith.constant 0 : index
    %68 = vector.load %arg5[%c2_92, %c0_93, %c0_94] : memref<9x4x12xf32, #tpu.memory_space<vmem>>, vector<1x4x12xf32>
    %69 = vector.shape_cast %68 : vector<1x4x12xf32> to vector<4x12xf32>
    %cst_95 = arith.constant dense<0.000000e+00> : vector<4x288xf32>
    %70 = tpu.matmul %69, %67, %cst_95 {dimension_numbers = #tpu.dot_dimension_numbers<[1], [0], [0], [1], [0, 0, 1, 1], [], []>} : vector<4x12xf32>, vector<12x288xf32>, vector<4x288xf32> -> vector<4x288xf32>
    %71 = arith.addf %66, %70 : vector<4x288xf32>
    %c0_96 = arith.constant 0 : index
    %c18 = arith.constant 18 : index
    %72 = vector.load %arg9[%c0_96, %c18] : memref<12x326xf32, #tpu.memory_space<vmem>>, vector<12x288xf32>
    %c3_97 = arith.constant 3 : index
    %c0_98 = arith.constant 0 : index
    %c0_99 = arith.constant 0 : index
    %73 = vector.load %arg5[%c3_97, %c0_98, %c0_99] : memref<9x4x12xf32, #tpu.memory_space<vmem>>, vector<1x4x12xf32>
    %74 = vector.shape_cast %73 : vector<1x4x12xf32> to vector<4x12xf32>
    %cst_100 = arith.constant dense<0.000000e+00> : vector<4x288xf32>
    %75 = tpu.matmul %74, %72, %cst_100 {dimension_numbers = #tpu.dot_dimension_numbers<[1], [0], [0], [1], [0, 0, 1, 1], [], []>} : vector<4x12xf32>, vector<12x288xf32>, vector<4x288xf32> -> vector<4x288xf32>
    %76 = arith.addf %71, %75 : vector<4x288xf32>
    %c0_101 = arith.constant 0 : index
    %c19 = arith.constant 19 : index
    %77 = vector.load %arg9[%c0_101, %c19] : memref<12x326xf32, #tpu.memory_space<vmem>>, vector<12x288xf32>
    %c4_102 = arith.constant 4 : index
    %c0_103 = arith.constant 0 : index
    %c0_104 = arith.constant 0 : index
    %78 = vector.load %arg5[%c4_102, %c0_103, %c0_104] : memref<9x4x12xf32, #tpu.memory_space<vmem>>, vector<1x4x12xf32>
    %79 = vector.shape_cast %78 : vector<1x4x12xf32> to vector<4x12xf32>
    %cst_105 = arith.constant dense<0.000000e+00> : vector<4x288xf32>
    %80 = tpu.matmul %79, %77, %cst_105 {dimension_numbers = #tpu.dot_dimension_numbers<[1], [0], [0], [1], [0, 0, 1, 1], [], []>} : vector<4x12xf32>, vector<12x288xf32>, vector<4x288xf32> -> vector<4x288xf32>
    %81 = arith.addf %76, %80 : vector<4x288xf32>
    %c0_106 = arith.constant 0 : index
    %c20_107 = arith.constant 20 : index
    %82 = vector.load %arg9[%c0_106, %c20_107] : memref<12x326xf32, #tpu.memory_space<vmem>>, vector<12x288xf32>
    %c5_108 = arith.constant 5 : index
    %c0_109 = arith.constant 0 : index
    %c0_110 = arith.constant 0 : index
    %83 = vector.load %arg5[%c5_108, %c0_109, %c0_110] : memref<9x4x12xf32, #tpu.memory_space<vmem>>, vector<1x4x12xf32>
    %84 = vector.shape_cast %83 : vector<1x4x12xf32> to vector<4x12xf32>
    %cst_111 = arith.constant dense<0.000000e+00> : vector<4x288xf32>
    %85 = tpu.matmul %84, %82, %cst_111 {dimension_numbers = #tpu.dot_dimension_numbers<[1], [0], [0], [1], [0, 0, 1, 1], [], []>} : vector<4x12xf32>, vector<12x288xf32>, vector<4x288xf32> -> vector<4x288xf32>
    %86 = arith.addf %81, %85 : vector<4x288xf32>
    %c0_112 = arith.constant 0 : index
    %c36 = arith.constant 36 : index
    %87 = vector.load %arg9[%c0_112, %c36] : memref<12x326xf32, #tpu.memory_space<vmem>>, vector<12x288xf32>
    %c6_113 = arith.constant 6 : index
    %c0_114 = arith.constant 0 : index
    %c0_115 = arith.constant 0 : index
    %88 = vector.load %arg5[%c6_113, %c0_114, %c0_115] : memref<9x4x12xf32, #tpu.memory_space<vmem>>, vector<1x4x12xf32>
    %89 = vector.shape_cast %88 : vector<1x4x12xf32> to vector<4x12xf32>
    %cst_116 = arith.constant dense<0.000000e+00> : vector<4x288xf32>
    %90 = tpu.matmul %89, %87, %cst_116 {dimension_numbers = #tpu.dot_dimension_numbers<[1], [0], [0], [1], [0, 0, 1, 1], [], []>} : vector<4x12xf32>, vector<12x288xf32>, vector<4x288xf32> -> vector<4x288xf32>
    %91 = arith.addf %86, %90 : vector<4x288xf32>
    %c0_117 = arith.constant 0 : index
    %c37 = arith.constant 37 : index
    %92 = vector.load %arg9[%c0_117, %c37] : memref<12x326xf32, #tpu.memory_space<vmem>>, vector<12x288xf32>
    %c7_118 = arith.constant 7 : index
    %c0_119 = arith.constant 0 : index
    %c0_120 = arith.constant 0 : index
    %93 = vector.load %arg5[%c7_118, %c0_119, %c0_120] : memref<9x4x12xf32, #tpu.memory_space<vmem>>, vector<1x4x12xf32>
    %94 = vector.shape_cast %93 : vector<1x4x12xf32> to vector<4x12xf32>
    %cst_121 = arith.constant dense<0.000000e+00> : vector<4x288xf32>
    %95 = tpu.matmul %94, %92, %cst_121 {dimension_numbers = #tpu.dot_dimension_numbers<[1], [0], [0], [1], [0, 0, 1, 1], [], []>} : vector<4x12xf32>, vector<12x288xf32>, vector<4x288xf32> -> vector<4x288xf32>
    %96 = arith.addf %91, %95 : vector<4x288xf32>
    %c0_122 = arith.constant 0 : index
    %c38_123 = arith.constant 38 : index
    %97 = vector.load %arg9[%c0_122, %c38_123] : memref<12x326xf32, #tpu.memory_space<vmem>>, vector<12x288xf32>
    %c8_124 = arith.constant 8 : index
    %c0_125 = arith.constant 0 : index
    %c0_126 = arith.constant 0 : index
    %98 = vector.load %arg5[%c8_124, %c0_125, %c0_126] : memref<9x4x12xf32, #tpu.memory_space<vmem>>, vector<1x4x12xf32>
    %99 = vector.shape_cast %98 : vector<1x4x12xf32> to vector<4x12xf32>
    %cst_127 = arith.constant dense<0.000000e+00> : vector<4x288xf32>
    %100 = tpu.matmul %99, %97, %cst_127 {dimension_numbers = #tpu.dot_dimension_numbers<[1], [0], [0], [1], [0, 0, 1, 1], [], []>} : vector<4x12xf32>, vector<12x288xf32>, vector<4x288xf32> -> vector<4x288xf32>
    %101 = arith.addf %96, %100 : vector<4x288xf32>
    %c0_128 = arith.constant 0 : index
    %c0_129 = arith.constant 0 : index
    %102 = vector.load %arg6[%c0_128, %c0_129] : memref<4x1xf32, #tpu.memory_space<vmem>>, vector<4x1xf32>
    %103 = vector.broadcast %102 : vector<4x1xf32> to vector<4x288xf32>
    %104 = arith.mulf %101, %103 : vector<4x288xf32>
    %c0_130 = arith.constant 0 : index
    %c0_131 = arith.constant 0 : index
    %105 = vector.load %arg7[%c0_130, %c0_131] : memref<4x1xf32, #tpu.memory_space<vmem>>, vector<4x1xf32>
    %106 = vector.broadcast %105 : vector<4x1xf32> to vector<4x288xf32>
    %107 = arith.addf %104, %106 : vector<4x288xf32>
    %cst_132 = arith.constant 0.000000e+00 : f32
    %108 = vector.broadcast %cst_132 : f32 to vector<4x288xf32>
    %109 = arith.maximumf %107, %108 : vector<4x288xf32>
    %c0_133 = arith.constant 0 : index
    %c0_134 = arith.constant 0 : index
    %c0_135 = arith.constant 0 : index
    %c0_136 = arith.constant 0 : index
    %110 = vector.load %arg8[%c0_133, %c0_134, %c0_135, %c0_136] : memref<1x1x4x288xf32, #tpu.memory_space<vmem>>, vector<1x1x4x288xf32>
    %111 = vector.shape_cast %110 : vector<1x1x4x288xf32> to vector<4x288xf32>
    %112 = vector.shape_cast %109 : vector<4x288xf32> to vector<1x1x4x288xf32>
    tpu.vector_store %arg8[%c0_133, %c0_134, %c0_135, %c0_136], %112 {strides = array<i32>} : memref<1x1x4x288xf32, #tpu.memory_space<vmem>>, vector<1x1x4x288xf32>,
    return
  }
  func.func @transform_0(%arg0: i32, %arg1: i32) -> (i32, i32, i32, i32) {
    %c0_i32 = arith.constant 0 : i32
    %c0_i32_0 = arith.constant 0 : i32
    %c0_i32_1 = arith.constant 0 : i32
    return %arg0, %c0_i32, %arg1, %c0_i32_0 : i32, i32, i32, i32
  }
  func.func @transform_1(%arg0: i32, %arg1: i32) -> (i32, i32, i32, i32) {
    %c0_i32 = arith.constant 0 : i32
    %c0_i32_0 = arith.constant 0 : i32
    %c0_i32_1 = arith.constant 0 : i32
    return %arg0, %arg1, %c0_i32, %c0_i32_0 : i32, i32, i32, i32
  }
  func.func @transform_2(%arg0: i32, %arg1: i32) -> (i32, i32, i32, i32) {
    %c0_i32 = arith.constant 0 : i32
    %c0_i32_0 = arith.constant 0 : i32
    %c0_i32_1 = arith.constant 0 : i32
    return %arg0, %arg1, %c0_i32, %c0_i32_0 : i32, i32, i32, i32
  }
  func.func @transform_3(%arg0: i32, %arg1: i32) -> (i32, i32, i32) {
    %c0_i32 = arith.constant 0 : i32
    %c0_i32_0 = arith.constant 0 : i32
    %c0_i32_1 = arith.constant 0 : i32
    %c0_i32_2 = arith.constant 0 : i32
    return %c0_i32, %c0_i32_0, %c0_i32_1 : i32, i32, i32
  }
  func.func @transform_4(%arg0: i32, %arg1: i32) -> (i32, i32) {
    %c0_i32 = arith.constant 0 : i32
    %c0_i32_0 = arith.constant 0 : i32
    %c0_i32_1 = arith.constant 0 : i32
    return %c0_i32, %c0_i32_0 : i32, i32
  }
  func.func @transform_5(%arg0: i32, %arg1: i32) -> (i32, i32) {
    %c0_i32 = arith.constant 0 : i32
    %c0_i32_0 = arith.constant 0 : i32
    %c0_i32_1 = arith.constant 0 : i32
    return %c0_i32, %c0_i32_0 : i32, i32
  }
  func.func @transform_6(%arg0: i32, %arg1: i32) -> (i32, i32, i32, i32) {
    %c0_i32 = arith.constant 0 : i32
    %c0_i32_0 = arith.constant 0 : i32
    %c0_i32_1 = arith.constant 0 : i32
    return %arg0, %arg1, %c0_i32, %c0_i32_0 : i32, i32, i32, i32
  }
}

</mosaic_0001>

<llo_original>
// kernel: attention_block_forward.2
$region0: #{attention_block_forward.2}
  #allocation0 [shape = 'u32[]', space=smem, size = 0x4, offset = 0x4, fixed_abs, tag = 'smem constant byte address 0x4 - core index']
  #allocation1 [shape = 'u32[144,128]{1,0:T(1,128)}', space=vmem, size = 0x12000, scoped, tag = 'internal scratch']
  #allocation2 [shape = 'f32[2,1,256]{2,1,0:T(1,128)}', space=vmem, size = 0x800, scoped, tag = 'scratch operand']
  #allocation3 [shape = 'f32[2,4,256]{2,1,0:T(4,128)}', space=vmem, size = 0x2000, scoped, tag = 'scratch operand']
  %s0 = inlined_call_operand.vmem [shape: f32[2,4,256], index: 0, kind: input, shape index: {}]
  %s1 = inlined_call_operand.vmem [shape: f32[2,4,256], index: 1, kind: input, shape index: {}]
  %s2 = inlined_call_operand.vmem [shape: f32[2,4,256], index: 2, kind: input, shape index: {}]
  %s3 = inlined_call_operand.vmem [shape: f32[4,8], index: 3, kind: input, shape index: {}]
  %s4 = inlined_call_operand.vmem [shape: f32[4,1], index: 4, kind: input, shape index: {}]
  %s5 = inlined_call_operand.vmem [shape: f32[2,3,4,256], index: 5, kind: output, shape index: {}]
  %s6 = sld [smem:[#allocation0]]
  $region61: #{attention_block_forward.2} parent=0
    _
  %s8 = ssub.s32 1, %s6
  %s9 = scalar_select 0, %s8, %s6
  loop: start=0, step=1, limit=4
  $region2: #{attention_block_forward.2} parent=0 // loop_pre_header
    _
  $region3: #{attention_block_forward.2} parent=0 // loop_header
    %s11 = sphi 0, %s15
    %p12 = scmp.ge.s32.totalorder %s11, 4
    %s18 = sphi 0, %s37
    %s19 = sphi 0, %s33
    %s20 = sphi 0, %s29
    %s21 = sphi 0, %s18
    %s22 = sphi 0, %s19
    %s23 = sphi 0, %s20
    %s24 = sphi 0, %s21
    %s25 = sphi 0, %s22
    %s26 = sphi 0, %s23
    %s42 = sphi 0, %s44
    %s45 = sphi 0, %s42
    %s46 = sphi 0, %s45
    %s62 = sphi 0, %s46
    %s70 = sphi 0, %s72
    %s73 = sphi 0, %s70
    %s74 = sphi 0, %s73
    %s90 = sphi 0, %s74
    %s98 = sphi 0, %s100
    %s101 = sphi 0, %s98
    %s102 = sphi 0, %s101
    %s118 = sphi 0, %s102
    %s122 = sphi 0, %s122
    %s124 = sphi 0, %s122
    %s125 = sphi 0, %s124
    %s139 = sphi 0, %s125
    %s143 = sphi 0, %s143
    %s145 = sphi 0, %s143
    %s146 = sphi 0, %s145
    %s160 = sphi 0, %s146
    %s168 = sphi 0, %s170
    %s171 = sphi 0, %s168
    %s172 = sphi 0, %s171
    %s188 = sphi 0, %s172
  $region4: #{attention_block_forward.2} parent=0 // loop_header_branch
    %14 = sbr.rel (%p12) target = $region8
  $region5: #{attention_block_forward.2} parent=0 // loop_body
    %s16 = ssub.s32 %s11, 1
    %s17 = ssub.s32 %s11, 2
    %s27 = sadd.s32 1, %s20
    %p28 = scmp.ge.s32.totalorder %s27, 1
    %s29 = scalar_select %p28, 0, %s27
    %s30 = sadd.s32 1, %s19
    %s31 = scalar_select %p28, %s30, %s19
    %p32 = scmp.ge.s32.totalorder %s31, 1
    %s33 = scalar_select %p32, 0, %s31
    %s34 = sadd.s32 1, %s18
    %s35 = scalar_select %p32, %s34, %s18
    %p36 = scmp.ge.s32.totalorder %s35, 2
    %s37 = scalar_select %p36, 0, %s35
    %s38 = ssub.s32 %s18, %s37
    %s39 = ssub.s32 %s20, %s29
    %s40 = sor.u32 %s38, %s39
    %p41 = scmp.eq.s32.totalorder %s40, 0
    %s43 = sadd.s32 %s42, 1
    %s44 = scalar_select %p41, %s42, %s43
    %p47 = pneg %p41
    %p48 = scmp.eq.s32.totalorder %s11, 1
    %p49 = por %p47, %p48
    %p50 = scmp.ne.s32.totalorder %s42, %s45
    %p51 = scmp.eq.s32.totalorder %s11, 0
    %p52 = por %p50, %p51
    %p53 = scmp.ne.s32.totalorder %s42, %s45
    %p54 = scmp.eq.s32.totalorder %s16, 1
    %p55 = por %p53, %p54
    %p56 = scmp.ne.s32.totalorder %s45, %s46
    %p57 = scmp.eq.s32.totalorder %s16, 0
    %p58 = por %p56, %p57
    %p59 = scmp.ne.s32.totalorder %s45, %s46
    %p60 = scmp.eq.s32.totalorder %s17, 1
    %p61 = por %p59, %p60
    %p63 = scmp.ne.s32.totalorder %s46, %s62
    %p64 = scmp.eq.s32.totalorder %s17, 0
    %p65 = por %p63, %p64
    %s66 = ssub.s32 %s18, %s37
    %s67 = ssub.s32 %s20, %s29
    %s68 = sor.u32 %s66, %s67
    %p69 = scmp.eq.s32.totalorder %s68, 0
    %s71 = sadd.s32 %s70, 1
    %s72 = scalar_select %p69, %s70, %s71
    %p75 = pneg %p69
    %p76 = scmp.eq.s32.totalorder %s11, 1
    %p77 = por %p75, %p76
    %p78 = scmp.ne.s32.totalorder %s70, %s73
    %p79 = scmp.eq.s32.totalorder %s11, 0
    %p80 = por %p78, %p79
    %p81 = scmp.ne.s32.totalorder %s70, %s73
    %p82 = scmp.eq.s32.totalorder %s16, 1
    %p83 = por %p81, %p82
    %p84 = scmp.ne.s32.totalorder %s73, %s74
    %p85 = scmp.eq.s32.totalorder %s16, 0
    %p86 = por %p84, %p85
    %p87 = scmp.ne.s32.totalorder %s73, %s74
    %p88 = scmp.eq.s32.totalorder %s17, 1
    %p89 = por %p87, %p88
    %p91 = scmp.ne.s32.totalorder %s74, %s90
    %p92 = scmp.eq.s32.totalorder %s17, 0
    %p93 = por %p91, %p92
    %s94 = ssub.s32 %s18, %s37
    %s95 = ssub.s32 %s19, %s33
    %s96 = sor.u32 %s94, %s95
    %p97 = scmp.eq.s32.totalorder %s96, 0
    %s99 = sadd.s32 %s98, 1
    %s100 = scalar_select %p97, %s98, %s99
    %p103 = pneg %p97
    %p104 = scmp.eq.s32.totalorder %s11, 1
    %p105 = por %p103, %p104
    %p106 = scmp.ne.s32.totalorder %s98, %s101
    %p107 = scmp.eq.s32.totalorder %s11, 0
    %p108 = por %p106, %p107
    %p109 = scmp.ne.s32.totalorder %s98, %s101
    %p110 = scmp.eq.s32.totalorder %s16, 1
    %p111 = por %p109, %p110
    %p112 = scmp.ne.s32.totalorder %s101, %s102
    %p113 = scmp.eq.s32.totalorder %s16, 0
    %p114 = por %p112, %p113
    %p115 = scmp.ne.s32.totalorder %s101, %s102
    %p116 = scmp.eq.s32.totalorder %s17, 1
    %p117 = por %p115, %p116
    %p119 = scmp.ne.s32.totalorder %s102, %s118
    %p120 = scmp.eq.s32.totalorder %s17, 0
    %p121 = por %p119, %p120
    %s123 = sadd.s32 %s122, 1
    %p126 = scmp.eq.s32.totalorder %s11, 1
    %p127 = scmp.ne.s32.totalorder %s122, %s124
    %p128 = scmp.eq.s32.totalorder %s11, 0
    %p129 = por %p127, %p128
    %p130 = scmp.ne.s32.totalorder %s122, %s124
    %p131 = scmp.eq.s32.totalorder %s16, 1
    %p132 = por %p130, %p131
    %p133 = scmp.ne.s32.totalorder %s124, %s125
    %p134 = scmp.eq.s32.totalorder %s16, 0
    %p135 = por %p133, %p134
    %p136 = scmp.ne.s32.totalorder %s124, %s125
    %p137 = scmp.eq.s32.totalorder %s17, 1
    %p138 = por %p136, %p137
    %p140 = scmp.ne.s32.totalorder %s125, %s139
    %p141 = scmp.eq.s32.totalorder %s17, 0
    %p142 = por %p140, %p141
    %s144 = sadd.s32 %s143, 1
    %p147 = scmp.eq.s32.totalorder %s11, 1
    %p148 = scmp.ne.s32.totalorder %s143, %s145
    %p149 = scmp.eq.s32.totalorder %s11, 0
    %p150 = por %p148, %p149
    %p151 = scmp.ne.s32.totalorder %s143, %s145
    %p152 = scmp.eq.s32.totalorder %s16, 1
    %p153 = por %p151, %p152
    %p154 = scmp.ne.s32.totalorder %s145, %s146
    %p155 = scmp.eq.s32.totalorder %s16, 0
    %p156 = por %p154, %p155
    %p157 = scmp.ne.s32.totalorder %s145, %s146
    %p158 = scmp.eq.s32.totalorder %s17, 1
    %p159 = por %p157, %p158
    %p161 = scmp.ne.s32.totalorder %s146, %s160
    %p162 = scmp.eq.s32.totalorder %s17, 0
    %p163 = por %p161, %p162
    %s164 = ssub.s32 %s18, %s37
    %s165 = ssub.s32 %s19, %s33
    %s166 = sor.u32 %s164, %s165
    %p167 = scmp.eq.s32.totalorder %s166, 0
    %s169 = sadd.s32 %s168, 1
    %s170 = scalar_select %p167, %s168, %s169
    %p173 = pneg %p167
    %p174 = scmp.eq.s32.totalorder %s11, 1
    %p175 = por %p173, %p174
    %p176 = scmp.ne.s32.totalorder %s168, %s171
    %p177 = scmp.eq.s32.totalorder %s11, 0
    %p178 = por %p176, %p177
    %p179 = scmp.ne.s32.totalorder %s168, %s171
    %p180 = scmp.eq.s32.totalorder %s16, 1
    %p181 = por %p179, %p180
    %p182 = scmp.ne.s32.totalorder %s171, %s172
    %p183 = scmp.eq.s32.totalorder %s16, 0
    %p184 = por %p182, %p183
    %p185 = scmp.ne.s32.totalorder %s171, %s172
    %p186 = scmp.eq.s32.totalorder %s17, 1
    %p187 = por %p185, %p186
    %p189 = scmp.ne.s32.totalorder %s172, %s188
    %p190 = scmp.eq.s32.totalorder %s17, 0
    %p191 = por %p189, %p190
    %p192 = scmp.le.s32.totalorder 1, %s11
    %p193 = scmp.lt.s32.totalorder %s11, 3
    %p194 = pnand %p192, %p193
    %p195 = pneg %p194
    // Predicated region
    $region9: #{attention_block_forward.2} parent=5 // pred_check
      _
    $region10: #{attention_block_forward.2} parent=5 // pred_check_branch
      %197 = sbr.rel (%p194) target = $region12
    $region11: #{attention_block_forward.2} parent=5 // pred_region
      %s198 = ssub.s32 %s11, 1
      // Predicated region
      $region13: #{attention_block_forward.2} parent=11 // pred_check
        %p199 = pneg %p135
      $region14: #{attention_block_forward.2} parent=11 // pred_check_branch
        %201 = sbr.rel (%p199) target = $region16
      $region15: #{attention_block_forward.2} parent=11 // pred_region
        _
      $region16: #{attention_block_forward.2} parent=11 // pred_fallthru
        _
      // Predicated region
      $region17: #{attention_block_forward.2} parent=11 // pred_check
        %p202 = pneg %p156
      $region18: #{attention_block_forward.2} parent=11 // pred_check_branch
        %204 = sbr.rel (%p202) target = $region20
      $region19: #{attention_block_forward.2} parent=11 // pred_region
        _
      $region20: #{attention_block_forward.2} parent=11 // pred_fallthru
        _
    $region12: #{attention_block_forward.2} parent=5 // pred_fallthru
      _
    %p205 = scmp.lt.s32.totalorder %s11, 2
    // Predicated region
    $region21: #{attention_block_forward.2} parent=5 // pred_check
      %p206 = pneg %p205
    $region22: #{attention_block_forward.2} parent=5 // pred_check_branch
      %208 = sbr.rel (%p206) target = $region24
    $region23: #{attention_block_forward.2} parent=5 // pred_region
      // Predicated region
      $region25: #{attention_block_forward.2} parent=23 // pred_check
        %p209 = pneg %p52
      $region26: #{attention_block_forward.2} parent=23 // pred_check_branch
        %211 = sbr.rel (%p209) target = $region28
      $region27: #{attention_block_forward.2} parent=23 // pred_region
        %s212 = smul.u32 2, %s20
        %p213 = scmp.lt.s32.totalorder %s18, 1
        %s214 = scalar_select %p213, %s18, 1
        %p215 = scmp.lt.s32.totalorder %s212, 1
        %s216 = scalar_select %p215, %s212, 1
        %s217 = smul.addr %s214, 2
        %s218 = sadd.s32 %s216, %s217
        %s219 = smul.addr %s218, 4
        %s220 = scalar_lea.vmem %s0, %s219
        %s221 = smul.u32 2, %s20
      $region28: #{attention_block_forward.2} parent=23 // pred_fallthru
        _
      // Predicated region
      $region29: #{attention_block_forward.2} parent=23 // pred_check
        %p222 = pneg %p80
      $region30: #{attention_block_forward.2} parent=23 // pred_check_branch
        %224 = sbr.rel (%p222) target = $region32
      $region31: #{attention_block_forward.2} parent=23 // pred_region
        %s225 = smul.u32 2, %s20
        %p226 = scmp.lt.s32.totalorder %s18, 1
        %s227 = scalar_select %p226, %s18, 1
        %p228 = scmp.lt.s32.totalorder %s225, 1
        %s229 = scalar_select %p228, %s225, 1
        %s230 = smul.addr %s227, 2
        %s231 = sadd.s32 %s229, %s230
        %s232 = smul.addr %s231, 4
        %s233 = scalar_lea.vmem %s1, %s232
        %s234 = smul.u32 2, %s20
      $region32: #{attention_block_forward.2} parent=23 // pred_fallthru
        _
      // Predicated region
      $region33: #{attention_block_forward.2} parent=23 // pred_check
        %p235 = pneg %p108
      $region34: #{attention_block_forward.2} parent=23 // pred_check_branch
        %237 = sbr.rel (%p235) target = $region36
      $region35: #{attention_block_forward.2} parent=23 // pred_region
        %s238 = smul.u32 2, %s19
        %p239 = scmp.lt.s32.totalorder %s18, 1
        %s240 = scalar_select %p239, %s18, 1
        %p241 = scmp.lt.s32.totalorder %s238, 1
        %s242 = scalar_select %p241, %s238, 1
        %s243 = smul.addr %s240, 2
        %s244 = sadd.s32 %s242, %s243
        %s245 = smul.addr %s244, 4
        %s246 = scalar_lea.vmem %s2, %s245
        %s247 = smul.u32 2, %s19
      $region36: #{attention_block_forward.2} parent=23 // pred_fallthru
        _
    $region24: #{attention_block_forward.2} parent=5 // pred_fallthru
      _
    %p248 = scmp.le.s32.totalorder 1, %s11
    %p249 = scmp.lt.s32.totalorder %s11, 3
    %p250 = pnand %p248, %p249
    %p251 = pneg %p250
    // Predicated region
    $region37: #{attention_block_forward.2} parent=5 // pred_check
      _
    $region38: #{attention_block_forward.2} parent=5 // pred_check_branch
      %253 = sbr.rel (%p250) target = $region40
    $region39: #{attention_block_forward.2} parent=5 // pred_region
      %s254 = ssub.s32 %s11, 1
      %s255 = smul.u32 2, %s23
      %p256 = scmp.lt.s32.totalorder %s21, 1
      %s257 = scalar_select %p256, %s21, 1
      %p258 = scmp.lt.s32.totalorder %s255, 1
      %s259 = scalar_select %p258, %s255, 1
      %s260 = smul.addr %s257, 2
      %s261 = sadd.s32 %s259, %s260
      %s262 = smul.addr %s261, 4
      %s263 = scalar_lea.vmem %s0, %s262
      %p264 = pneg %p58
      %p265 = pneg %p55
      %s266 = smul.u32 2, %s23
      %p267 = scmp.lt.s32.totalorder %s21, 1
      %s268 = scalar_select %p267, %s21, 1
      %p269 = scmp.lt.s32.totalorder %s266, 1
      %s270 = scalar_select %p269, %s266, 1
      %s271 = smul.addr %s268, 2
      %s272 = sadd.s32 %s270, %s271
      %s273 = smul.addr %s272, 4
      %s274 = scalar_lea.vmem %s1, %s273
      %p275 = pneg %p86
      %p276 = pneg %p83
      %s277 = smul.u32 2, %s22
      %p278 = scmp.lt.s32.totalorder %s21, 1
      %s279 = scalar_select %p278, %s21, 1
      %p280 = scmp.lt.s32.totalorder %s277, 1
      %s281 = scalar_select %p280, %s277, 1
      %s282 = smul.addr %s279, 2
      %s283 = sadd.s32 %s281, %s282
      %s284 = smul.addr %s283, 4
      %s285 = scalar_lea.vmem %s2, %s284
      %p286 = pneg %p114
      %p287 = pneg %p111
      %p288 = pneg %p135
      %p289 = pneg %p132
      %p290 = pneg %p156
      %p291 = pneg %p153
      %p292 = pneg %p184
      %p293 = pneg %p181
      %s294 = smul.u32 2, %s22
      %p295 = scmp.lt.s32.totalorder %s21, 1
      %s296 = scalar_select %p295, %s21, 1
      %p297 = scmp.lt.s32.totalorder %s294, 1
      %s298 = scalar_select %p297, %s294, 1
      %s299 = smul.addr %s296, 6
      %s300 = sadd.s32 %s298, %s299
      %s301 = smul.addr %s300, 4
      %s302 = scalar_lea.vmem %s5, %s301
      %s303 = smul.u32 2, %s23
      %p304 = scmp.lt.s32.totalorder %s21, 1
      %s305 = scalar_select %p304, %s21, 1
      %p306 = scmp.lt.s32.totalorder %s303, 1
      %s307 = scalar_select %p306, %s303, 1
      %s308 = smul.addr %s305, 2
      %s309 = sadd.s32 %s307, %s308
      %s310 = smul.addr %s309, 4
      %s311 = scalar_lea.vmem %s0, %s310
      %s312 = smul.u32 2, %s23
      %s313 = smul.u32 2, %s23
      %p314 = scmp.lt.s32.totalorder %s21, 1
      %s315 = scalar_select %p314, %s21, 1
      %p316 = scmp.lt.s32.totalorder %s313, 1
      %s317 = scalar_select %p316, %s313, 1
      %s318 = smul.addr %s315, 2
      %s319 = sadd.s32 %s317, %s318
      %s320 = smul.addr %s319, 4
      %s321 = scalar_lea.vmem %s1, %s320
      %s322 = smul.u32 2, %s23
      %s323 = smul.u32 2, %s22
      %p324 = scmp.lt.s32.totalorder %s21, 1
      %s325 = scalar_select %p324, %s21, 1
      %p326 = scmp.lt.s32.totalorder %s323, 1
      %s327 = scalar_select %p326, %s323, 1
      %s328 = smul.addr %s325, 2
      %s329 = sadd.s32 %s327, %s328
      %s330 = smul.addr %s329, 4
      %s331 = scalar_lea.vmem %s2, %s330
      %s332 = smul.u32 2, %s22
      %s333 = smul.u32 2, %s22
      %p334 = scmp.lt.s32.totalorder %s21, 1
      %s335 = scalar_select %p334, %s21, 1
      %p336 = scmp.lt.s32.totalorder %s333, 1
      %s337 = scalar_select %p336, %s333, 1
      %s338 = smul.addr %s335, 6
      %s339 = sadd.s32 %s337, %s338
      %s340 = smul.addr %s339, 4
      %s341 = scalar_lea.vmem %s5, %s340
      %s342 = smul.u32 2, %s22
      %p343 = scmp.eq.s32.totalorder %s23, 0
      // Predicated region
      $region41: #{attention_block_forward.2} parent=39 // pred_check
        %p344 = pneg %p343
      $region42: #{attention_block_forward.2} parent=39 // pred_check_branch
        %346 = sbr.rel (%p344) target = $region44
      $region43: #{attention_block_forward.2} parent=39 // pred_region
        %v347 = vlaneseq
        %vm348 = vcmp.ge.s32.totalorder %v347, 0
        %vm349 = vcmp.lt.s32.totalorder %v347, 256
        %vm350 = vmand %vm348, %vm349
        %351 = vst.msk [vmem:[#allocation2] sm:$0x3] %vm350, -inf
        %352 = vst.msk [vmem:[#allocation2 + $0x2] sm:$0x3] %vm350, -inf
        %353 = vst [vmem:[#allocation3] sm:$0xff] 0.0
        %354 = vst [vmem:[#allocation3 + $0x8] sm:$0xff] 0.0
      $region44: #{attention_block_forward.2} parent=39 // pred_fallthru
        _
      %v355 = vld [vmem:[%s331] sm:$0xff]
      %v356 = vld [vmem:[%s311] sm:$0xff]
      %v357 = vld [vmem:[%s321] sm:$0xff]
      %v359 = vcombine.high %v356, %v356
      %v362 = vcombine.high %v357, %v357
      %364 = vxpose.xlu0.b32.start [1/16] %v356, 128
      %365 = vxpose.xlu0.b32.cont [2/16] 0.0, 128
      %366 = vxpose.xlu0.b32.cont [3/16] 0.0, 128
      %367 = vxpose.xlu0.b32.cont [4/16] 0.0, 128
      %368 = vxpose.xlu0.b32.cont [5/16] 0.0, 128
      %369 = vxpose.xlu0.b32.cont [6/16] 0.0, 128
      %370 = vxpose.xlu0.b32.cont [7/16] 0.0, 128
      %371 = vxpose.xlu0.b32.cont [8/16] 0.0, 128
      %372 = vxpose.xlu0.b32.cont [9/16] 0.0, 128
      %373 = vxpose.xlu0.b32.cont [10/16] 0.0, 128
      %374 = vxpose.xlu0.b32.cont [11/16] 0.0, 128
      %375 = vxpose.xlu0.b32.cont [12/16] 0.0, 128
      %376 = vxpose.xlu0.b32.cont [13/16] 0.0, 128
      %377 = vxpose.xlu0.b32.cont [14/16] 0.0, 128
      %378 = vxpose.xlu0.b32.cont [15/16] 0.0, 128
      %379 = vxpose.xlu0.b32.end [16/16] 0.0, 128
      %v380 = vpop.trf.xlu0
      %v381 = vpop.trf.xlu0
      %v382 = vpop.trf.xlu0
      %v383 = vpop.trf.xlu0
      %v384 = vpop.trf.xlu0
      %v385 = vpop.trf.xlu0
      %v386 = vpop.trf.xlu0
      %v387 = vpop.trf.xlu0
      %v388 = vpop.trf.xlu0
      %v389 = vpop.trf.xlu0
      %v390 = vpop.trf.xlu0
      %v391 = vpop.trf.xlu0
      %v392 = vpop.trf.xlu0
      %v393 = vpop.trf.xlu0
      %v394 = vpop.trf.xlu0
      %v395 = vpop.trf.xlu0
      %396 = vxpose.xlu0.b32.start [1/16] %v359, 128
      %397 = vxpose.xlu0.b32.cont [2/16] 0.0, 128
      %398 = vxpose.xlu0.b32.cont [3/16] 0.0, 128
      %399 = vxpose.xlu0.b32.cont [4/16] 0.0, 128
      %400 = vxpose.xlu0.b32.cont [5/16] 0.0, 128
      %401 = vxpose.xlu0.b32.cont [6/16] 0.0, 128
      %402 = vxpose.xlu0.b32.cont [7/16] 0.0, 128
      %403 = vxpose.xlu0.b32.cont [8/16] 0.0, 128
      %404 = vxpose.xlu0.b32.cont [9/16] 0.0, 128
      %405 = vxpose.xlu0.b32.cont [10/16] 0.0, 128
      %406 = vxpose.xlu0.b32.cont [11/16] 0.0, 128
      %407 = vxpose.xlu0.b32.cont [12/16] 0.0, 128
      %408 = vxpose.xlu0.b32.cont [13/16] 0.0, 128
      %409 = vxpose.xlu0.b32.cont [14/16] 0.0, 128
      %410 = vxpose.xlu0.b32.cont [15/16] 0.0, 128
      %411 = vxpose.xlu0.b32.end [16/16] 0.0, 128
      %v412 = vpop.trf.xlu0
      %v413 = vpop.trf.xlu0
      %v414 = vpop.trf.xlu0
      %v415 = vpop.trf.xlu0
      %v416 = vpop.trf.xlu0
      %v417 = vpop.trf.xlu0
      %v418 = vpop.trf.xlu0
      %v419 = vpop.trf.xlu0
      %v420 = vpop.trf.xlu0
      %v421 = vpop.trf.xlu0
      %v422 = vpop.trf.xlu0
      %v423 = vpop.trf.xlu0
      %v424 = vpop.trf.xlu0
      %v425 = vpop.trf.xlu0
      %v426 = vpop.trf.xlu0
      %v427 = vpop.trf.xlu0
      %428 = vxpose.xlu0.b32.start [1/16] %v357, 128
      %429 = vxpose.xlu0.b32.cont [2/16] 0.0, 128
      %430 = vxpose.xlu0.b32.cont [3/16] 0.0, 128
      %431 = vxpose.xlu0.b32.cont [4/16] 0.0, 128
      %432 = vxpose.xlu0.b32.cont [5/16] 0.0, 128
      %433 = vxpose.xlu0.b32.cont [6/16] 0.0, 128
      %434 = vxpose.xlu0.b32.cont [7/16] 0.0, 128
      %435 = vxpose.xlu0.b32.cont [8/16] 0.0, 128
      %436 = vxpose.xlu0.b32.cont [9/16] 0.0, 128
      %437 = vxpose.xlu0.b32.cont [10/16] 0.0, 128
      %438 = vxpose.xlu0.b32.cont [11/16] 0.0, 128
      %439 = vxpose.xlu0.b32.cont [12/16] 0.0, 128
      %440 = vxpose.xlu0.b32.cont [13/16] 0.0, 128
      %441 = vxpose.xlu0.b32.cont [14/16] 0.0, 128
      %442 = vxpose.xlu0.b32.cont [15/16] 0.0, 128
      %443 = vxpose.xlu0.b32.end [16/16] 0.0, 128
      %v444 = vpop.trf.xlu0
      %v445 = vpop.trf.xlu0
      %v446 = vpop.trf.xlu0
      %v447 = vpop.trf.xlu0
      %v448 = vpop.trf.xlu0
      %v449 = vpop.trf.xlu0
      %v450 = vpop.trf.xlu0
      %v451 = vpop.trf.xlu0
      %v452 = vpop.trf.xlu0
      %v453 = vpop.trf.xlu0
      %v454 = vpop.trf.xlu0
      %v455 = vpop.trf.xlu0
      %v456 = vpop.trf.xlu0
      %v457 = vpop.trf.xlu0
      %v458 = vpop.trf.xlu0
      %v459 = vpop.trf.xlu0
      %460 = vxpose.xlu0.b32.start [1/16] %v362, 128
      %461 = vxpose.xlu0.b32.cont [2/16] 0.0, 128
      %462 = vxpose.xlu0.b32.cont [3/16] 0.0, 128
      %463 = vxpose.xlu0.b32.cont [4/16] 0.0, 128
      %464 = vxpose.xlu0.b32.cont [5/16] 0.0, 128
      %465 = vxpose.xlu0.b32.cont [6/16] 0.0, 128
      %466 = vxpose.xlu0.b32.cont [7/16] 0.0, 128
      %467 = vxpose.xlu0.b32.cont [8/16] 0.0, 128
      %468 = vxpose.xlu0.b32.cont [9/16] 0.0, 128
      %469 = vxpose.xlu0.b32.cont [10/16] 0.0, 128
      %470 = vxpose.xlu0.b32.cont [11/16] 0.0, 128
      %471 = vxpose.xlu0.b32.cont [12/16] 0.0, 128
      %472 = vxpose.xlu0.b32.cont [13/16] 0.0, 128
      %473 = vxpose.xlu0.b32.cont [14/16] 0.0, 128
      %474 = vxpose.xlu0.b32.cont [15/16] 0.0, 128
      %475 = vxpose.xlu0.b32.end [16/16] 0.0, 128
      %v476 = vpop.trf.xlu0
      %v477 = vpop.trf.xlu0
      %v478 = vpop.trf.xlu0
      %v479 = vpop.trf.xlu0
      %v480 = vpop.trf.xlu0
      %v481 = vpop.trf.xlu0
      %v482 = vpop.trf.xlu0
      %v483 = vpop.trf.xlu0
      %v484 = vpop.trf.xlu0
      %v485 = vpop.trf.xlu0
      %v486 = vpop.trf.xlu0
      %v487 = vpop.trf.xlu0
      %v488 = vpop.trf.xlu0
      %v489 = vpop.trf.xlu0
      %v490 = vpop.trf.xlu0
      %v491 = vpop.trf.xlu0
      %v493 = vcombine.high %v355, %v355
      %vm494 = vcmask 31744
      %v496 = vsel %vm494, %v380, 0
      %v499 = vsel %vm494, %v381, 0
      %v502 = vsel %vm494, %v382, 0
      %v505 = vsel %vm494, %v383, 0
      %v508 = vsel %vm494, %v384, 0
      %v511 = vsel %vm494, %v385, 0
      %v514 = vsel %vm494, %v386, 0
      %v517 = vsel %vm494, %v387, 0
      %v520 = vsel %vm494, %v388, 0
      %v523 = vsel %vm494, %v389, 0
      %v526 = vsel %vm494, %v390, 0
      %v529 = vsel %vm494, %v391, 0
      %v532 = vsel %vm494, %v392, 0
      %v535 = vsel %vm494, %v393, 0
      %v538 = vsel %vm494, %v394, 0
      %v541 = vsel %vm494, %v395, 0
      %v544 = vsel %vm494, %v412, 0
      %v547 = vsel %vm494, %v413, 0
      %v550 = vsel %vm494, %v414, 0
      %v553 = vsel %vm494, %v415, 0
      %v556 = vsel %vm494, %v416, 0
      %v559 = vsel %vm494, %v417, 0
      %v562 = vsel %vm494, %v418, 0
      %v565 = vsel %vm494, %v419, 0
      %v568 = vsel %vm494, %v420, 0
      %v571 = vsel %vm494, %v421, 0
      %v574 = vsel %vm494, %v422, 0
      %v577 = vsel %vm494, %v423, 0
      %v580 = vsel %vm494, %v424, 0
      %v583 = vsel %vm494, %v425, 0
      %v586 = vsel %vm494, %v426, 0
      %v589 = vsel %vm494, %v427, 0
      %v592 = vsel %vm494, %v444, 0
      %v595 = vsel %vm494, %v445, 0
      %v598 = vsel %vm494, %v446, 0
      %v601 = vsel %vm494, %v447, 0
      %v604 = vsel %vm494, %v448, 0
      %v607 = vsel %vm494, %v449, 0
      %v610 = vsel %vm494, %v450, 0
      %v613 = vsel %vm494, %v451, 0
      %v616 = vsel %vm494, %v452, 0
      %v619 = vsel %vm494, %v453, 0
      %v622 = vsel %vm494, %v454, 0
      %v625 = vsel %vm494, %v455, 0
      %v628 = vsel %vm494, %v456, 0
      %v631 = vsel %vm494, %v457, 0
      %v634 = vsel %vm494, %v458, 0
      %v637 = vsel %vm494, %v459, 0
      %v640 = vsel %vm494, %v476, 0
      %v643 = vsel %vm494, %v477, 0
      %v646 = vsel %vm494, %v478, 0
      %v649 = vsel %vm494, %v479, 0
      %v652 = vsel %vm494, %v480, 0
      %v655 = vsel %vm494, %v481, 0
      %v658 = vsel %vm494, %v482, 0
      %v661 = vsel %vm494, %v483, 0
      %v664 = vsel %vm494, %v484, 0
      %v667 = vsel %vm494, %v485, 0
      %v670 = vsel %vm494, %v486, 0
      %v673 = vsel %vm494, %v487, 0
      %v676 = vsel %vm494, %v488, 0
      %v679 = vsel %vm494, %v489, 0
      %v682 = vsel %vm494, %v490, 0
      %v685 = vsel %vm494, %v491, 0
      %vm687 = vcmask 1043456
      %v688 = vsel %vm687, %v355, 0
      %v690 = vsel %vm687, %v493, 0
      %692 = vmatprep.subr.mxu0 0.0
      %693 = vmatpush1.msra.mxu0 0.0
      %694 = vmatprep.subr.mxu0 0.0
      %695 = vmatpush1.msra.mxu0 0.0
      %696 = vmatprep.subr.mxu0 0.0
      %697 = vmatpush1.msra.mxu0 0.0
      %698 = vmatprep.subr.mxu0 0.0
      %699 = vmatpush1.msra.mxu0 0.0
      %700 = vmatprep.subr.mxu0 0.0
      %701 = vmatpush1.msra.mxu0 0.0
      %702 = vmatprep.subr.mxu0 0.0
      %703 = vmatpush1.msra.mxu0 0.0
      %704 = vmatprep.subr.mxu0 0.0
      %705 = vmatpush1.msra.mxu0 0.0
      %706 = vmatprep.subr.mxu0 0.0
      %707 = vmatpush1.msra.mxu0 0.0
      %708 = vmatprep.subr.mxu0 0.0
      %709 = vmatpush1.msra.mxu0 0.0
      %710 = vmatprep.subr.mxu0 0.0
      %711 = vmatpush1.msra.mxu0 0.0
      %712 = vmatprep.subr.mxu0 0.0
      %713 = vmatpush1.msra.mxu0 0.0
      %714 = vmatprep.subr.mxu0 0.0
      %715 = vmatpush1.msra.mxu0 0.0
      %716 = vmatprep.subr.mxu0 0.0
      %717 = vmatpush1.msra.mxu0 0.0
      %718 = vmatprep.subr.mxu0 0.0
      %719 = vmatpush1.msra.mxu0 0.0
      %720 = vmatprep.subr.mxu0 0.0
      %721 = vmatpush1.msra.mxu0 0.0
      %722 = vmatprep.subr.mxu0 %v690
      %723 = vmatpush1.msra.mxu0 %v688
      %724 = vmatprep.subr.mxu0 0.0
      %725 = vmatpush2.msra.mxu0 0.0
      %726 = vmatprep.subr.mxu0 0.0
      %727 = vmatpush2.msra.mxu0 0.0
      %728 = vmatprep.subr.mxu0 0.0
      %729 = vmatpush2.msra.mxu0 0.0
      %730 = vmatprep.subr.mxu0 0.0
      %731 = vmatpush2.msra.mxu0 0.0
      %732 = vmatprep.subr.mxu0 0.0
      %733 = vmatpush2.msra.mxu0 0.0
      %734 = vmatprep.subr.mxu0 0.0
      %735 = vmatpush2.msra.mxu0 0.0
      %736 = vmatprep.subr.mxu0 0.0
      %737 = vmatpush2.msra.mxu0 0.0
      %738 = vmatprep.subr.mxu0 0.0
      %739 = vmatpush2.msra.mxu0 0.0
      %740 = vmatprep.subr.mxu0 0.0
      %741 = vmatpush2.msra.mxu0 0.0
      %742 = vmatprep.subr.mxu0 0.0
      %743 = vmatpush2.msra.mxu0 0.0
      %744 = vmatprep.subr.mxu0 0.0
      %745 = vmatpush2.msra.mxu0 0.0
      %746 = vmatprep.subr.mxu0 0.0
      %747 = vmatpush2.msra.mxu0 0.0
      %748 = vmatprep.subr.mxu0 0.0
      %749 = vmatpush2.msra.mxu0 0.0
      %750 = vmatprep.subr.mxu0 0.0
      %751 = vmatpush2.msra.mxu0 0.0
      %752 = vmatprep.subr.mxu0 0.0
      %753 = vmatpush2.msra.mxu0 0.0
      %754 = vmatprep.subr.mxu0 0.0
      %755 = vmatpush2.msra.mxu0 0.0
      %756 = vmatprep.mubr.f32.mxu0 0.0
      %757 = vmatmul.mubr.f32.gmra.mxu0 %v496
      %v758 = vpop.f32.mrf.mxu0
      %v759 = vadd.f32 0.0, %v758
      %v760 = vpop.f32.mrf.mxu0
      %v761 = vadd.f32 0.0, %v760
      %762 = vmatprep.mubr.f32.mxu0 0.0
      %763 = vmatmul.mubr.f32.gmra.mxu0 %v499
      %v764 = vpop.f32.mrf.mxu0
      %v765 = vadd.f32 0.0, %v764
      %v766 = vpop.f32.mrf.mxu0
      %v767 = vadd.f32 0.0, %v766
      %768 = vmatprep.mubr.f32.mxu0 0.0
      %769 = vmatmul.mubr.f32.gmra.mxu0 %v502
      %v770 = vpop.f32.mrf.mxu0
      %v771 = vadd.f32 0.0, %v770
      %v772 = vpop.f32.mrf.mxu0
      %v773 = vadd.f32 0.0, %v772
      %774 = vmatprep.mubr.f32.mxu0 0.0
      %775 = vmatmul.mubr.f32.gmra.mxu0 %v505
      %v776 = vpop.f32.mrf.mxu0
      %v777 = vadd.f32 0.0, %v776
      %v778 = vpop.f32.mrf.mxu0
      %v779 = vadd.f32 0.0, %v778
      %780 = vmatprep.mubr.f32.mxu0 0.0
      %781 = vmatmul.mubr.f32.gmra.mxu0 %v508
      %v782 = vpop.f32.mrf.mxu0
      %v783 = vadd.f32 0.0, %v782
      %v784 = vpop.f32.mrf.mxu0
      %v785 = vadd.f32 0.0, %v784
      %786 = vmatprep.mubr.f32.mxu0 0.0
      %787 = vmatmul.mubr.f32.gmra.mxu0 %v511
      %v788 = vpop.f32.mrf.mxu0
      %v789 = vadd.f32 0.0, %v788
      %v790 = vpop.f32.mrf.mxu0
      %v791 = vadd.f32 0.0, %v790
      %792 = vmatprep.mubr.f32.mxu0 0.0
      %793 = vmatmul.mubr.f32.gmra.mxu0 %v514
      %v794 = vpop.f32.mrf.mxu0
      %v795 = vadd.f32 0.0, %v794
      %v796 = vpop.f32.mrf.mxu0
      %v797 = vadd.f32 0.0, %v796
      %798 = vmatprep.mubr.f32.mxu0 0.0
      %799 = vmatmul.mubr.f32.gmra.mxu0 %v517
      %v800 = vpop.f32.mrf.mxu0
      %v801 = vadd.f32 0.0, %v800
      %v802 = vpop.f32.mrf.mxu0
      %v803 = vadd.f32 0.0, %v802
      %804 = vmatprep.mubr.f32.mxu0 0.0
      %805 = vmatmul.mubr.f32.gmra.mxu0 %v520
      %v806 = vpop.f32.mrf.mxu0
      %v807 = vadd.f32 0.0, %v806
      %v808 = vpop.f32.mrf.mxu0
      %v809 = vadd.f32 0.0, %v808
      %810 = vmatprep.mubr.f32.mxu0 0.0
      %811 = vmatmul.mubr.f32.gmra.mxu0 %v523
      %v812 = vpop.f32.mrf.mxu0
      %v813 = vadd.f32 0.0, %v812
      %v814 = vpop.f32.mrf.mxu0
      %v815 = vadd.f32 0.0, %v814
      %816 = vmatprep.mubr.f32.mxu0 0.0
      %817 = vmatmul.mubr.f32.gmra.mxu0 %v526
      %v818 = vpop.f32.mrf.mxu0
      %v819 = vadd.f32 0.0, %v818
      %v820 = vpop.f32.mrf.mxu0
      %v821 = vadd.f32 0.0, %v820
      %822 = vmatprep.mubr.f32.mxu0 0.0
      %823 = vmatmul.mubr.f32.gmra.mxu0 %v529
      %v824 = vpop.f32.mrf.mxu0
      %v825 = vadd.f32 0.0, %v824
      %v826 = vpop.f32.mrf.mxu0
      %v827 = vadd.f32 0.0, %v826
      %828 = vmatprep.mubr.f32.mxu0 0.0
      %829 = vmatmul.mubr.f32.gmra.mxu0 %v532
      %v830 = vpop.f32.mrf.mxu0
      %v831 = vadd.f32 0.0, %v830
      %v832 = vpop.f32.mrf.mxu0
      %v833 = vadd.f32 0.0, %v832
      %834 = vmatprep.mubr.f32.mxu0 0.0
      %835 = vmatmul.mubr.f32.gmra.mxu0 %v535
      %v836 = vpop.f32.mrf.mxu0
      %v837 = vadd.f32 0.0, %v836
      %v838 = vpop.f32.mrf.mxu0
      %v839 = vadd.f32 0.0, %v838
      %840 = vmatprep.mubr.f32.mxu0 0.0
      %841 = vmatmul.mubr.f32.gmra.mxu0 %v538
      %v842 = vpop.f32.mrf.mxu0
      %v843 = vadd.f32 0.0, %v842
      %v844 = vpop.f32.mrf.mxu0
      %v845 = vadd.f32 0.0, %v844
      %846 = vmatprep.mubr.f32.mxu0 0.0
      %847 = vmatmul.mubr.f32.gmra.mxu0 %v541
      %v848 = vpop.f32.mrf.mxu0
      %v849 = vadd.f32 0.0, %v848
      %v850 = vpop.f32.mrf.mxu0
      %v851 = vadd.f32 0.0, %v850
      %852 = vmatprep.mubr.f32.mxu0 0.0
      %853 = vmatmul.mubr.f32.gmra.mxu0 %v544
      %v854 = vpop.f32.mrf.mxu0
      %v855 = vadd.f32 0.0, %v854
      %v856 = vpop.f32.mrf.mxu0
      %v857 = vadd.f32 0.0, %v856
      %858 = vmatprep.mubr.f32.mxu0 0.0
      %859 = vmatmul.mubr.f32.gmra.mxu0 %v547
      %v860 = vpop.f32.mrf.mxu0
      %v861 = vadd.f32 0.0, %v860
      %v862 = vpop.f32.mrf.mxu0
      %v863 = vadd.f32 0.0, %v862
      %864 = vmatprep.mubr.f32.mxu0 0.0
      %865 = vmatmul.mubr.f32.gmra.mxu0 %v550
      %v866 = vpop.f32.mrf.mxu0
      %v867 = vadd.f32 0.0, %v866
      %v868 = vpop.f32.mrf.mxu0
      %v869 = vadd.f32 0.0, %v868
      %870 = vmatprep.mubr.f32.mxu0 0.0
      %871 = vmatmul.mubr.f32.gmra.mxu0 %v553
      %v872 = vpop.f32.mrf.mxu0
      %v873 = vadd.f32 0.0, %v872
      %v874 = vpop.f32.mrf.mxu0
      %v875 = vadd.f32 0.0, %v874
      %876 = vmatprep.mubr.f32.mxu0 0.0
      %877 = vmatmul.mubr.f32.gmra.mxu0 %v556
      %v878 = vpop.f32.mrf.mxu0
      %v879 = vadd.f32 0.0, %v878
      %v880 = vpop.f32.mrf.mxu0
      %v881 = vadd.f32 0.0, %v880
      %882 = vmatprep.mubr.f32.mxu0 0.0
      %883 = vmatmul.mubr.f32.gmra.mxu0 %v559
      %v884 = vpop.f32.mrf.mxu0
      %v885 = vadd.f32 0.0, %v884
      %v886 = vpop.f32.mrf.mxu0
      %v887 = vadd.f32 0.0, %v886
      %888 = vmatprep.mubr.f32.mxu0 0.0
      %889 = vmatmul.mubr.f32.gmra.mxu0 %v562
      %v890 = vpop.f32.mrf.mxu0
      %v891 = vadd.f32 0.0, %v890
      %v892 = vpop.f32.mrf.mxu0
      %v893 = vadd.f32 0.0, %v892
      %894 = vmatprep.mubr.f32.mxu0 0.0
      %895 = vmatmul.mubr.f32.gmra.mxu0 %v565
      %v896 = vpop.f32.mrf.mxu0
      %v897 = vadd.f32 0.0, %v896
      %v898 = vpop.f32.mrf.mxu0
      %v899 = vadd.f32 0.0, %v898
      %900 = vmatprep.mubr.f32.mxu0 0.0
      %901 = vmatmul.mubr.f32.gmra.mxu0 %v568
      %v902 = vpop.f32.mrf.mxu0
      %v903 = vadd.f32 0.0, %v902
      %v904 = vpop.f32.mrf.mxu0
      %v905 = vadd.f32 0.0, %v904
      %906 = vmatprep.mubr.f32.mxu0 0.0
      %907 = vmatmul.mubr.f32.gmra.mxu0 %v571
      %v908 = vpop.f32.mrf.mxu0
      %v909 = vadd.f32 0.0, %v908
      %v910 = vpop.f32.mrf.mxu0
      %v911 = vadd.f32 0.0, %v910
      %912 = vmatprep.mubr.f32.mxu0 0.0
      %913 = vmatmul.mubr.f32.gmra.mxu0 %v574
      %v914 = vpop.f32.mrf.mxu0
      %v915 = vadd.f32 0.0, %v914
      %v916 = vpop.f32.mrf.mxu0
      %v917 = vadd.f32 0.0, %v916
      %918 = vmatprep.mubr.f32.mxu0 0.0
      %919 = vmatmul.mubr.f32.gmra.mxu0 %v577
      %v920 = vpop.f32.mrf.mxu0
      %v921 = vadd.f32 0.0, %v920
      %v922 = vpop.f32.mrf.mxu0
      %v923 = vadd.f32 0.0, %v922
      %924 = vmatprep.mubr.f32.mxu0 0.0
      %925 = vmatmul.mubr.f32.gmra.mxu0 %v580
      %v926 = vpop.f32.mrf.mxu0
      %v927 = vadd.f32 0.0, %v926
      %v928 = vpop.f32.mrf.mxu0
      %v929 = vadd.f32 0.0, %v928
      %930 = vmatprep.mubr.f32.mxu0 0.0
      %931 = vmatmul.mubr.f32.gmra.mxu0 %v583
      %v932 = vpop.f32.mrf.mxu0
      %v933 = vadd.f32 0.0, %v932
      %v934 = vpop.f32.mrf.mxu0
      %v935 = vadd.f32 0.0, %v934
      %936 = vmatprep.mubr.f32.mxu0 0.0
      %937 = vmatmul.mubr.f32.gmra.mxu0 %v586
      %v938 = vpop.f32.mrf.mxu0
      %v939 = vadd.f32 0.0, %v938
      %v940 = vpop.f32.mrf.mxu0
      %v941 = vadd.f32 0.0, %v940
      %942 = vmatprep.mubr.f32.mxu0 0.0
      %943 = vmatmul.mubr.f32.gmra.mxu0 %v589
      %v944 = vpop.f32.mrf.mxu0
      %v945 = vadd.f32 0.0, %v944
      %v946 = vpop.f32.mrf.mxu0
      %v947 = vadd.f32 0.0, %v946
      %948 = vmatprep.mubr.f32.mxu0 0.0
      %949 = vmatmul.mubr.f32.gmra.mxu0 %v592
      %v950 = vpop.f32.mrf.mxu0
      %v951 = vadd.f32 0.0, %v950
      %v952 = vpop.f32.mrf.mxu0
      %v953 = vadd.f32 0.0, %v952
      %954 = vmatprep.mubr.f32.mxu0 0.0
      %955 = vmatmul.mubr.f32.gmra.mxu0 %v595
      %v956 = vpop.f32.mrf.mxu0
      %v957 = vadd.f32 0.0, %v956
      %v958 = vpop.f32.mrf.mxu0
      %v959 = vadd.f32 0.0, %v958
      %960 = vmatprep.mubr.f32.mxu0 0.0
      %961 = vmatmul.mubr.f32.gmra.mxu0 %v598
      %v962 = vpop.f32.mrf.mxu0
      %v963 = vadd.f32 0.0, %v962
      %v964 = vpop.f32.mrf.mxu0
      %v965 = vadd.f32 0.0, %v964
      %966 = vmatprep.mubr.f32.mxu0 0.0
      %967 = vmatmul.mubr.f32.gmra.mxu0 %v601
      %v968 = vpop.f32.mrf.mxu0
      %v969 = vadd.f32 0.0, %v968
      %v970 = vpop.f32.mrf.mxu0
      %v971 = vadd.f32 0.0, %v970
      %972 = vmatprep.mubr.f32.mxu0 0.0
      %973 = vmatmul.mubr.f32.gmra.mxu0 %v604
      %v974 = vpop.f32.mrf.mxu0
      %v975 = vadd.f32 0.0, %v974
      %v976 = vpop.f32.mrf.mxu0
      %v977 = vadd.f32 0.0, %v976
      %978 = vmatprep.mubr.f32.mxu0 0.0
      %979 = vmatmul.mubr.f32.gmra.mxu0 %v607
      %v980 = vpop.f32.mrf.mxu0
      %v981 = vadd.f32 0.0, %v980
      %v982 = vpop.f32.mrf.mxu0
      %v983 = vadd.f32 0.0, %v982
      %984 = vmatprep.mubr.f32.mxu0 0.0
      %985 = vmatmul.mubr.f32.gmra.mxu0 %v610
      %v986 = vpop.f32.mrf.mxu0
      %v987 = vadd.f32 0.0, %v986
      %v988 = vpop.f32.mrf.mxu0
      %v989 = vadd.f32 0.0, %v988
      %990 = vmatprep.mubr.f32.mxu0 0.0
      %991 = vmatmul.mubr.f32.gmra.mxu0 %v613
      %v992 = vpop.f32.mrf.mxu0
      %v993 = vadd.f32 0.0, %v992
      %v994 = vpop.f32.mrf.mxu0
      %v995 = vadd.f32 0.0, %v994
      %996 = vmatprep.mubr.f32.mxu0 0.0
      %997 = vmatmul.mubr.f32.gmra.mxu0 %v616
      %v998 = vpop.f32.mrf.mxu0
      %v999 = vadd.f32 0.0, %v998
      %v1000 = vpop.f32.mrf.mxu0
      %v1001 = vadd.f32 0.0, %v1000
      %1002 = vmatprep.mubr.f32.mxu0 0.0
      %1003 = vmatmul.mubr.f32.gmra.mxu0 %v619
      %v1004 = vpop.f32.mrf.mxu0
      %v1005 = vadd.f32 0.0, %v1004
      %v1006 = vpop.f32.mrf.mxu0
      %v1007 = vadd.f32 0.0, %v1006
      %1008 = vmatprep.mubr.f32.mxu0 0.0
      %1009 = vmatmul.mubr.f32.gmra.mxu0 %v622
      %v1010 = vpop.f32.mrf.mxu0
      %v1011 = vadd.f32 0.0, %v1010
      %v1012 = vpop.f32.mrf.mxu0
      %v1013 = vadd.f32 0.0, %v1012
      %1014 = vmatprep.mubr.f32.mxu0 0.0
      %1015 = vmatmul.mubr.f32.gmra.mxu0 %v625
      %v1016 = vpop.f32.mrf.mxu0
      %v1017 = vadd.f32 0.0, %v1016
      %v1018 = vpop.f32.mrf.mxu0
      %v1019 = vadd.f32 0.0, %v1018
      %1020 = vmatprep.mubr.f32.mxu0 0.0
      %1021 = vmatmul.mubr.f32.gmra.mxu0 %v628
      %v1022 = vpop.f32.mrf.mxu0
      %v1023 = vadd.f32 0.0, %v1022
      %v1024 = vpop.f32.mrf.mxu0
      %v1025 = vadd.f32 0.0, %v1024
      %1026 = vmatprep.mubr.f32.mxu0 0.0
      %1027 = vmatmul.mubr.f32.gmra.mxu0 %v631
      %v1028 = vpop.f32.mrf.mxu0
      %v1029 = vadd.f32 0.0, %v1028
      %v1030 = vpop.f32.mrf.mxu0
      %v1031 = vadd.f32 0.0, %v1030
      %1032 = vmatprep.mubr.f32.mxu0 0.0
      %1033 = vmatmul.mubr.f32.gmra.mxu0 %v634
      %v1034 = vpop.f32.mrf.mxu0
      %v1035 = vadd.f32 0.0, %v1034
      %v1036 = vpop.f32.mrf.mxu0
      %v1037 = vadd.f32 0.0, %v1036
      %1038 = vmatprep.mubr.f32.mxu0 0.0
      %1039 = vmatmul.mubr.f32.gmra.mxu0 %v637
      %v1040 = vpop.f32.mrf.mxu0
      %v1041 = vadd.f32 0.0, %v1040
      %v1042 = vpop.f32.mrf.mxu0
      %v1043 = vadd.f32 0.0, %v1042
      %1044 = vmatprep.mubr.f32.mxu0 0.0
      %1045 = vmatmul.mubr.f32.gmra.mxu0 %v640
      %v1046 = vpop.f32.mrf.mxu0
      %v1047 = vadd.f32 0.0, %v1046
      %v1048 = vpop.f32.mrf.mxu0
      %v1049 = vadd.f32 0.0, %v1048
      %1050 = vmatprep.mubr.f32.mxu0 0.0
      %1051 = vmatmul.mubr.f32.gmra.mxu0 %v643
      %v1052 = vpop.f32.mrf.mxu0
      %v1053 = vadd.f32 0.0, %v1052
      %v1054 = vpop.f32.mrf.mxu0
      %v1055 = vadd.f32 0.0, %v1054
      %1056 = vmatprep.mubr.f32.mxu0 0.0
      %1057 = vmatmul.mubr.f32.gmra.mxu0 %v646
      %v1058 = vpop.f32.mrf.mxu0
      %v1059 = vadd.f32 0.0, %v1058
      %v1060 = vpop.f32.mrf.mxu0
      %v1061 = vadd.f32 0.0, %v1060
      %1062 = vmatprep.mubr.f32.mxu0 0.0
      %1063 = vmatmul.mubr.f32.gmra.mxu0 %v649
      %v1064 = vpop.f32.mrf.mxu0
      %v1065 = vadd.f32 0.0, %v1064
      %v1066 = vpop.f32.mrf.mxu0
      %v1067 = vadd.f32 0.0, %v1066
      %1068 = vmatprep.mubr.f32.mxu0 0.0
      %1069 = vmatmul.mubr.f32.gmra.mxu0 %v652
      %v1070 = vpop.f32.mrf.mxu0
      %v1071 = vadd.f32 0.0, %v1070
      %v1072 = vpop.f32.mrf.mxu0
      %v1073 = vadd.f32 0.0, %v1072
      %1074 = vmatprep.mubr.f32.mxu0 0.0
      %1075 = vmatmul.mubr.f32.gmra.mxu0 %v655
      %v1076 = vpop.f32.mrf.mxu0
      %v1077 = vadd.f32 0.0, %v1076
      %v1078 = vpop.f32.mrf.mxu0
      %v1079 = vadd.f32 0.0, %v1078
      %1080 = vmatprep.mubr.f32.mxu0 0.0
      %1081 = vmatmul.mubr.f32.gmra.mxu0 %v658
      %v1082 = vpop.f32.mrf.mxu0
      %v1083 = vadd.f32 0.0, %v1082
      %v1084 = vpop.f32.mrf.mxu0
      %v1085 = vadd.f32 0.0, %v1084
      %1086 = vmatprep.mubr.f32.mxu0 0.0
      %1087 = vmatmul.mubr.f32.gmra.mxu0 %v661
      %v1088 = vpop.f32.mrf.mxu0
      %v1089 = vadd.f32 0.0, %v1088
      %v1090 = vpop.f32.mrf.mxu0
      %v1091 = vadd.f32 0.0, %v1090
      %1092 = vmatprep.mubr.f32.mxu0 0.0
      %1093 = vmatmul.mubr.f32.gmra.mxu0 %v664
      %v1094 = vpop.f32.mrf.mxu0
      %v1095 = vadd.f32 0.0, %v1094
      %v1096 = vpop.f32.mrf.mxu0
      %v1097 = vadd.f32 0.0, %v1096
      %1098 = vmatprep.mubr.f32.mxu0 0.0
      %1099 = vmatmul.mubr.f32.gmra.mxu0 %v667
      %v1100 = vpop.f32.mrf.mxu0
      %v1101 = vadd.f32 0.0, %v1100
      %v1102 = vpop.f32.mrf.mxu0
      %v1103 = vadd.f32 0.0, %v1102
      %1104 = vmatprep.mubr.f32.mxu0 0.0
      %1105 = vmatmul.mubr.f32.gmra.mxu0 %v670
      %v1106 = vpop.f32.mrf.mxu0
      %v1107 = vadd.f32 0.0, %v1106
      %v1108 = vpop.f32.mrf.mxu0
      %v1109 = vadd.f32 0.0, %v1108
      %1110 = vmatprep.mubr.f32.mxu0 0.0
      %1111 = vmatmul.mubr.f32.gmra.mxu0 %v673
      %v1112 = vpop.f32.mrf.mxu0
      %v1113 = vadd.f32 0.0, %v1112
      %v1114 = vpop.f32.mrf.mxu0
      %v1115 = vadd.f32 0.0, %v1114
      %1116 = vmatprep.mubr.f32.mxu0 0.0
      %1117 = vmatmul.mubr.f32.gmra.mxu0 %v676
      %v1118 = vpop.f32.mrf.mxu0
      %v1119 = vadd.f32 0.0, %v1118
      %v1120 = vpop.f32.mrf.mxu0
      %v1121 = vadd.f32 0.0, %v1120
      %1122 = vmatprep.mubr.f32.mxu0 0.0
      %1123 = vmatmul.mubr.f32.gmra.mxu0 %v679
      %v1124 = vpop.f32.mrf.mxu0
      %v1125 = vadd.f32 0.0, %v1124
      %v1126 = vpop.f32.mrf.mxu0
      %v1127 = vadd.f32 0.0, %v1126
      %1128 = vmatprep.mubr.f32.mxu0 0.0
      %1129 = vmatmul.mubr.f32.gmra.mxu0 %v682
      %v1130 = vpop.f32.mrf.mxu0
      %v1131 = vadd.f32 0.0, %v1130
      %v1132 = vpop.f32.mrf.mxu0
      %v1133 = vadd.f32 0.0, %v1132
      %1134 = vmatprep.mubr.f32.mxu0 0.0
      %1135 = vmatmul.mubr.f32.gmra.mxu0 %v685
      %v1136 = vpop.f32.mrf.mxu0
      %v1137 = vadd.f32 0.0, %v1136
      %v1138 = vpop.f32.mrf.mxu0
      %v1139 = vadd.f32 0.0, %v1138
      %1140 = vdwg.mxu0
      %v1141 = vlaneseq
      %v1142 = vshrl.u32 %v1141, 7
      %v1143 = vadd.s32 %v1142, 8
      %v1144 = vadd.s32 %v1142, 16
      %v1145 = vadd.s32 %v1142, 24
      %v1146 = vadd.s32 %v1142, 32
      %v1147 = vadd.s32 %v1142, 40
      %v1148 = vadd.s32 %v1142, 48
      %v1149 = vadd.s32 %v1142, 56
      %v1150 = vadd.s32 %v1142, 64
      %v1151 = vadd.s32 %v1142, 72
      %v1152 = vadd.s32 %v1142, 80
      %v1153 = vadd.s32 %v1142, 88
      %v1154 = vadd.s32 %v1142, 96
      %v1155 = vadd.s32 %v1142, 104
      %v1156 = vadd.s32 %v1142, 112
      %v1157 = vadd.s32 %v1142, 120
      %v1158 = vadd.s32 %v1142, 128
      %v1159 = vadd.s32 %v1142, 136
      %v1160 = vadd.s32 %v1142, 144
      %v1161 = vadd.s32 %v1142, 152
      %v1162 = vadd.s32 %v1142, 160
      %v1163 = vadd.s32 %v1142, 168
      %v1164 = vadd.s32 %v1142, 176
      %v1165 = vadd.s32 %v1142, 184
      %v1166 = vadd.s32 %v1142, 192
      %v1167 = vadd.s32 %v1142, 200
      %v1168 = vadd.s32 %v1142, 208
      %v1169 = vadd.s32 %v1142, 216
      %v1170 = vadd.s32 %v1142, 224
      %v1171 = vadd.s32 %v1142, 232
      %v1172 = vadd.s32 %v1142, 240
      %v1173 = vadd.s32 %v1142, 248
      %v1174 = vmax.f32 %v759, %v771
      %v1175 = vmax.f32 %v765, %v777
      %v1176 = vmax.f32 %v1174, %v783
      %v1177 = vmax.f32 %v1175, %v789
      %v1178 = vmax.f32 %v1176, %v795
      %v1179 = vmax.f32 %v1177, %v801
      %v1180 = vmax.f32 %v1178, %v807
      %v1181 = vmax.f32 %v1179, %v813
      %v1182 = vmax.f32 %v1180, %v819
      %v1183 = vmax.f32 %v1181, %v825
      %v1184 = vmax.f32 %v1182, %v831
      %v1185 = vmax.f32 %v1183, %v837
      %v1186 = vmax.f32 %v1184, %v843
      %v1187 = vmax.f32 %v1185, %v849
      %v1188 = vmax.f32 %v1186, %v855
      %v1189 = vmax.f32 %v1187, %v861
      %v1190 = vmax.f32 %v1188, %v867
      %v1191 = vmax.f32 %v1189, %v873
      %v1192 = vmax.f32 %v1190, %v879
      %v1193 = vmax.f32 %v1191, %v885
      %v1194 = vmax.f32 %v1192, %v891
      %v1195 = vmax.f32 %v1193, %v897
      %v1196 = vmax.f32 %v1194, %v903
      %v1197 = vmax.f32 %v1195, %v909
      %v1198 = vmax.f32 %v1196, %v915
      %v1199 = vmax.f32 %v1197, %v921
      %v1200 = vmax.f32 %v1198, %v927
      %v1201 = vmax.f32 %v1199, %v933
      %v1202 = vmax.f32 %v1200, %v939
      %v1203 = vmax.f32 %v1201, %v945
      %v1204 = vmax.f32 %v1202, %v1203
      %v1205 = vrot.slane %v1204, 4
      %v1206 = vmax.f32 %v1204, %v1205
      %v1207 = vrot.slane %v1206, 2
      %v1208 = vmax.f32 %v1206, %v1207
      %v1209 = vrot.slane %v1208, 1
      %v1210 = vmax.f32 %v1208, %v1209
      %v1211 = vmax.f32 %v761, %v773
      %v1212 = vmax.f32 %v767, %v779
      %v1213 = vmax.f32 %v1211, %v785
      %v1214 = vmax.f32 %v1212, %v791
      %v1215 = vmax.f32 %v1213, %v797
      %v1216 = vmax.f32 %v1214, %v803
      %v1217 = vmax.f32 %v1215, %v809
      %v1218 = vmax.f32 %v1216, %v815
      %v1219 = vmax.f32 %v1217, %v821
      %v1220 = vmax.f32 %v1218, %v827
      %v1221 = vmax.f32 %v1219, %v833
      %v1222 = vmax.f32 %v1220, %v839
      %v1223 = vmax.f32 %v1221, %v845
      %v1224 = vmax.f32 %v1222, %v851
      %v1225 = vmax.f32 %v1223, %v857
      %v1226 = vmax.f32 %v1224, %v863
      %v1227 = vmax.f32 %v1225, %v869
      %v1228 = vmax.f32 %v1226, %v875
      %v1229 = vmax.f32 %v1227, %v881
      %v1230 = vmax.f32 %v1228, %v887
      %v1231 = vmax.f32 %v1229, %v893
      %v1232 = vmax.f32 %v1230, %v899
      %v1233 = vmax.f32 %v1231, %v905
      %v1234 = vmax.f32 %v1232, %v911
      %v1235 = vmax.f32 %v1233, %v917
      %v1236 = vmax.f32 %v1234, %v923
      %v1237 = vmax.f32 %v1235, %v929
      %v1238 = vmax.f32 %v1236, %v935
      %v1239 = vmax.f32 %v1237, %v941
      %v1240 = vmax.f32 %v1238, %v947
      %v1241 = vmax.f32 %v1239, %v1240
      %v1242 = vrot.slane %v1241, 4
      %v1243 = vmax.f32 %v1241, %v1242
      %v1244 = vrot.slane %v1243, 2
      %v1245 = vmax.f32 %v1243, %v1244
      %v1246 = vrot.slane %v1245, 1
      %v1247 = vmax.f32 %v1245, %v1246
      %vm1248 = vcmp.eq.f32.partialorder %v759, %v1210
      %vm1249 = vcmp.eq.f32.partialorder %v761, %v1247
      %vm1250 = vcmp.eq.f32.partialorder %v765, %v1210
      %vm1251 = vcmp.eq.f32.partialorder %v767, %v1247
      %vm1252 = vcmp.eq.f32.partialorder %v771, %v1210
      %vm1253 = vcmp.eq.f32.partialorder %v773, %v1247
      %vm1254 = vcmp.eq.f32.partialorder %v777, %v1210
      %vm1255 = vcmp.eq.f32.partialorder %v779, %v1247
      %vm1256 = vcmp.eq.f32.partialorder %v783, %v1210
      %vm1257 = vcmp.eq.f32.partialorder %v785, %v1247
      %vm1258 = vcmp.eq.f32.partialorder %v789, %v1210
      %vm1259 = vcmp.eq.f32.partialorder %v791, %v1247
      %vm1260 = vcmp.eq.f32.partialorder %v795, %v1210
      %vm1261 = vcmp.eq.f32.partialorder %v797, %v1247
      %vm1262 = vcmp.eq.f32.partialorder %v801, %v1210
      %vm1263 = vcmp.eq.f32.partialorder %v803, %v1247
      %vm1264 = vcmp.eq.f32.partialorder %v807, %v1210
      %vm1265 = vcmp.eq.f32.partialorder %v809, %v1247
      %vm1266 = vcmp.eq.f32.partialorder %v813, %v1210
      %vm1267 = vcmp.eq.f32.partialorder %v815, %v1247
      %vm1268 = vcmp.eq.f32.partialorder %v819, %v1210
      %vm1269 = vcmp.eq.f32.partialorder %v821, %v1247
      %vm1270 = vcmp.eq.f32.partialorder %v825, %v1210
      %vm1271 = vcmp.eq.f32.partialorder %v827, %v1247
      %vm1272 = vcmp.eq.f32.partialorder %v831, %v1210
      %vm1273 = vcmp.eq.f32.partialorder %v833, %v1247
      %vm1274 = vcmp.eq.f32.partialorder %v837, %v1210
      %vm1275 = vcmp.eq.f32.partialorder %v839, %v1247
      %vm1276 = vcmp.eq.f32.partialorder %v843, %v1210
      %vm1277 = vcmp.eq.f32.partialorder %v845, %v1247
      %vm1278 = vcmp.eq.f32.partialorder %v849, %v1210
      %vm1279 = vcmp.eq.f32.partialorder %v851, %v1247
      %vm1280 = vcmp.eq.f32.partialorder %v855, %v1210
      %vm1281 = vcmp.eq.f32.partialorder %v857, %v1247
      %vm1282 = vcmp.eq.f32.partialorder %v861, %v1210
      %vm1283 = vcmp.eq.f32.partialorder %v863, %v1247
      %vm1284 = vcmp.eq.f32.partialorder %v867, %v1210
      %vm1285 = vcmp.eq.f32.partialorder %v869, %v1247
      %vm1286 = vcmp.eq.f32.partialorder %v873, %v1210
      %vm1287 = vcmp.eq.f32.partialorder %v875, %v1247
      %vm1288 = vcmp.eq.f32.partialorder %v879, %v1210
      %vm1289 = vcmp.eq.f32.partialorder %v881, %v1247
      %vm1290 = vcmp.eq.f32.partialorder %v885, %v1210
      %vm1291 = vcmp.eq.f32.partialorder %v887, %v1247
      %vm1292 = vcmp.eq.f32.partialorder %v891, %v1210
      %vm1293 = vcmp.eq.f32.partialorder %v893, %v1247
      %vm1294 = vcmp.eq.f32.partialorder %v897, %v1210
      %vm1295 = vcmp.eq.f32.partialorder %v899, %v1247
      %vm1296 = vcmp.eq.f32.partialorder %v903, %v1210
      %vm1297 = vcmp.eq.f32.partialorder %v905, %v1247
      %vm1298 = vcmp.eq.f32.partialorder %v909, %v1210
      %vm1299 = vcmp.eq.f32.partialorder %v911, %v1247
      %vm1300 = vcmp.eq.f32.partialorder %v915, %v1210
      %vm1301 = vcmp.eq.f32.partialorder %v917, %v1247
      %vm1302 = vcmp.eq.f32.partialorder %v921, %v1210
      %vm1303 = vcmp.eq.f32.partialorder %v923, %v1247
      %vm1304 = vcmp.eq.f32.partialorder %v927, %v1210
      %vm1305 = vcmp.eq.f32.partialorder %v929, %v1247
      %vm1306 = vcmp.eq.f32.partialorder %v933, %v1210
      %vm1307 = vcmp.eq.f32.partialorder %v935, %v1247
      %vm1308 = vcmp.eq.f32.partialorder %v939, %v1210
      %vm1309 = vcmp.eq.f32.partialorder %v941, %v1247
      %vm1310 = vcmp.eq.f32.partialorder %v945, %v1210
      %vm1311 = vcmp.eq.f32.partialorder %v947, %v1247
      %v1312 = vsel %vm1248, %v1142, 256
      %v1313 = vsel %vm1249, %v1142, 256
      %v1314 = vsel %vm1250, %v1143, 256
      %v1315 = vsel %vm1251, %v1143, 256
      %v1316 = vsel %vm1252, %v1144, 256
      %v1317 = vsel %vm1253, %v1144, 256
      %v1318 = vsel %vm1254, %v1145, 256
      %v1319 = vsel %vm1255, %v1145, 256
      %v1320 = vsel %vm1256, %v1146, 256
      %v1321 = vsel %vm1257, %v1146, 256
      %v1322 = vsel %vm1258, %v1147, 256
      %v1323 = vsel %vm1259, %v1147, 256
      %v1324 = vsel %vm1260, %v1148, 256
      %v1325 = vsel %vm1261, %v1148, 256
      %v1326 = vsel %vm1262, %v1149, 256
      %v1327 = vsel %vm1263, %v1149, 256
      %v1328 = vsel %vm1264, %v1150, 256
      %v1329 = vsel %vm1265, %v1150, 256
      %v1330 = vsel %vm1266, %v1151, 256
      %v1331 = vsel %vm1267, %v1151, 256
      %v1332 = vsel %vm1268, %v1152, 256
      %v1333 = vsel %vm1269, %v1152, 256
      %v1334 = vsel %vm1270, %v1153, 256
      %v1335 = vsel %vm1271, %v1153, 256
      %v1336 = vsel %vm1272, %v1154, 256
      %v1337 = vsel %vm1273, %v1154, 256
      %v1338 = vsel %vm1274, %v1155, 256
      %v1339 = vsel %vm1275, %v1155, 256
      %v1340 = vsel %vm1276, %v1156, 256
      %v1341 = vsel %vm1277, %v1156, 256
      %v1342 = vsel %vm1278, %v1157, 256
      %v1343 = vsel %vm1279, %v1157, 256
      %v1344 = vsel %vm1280, %v1158, 256
      %v1345 = vsel %vm1281, %v1158, 256
      %v1346 = vsel %vm1282, %v1159, 256
      %v1347 = vsel %vm1283, %v1159, 256
      %v1348 = vsel %vm1284, %v1160, 256
      %v1349 = vsel %vm1285, %v1160, 256
      %v1350 = vsel %vm1286, %v1161, 256
      %v1351 = vsel %vm1287, %v1161, 256
      %v1352 = vsel %vm1288, %v1162, 256
      %v1353 = vsel %vm1289, %v1162, 256
      %v1354 = vsel %vm1290, %v1163, 256
      %v1355 = vsel %vm1291, %v1163, 256
      %v1356 = vsel %vm1292, %v1164, 256
      %v1357 = vsel %vm1293, %v1164, 256
      %v1358 = vsel %vm1294, %v1165, 256
      %v1359 = vsel %vm1295, %v1165, 256
      %v1360 = vsel %vm1296, %v1166, 256
      %v1361 = vsel %vm1297, %v1166, 256
      %v1362 = vsel %vm1298, %v1167, 256
      %v1363 = vsel %vm1299, %v1167, 256
      %v1364 = vsel %vm1300, %v1168, 256
      %v1365 = vsel %vm1301, %v1168, 256
      %v1366 = vsel %vm1302, %v1169, 256
      %v1367 = vsel %vm1303, %v1169, 256
      %v1368 = vsel %vm1304, %v1170, 256
      %v1369 = vsel %vm1305, %v1170, 256
      %v1370 = vsel %vm1306, %v1171, 256
      %v1371 = vsel %vm1307, %v1171, 256
      %v1372 = vsel %vm1308, %v1172, 256
      %v1373 = vsel %vm1309, %v1172, 256
      %v1374 = vsel %vm1310, %v1173, 256
      %v1375 = vsel %vm1311, %v1173, 256
      %vm1376 = vcmp.lt.s32.totalorder %v1312, %v1316
      %v1377 = vsel %vm1376, %v1312, %v1316
      %vm1378 = vcmp.lt.s32.totalorder %v1314, %v1318
      %v1379 = vsel %vm1378, %v1314, %v1318
      %vm1380 = vcmp.lt.s32.totalorder %v1377, %v1320
      %v1381 = vsel %vm1380, %v1377, %v1320
      %vm1382 = vcmp.lt.s32.totalorder %v1379, %v1322
      %v1383 = vsel %vm1382, %v1379, %v1322
      %vm1384 = vcmp.lt.s32.totalorder %v1381, %v1324
      %v1385 = vsel %vm1384, %v1381, %v1324
      %vm1386 = vcmp.lt.s32.totalorder %v1383, %v1326
      %v1387 = vsel %vm1386, %v1383, %v1326
      %vm1388 = vcmp.lt.s32.totalorder %v1385, %v1328
      %v1389 = vsel %vm1388, %v1385, %v1328
      %vm1390 = vcmp.lt.s32.totalorder %v1387, %v1330
      %v1391 = vsel %vm1390, %v1387, %v1330
      %vm1392 = vcmp.lt.s32.totalorder %v1389, %v1332
      %v1393 = vsel %vm1392, %v1389, %v1332
      %vm1394 = vcmp.lt.s32.totalorder %v1391, %v1334
      %v1395 = vsel %vm1394, %v1391, %v1334
      %vm1396 = vcmp.lt.s32.totalorder %v1393, %v1336
      %v1397 = vsel %vm1396, %v1393, %v1336
      %vm1398 = vcmp.lt.s32.totalorder %v1395, %v1338
      %v1399 = vsel %vm1398, %v1395, %v1338
      %vm1400 = vcmp.lt.s32.totalorder %v1397, %v1340
      %v1401 = vsel %vm1400, %v1397, %v1340
      %vm1402 = vcmp.lt.s32.totalorder %v1399, %v1342
      %v1403 = vsel %vm1402, %v1399, %v1342
      %vm1404 = vcmp.lt.s32.totalorder %v1401, %v1344
      %v1405 = vsel %vm1404, %v1401, %v1344
      %vm1406 = vcmp.lt.s32.totalorder %v1403, %v1346
      %v1407 = vsel %vm1406, %v1403, %v1346
      %vm1408 = vcmp.lt.s32.totalorder %v1405, %v1348
      %v1409 = vsel %vm1408, %v1405, %v1348
      %vm1410 = vcmp.lt.s32.totalorder %v1407, %v1350
      %v1411 = vsel %vm1410, %v1407, %v1350
      %vm1412 = vcmp.lt.s32.totalorder %v1409, %v1352
      %v1413 = vsel %vm1412, %v1409, %v1352
      %vm1414 = vcmp.lt.s32.totalorder %v1411, %v1354
      %v1415 = vsel %vm1414, %v1411, %v1354
      %vm1416 = vcmp.lt.s32.totalorder %v1413, %v1356
      %v1417 = vsel %vm1416, %v1413, %v1356
      %vm1418 = vcmp.lt.s32.totalorder %v1415, %v1358
      %v1419 = vsel %vm1418, %v1415, %v1358
      %vm1420 = vcmp.lt.s32.totalorder %v1417, %v1360
      %v1421 = vsel %vm1420, %v1417, %v1360
      %vm1422 = vcmp.lt.s32.totalorder %v1419, %v1362
      %v1423 = vsel %vm1422, %v1419, %v1362
      %vm1424 = vcmp.lt.s32.totalorder %v1421, %v1364
      %v1425 = vsel %vm1424, %v1421, %v1364
      %vm1426 = vcmp.lt.s32.totalorder %v1423, %v1366
      %v1427 = vsel %vm1426, %v1423, %v1366
      %vm1428 = vcmp.lt.s32.totalorder %v1425, %v1368
      %v1429 = vsel %vm1428, %v1425, %v1368
      %vm1430 = vcmp.lt.s32.totalorder %v1427, %v1370
      %v1431 = vsel %vm1430, %v1427, %v1370
      %vm1432 = vcmp.lt.s32.totalorder %v1429, %v1372
      %v1433 = vsel %vm1432, %v1429, %v1372
      %vm1434 = vcmp.lt.s32.totalorder %v1431, %v1374
      %v1435 = vsel %vm1434, %v1431, %v1374
      %vm1436 = vcmp.lt.s32.totalorder %v1433, %v1435
      %v1437 = vsel %vm1436, %v1433, %v1435
      %v1438 = vrot.slane %v1437, 4
      %vm1439 = vcmp.lt.s32.totalorder %v1437, %v1438
      %v1440 = vsel %vm1439, %v1437, %v1438
      %v1441 = vrot.slane %v1440, 2
      %vm1442 = vcmp.lt.s32.totalorder %v1440, %v1441
      %v1443 = vsel %vm1442, %v1440, %v1441
      %v1444 = vrot.slane %v1443, 1
      %vm1445 = vcmp.lt.s32.totalorder %v1443, %v1444
      %v1446 = vsel %vm1445, %v1443, %v1444
      %vm1447 = vcmp.lt.s32.totalorder %v1313, %v1317
      %v1448 = vsel %vm1447, %v1313, %v1317
      %vm1449 = vcmp.lt.s32.totalorder %v1315, %v1319
      %v1450 = vsel %vm1449, %v1315, %v1319
      %vm1451 = vcmp.lt.s32.totalorder %v1448, %v1321
      %v1452 = vsel %vm1451, %v1448, %v1321
      %vm1453 = vcmp.lt.s32.totalorder %v1450, %v1323
      %v1454 = vsel %vm1453, %v1450, %v1323
      %vm1455 = vcmp.lt.s32.totalorder %v1452, %v1325
      %v1456 = vsel %vm1455, %v1452, %v1325
      %vm1457 = vcmp.lt.s32.totalorder %v1454, %v1327
      %v1458 = vsel %vm1457, %v1454, %v1327
      %vm1459 = vcmp.lt.s32.totalorder %v1456, %v1329
      %v1460 = vsel %vm1459, %v1456, %v1329
      %vm1461 = vcmp.lt.s32.totalorder %v1458, %v1331
      %v1462 = vsel %vm1461, %v1458, %v1331
      %vm1463 = vcmp.lt.s32.totalorder %v1460, %v1333
      %v1464 = vsel %vm1463, %v1460, %v1333
      %vm1465 = vcmp.lt.s32.totalorder %v1462, %v1335
      %v1466 = vsel %vm1465, %v1462, %v1335
      %vm1467 = vcmp.lt.s32.totalorder %v1464, %v1337
      %v1468 = vsel %vm1467, %v1464, %v1337
      %vm1469 = vcmp.lt.s32.totalorder %v1466, %v1339
      %v1470 = vsel %vm1469, %v1466, %v1339
      %vm1471 = vcmp.lt.s32.totalorder %v1468, %v1341
      %v1472 = vsel %vm1471, %v1468, %v1341
      %vm1473 = vcmp.lt.s32.totalorder %v1470, %v1343
      %v1474 = vsel %vm1473, %v1470, %v1343
      %vm1475 = vcmp.lt.s32.totalorder %v1472, %v1345
      %v1476 = vsel %vm1475, %v1472, %v1345
      %vm1477 = vcmp.lt.s32.totalorder %v1474, %v1347
      %v1478 = vsel %vm1477, %v1474, %v1347
      %vm1479 = vcmp.lt.s32.totalorder %v1476, %v1349
      %v1480 = vsel %vm1479, %v1476, %v1349
      %vm1481 = vcmp.lt.s32.totalorder %v1478, %v1351
      %v1482 = vsel %vm1481, %v1478, %v1351
      %vm1483 = vcmp.lt.s32.totalorder %v1480, %v1353
      %v1484 = vsel %vm1483, %v1480, %v1353
      %vm1485 = vcmp.lt.s32.totalorder %v1482, %v1355
      %v1486 = vsel %vm1485, %v1482, %v1355
      %vm1487 = vcmp.lt.s32.totalorder %v1484, %v1357
      %v1488 = vsel %vm1487, %v1484, %v1357
      %vm1489 = vcmp.lt.s32.totalorder %v1486, %v1359
      %v1490 = vsel %vm1489, %v1486, %v1359
      %vm1491 = vcmp.lt.s32.totalorder %v1488, %v1361
      %v1492 = vsel %vm1491, %v1488, %v1361
      %vm1493 = vcmp.lt.s32.totalorder %v1490, %v1363
      %v1494 = vsel %vm1493, %v1490, %v1363
      %vm1495 = vcmp.lt.s32.totalorder %v1492, %v1365
      %v1496 = vsel %vm1495, %v1492, %v1365
      %vm1497 = vcmp.lt.s32.totalorder %v1494, %v1367
      %v1498 = vsel %vm1497, %v1494, %v1367
      %vm1499 = vcmp.lt.s32.totalorder %v1496, %v1369
      %v1500 = vsel %vm1499, %v1496, %v1369
      %vm1501 = vcmp.lt.s32.totalorder %v1498, %v1371
      %v1502 = vsel %vm1501, %v1498, %v1371
      %vm1503 = vcmp.lt.s32.totalorder %v1500, %v1373
      %v1504 = vsel %vm1503, %v1500, %v1373
      %vm1505 = vcmp.lt.s32.totalorder %v1502, %v1375
      %v1506 = vsel %vm1505, %v1502, %v1375
      %vm1507 = vcmp.lt.s32.totalorder %v1504, %v1506
      %v1508 = vsel %vm1507, %v1504, %v1506
      %v1509 = vrot.slane %v1508, 4
      %vm1510 = vcmp.lt.s32.totalorder %v1508, %v1509
      %v1511 = vsel %vm1510, %v1508, %v1509
      %v1512 = vrot.slane %v1511, 2
      %vm1513 = vcmp.lt.s32.totalorder %v1511, %v1512
      %v1514 = vsel %vm1513, %v1511, %v1512
      %v1515 = vrot.slane %v1514, 1
      %vm1516 = vcmp.lt.s32.totalorder %v1514, %v1515
      %v1517 = vsel %vm1516, %v1514, %v1515
      %vm1518 = vcmp.eq.s32.totalorder %v1142, %v1446
      %vm1519 = vcmp.eq.s32.totalorder %v1142, %v1517
      %vm1520 = vcmp.eq.s32.totalorder %v1143, %v1446
      %vm1521 = vcmp.eq.s32.totalorder %v1143, %v1517
      %vm1522 = vcmp.eq.s32.totalorder %v1144, %v1446
      %vm1523 = vcmp.eq.s32.totalorder %v1144, %v1517
      %vm1524 = vcmp.eq.s32.totalorder %v1145, %v1446
      %vm1525 = vcmp.eq.s32.totalorder %v1145, %v1517
      %vm1526 = vcmp.eq.s32.totalorder %v1146, %v1446
      %vm1527 = vcmp.eq.s32.totalorder %v1146, %v1517
      %vm1528 = vcmp.eq.s32.totalorder %v1147, %v1446
      %vm1529 = vcmp.eq.s32.totalorder %v1147, %v1517
      %vm1530 = vcmp.eq.s32.totalorder %v1148, %v1446
      %vm1531 = vcmp.eq.s32.totalorder %v1148, %v1517
      %vm1532 = vcmp.eq.s32.totalorder %v1149, %v1446
      %vm1533 = vcmp.eq.s32.totalorder %v1149, %v1517
      %vm1534 = vcmp.eq.s32.totalorder %v1150, %v1446
      %vm1535 = vcmp.eq.s32.totalorder %v1150, %v1517
      %vm1536 = vcmp.eq.s32.totalorder %v1151, %v1446
      %vm1537 = vcmp.eq.s32.totalorder %v1151, %v1517
      %vm1538 = vcmp.eq.s32.totalorder %v1152, %v1446
      %vm1539 = vcmp.eq.s32.totalorder %v1152, %v1517
      %vm1540 = vcmp.eq.s32.totalorder %v1153, %v1446
      %vm1541 = vcmp.eq.s32.totalorder %v1153, %v1517
      %vm1542 = vcmp.eq.s32.totalorder %v1154, %v1446
      %vm1543 = vcmp.eq.s32.totalorder %v1154, %v1517
      %vm1544 = vcmp.eq.s32.totalorder %v1155, %v1446
      %vm1545 = vcmp.eq.s32.totalorder %v1155, %v1517
      %vm1546 = vcmp.eq.s32.totalorder %v1156, %v1446
      %vm1547 = vcmp.eq.s32.totalorder %v1156, %v1517
      %vm1548 = vcmp.eq.s32.totalorder %v1157, %v1446
      %vm1549 = vcmp.eq.s32.totalorder %v1157, %v1517
      %vm1550 = vcmp.eq.s32.totalorder %v1158, %v1446
      %vm1551 = vcmp.eq.s32.totalorder %v1158, %v1517
      %vm1552 = vcmp.eq.s32.totalorder %v1159, %v1446
      %vm1553 = vcmp.eq.s32.totalorder %v1159, %v1517
      %vm1554 = vcmp.eq.s32.totalorder %v1160, %v1446
      %vm1555 = vcmp.eq.s32.totalorder %v1160, %v1517
      %vm1556 = vcmp.eq.s32.totalorder %v1161, %v1446
      %vm1557 = vcmp.eq.s32.totalorder %v1161, %v1517
      %vm1558 = vcmp.eq.s32.totalorder %v1162, %v1446
      %vm1559 = vcmp.eq.s32.totalorder %v1162, %v1517
      %vm1560 = vcmp.eq.s32.totalorder %v1163, %v1446
      %vm1561 = vcmp.eq.s32.totalorder %v1163, %v1517
      %vm1562 = vcmp.eq.s32.totalorder %v1164, %v1446
      %vm1563 = vcmp.eq.s32.totalorder %v1164, %v1517
      %vm1564 = vcmp.eq.s32.totalorder %v1165, %v1446
      %vm1565 = vcmp.eq.s32.totalorder %v1165, %v1517
      %vm1566 = vcmp.eq.s32.totalorder %v1166, %v1446
      %vm1567 = vcmp.eq.s32.totalorder %v1166, %v1517
      %vm1568 = vcmp.eq.s32.totalorder %v1167, %v1446
      %vm1569 = vcmp.eq.s32.totalorder %v1167, %v1517
      %vm1570 = vcmp.eq.s32.totalorder %v1168, %v1446
      %vm1571 = vcmp.eq.s32.totalorder %v1168, %v1517
      %vm1572 = vcmp.eq.s32.totalorder %v1169, %v1446
      %vm1573 = vcmp.eq.s32.totalorder %v1169, %v1517
      %vm1574 = vcmp.eq.s32.totalorder %v1170, %v1446
      %vm1575 = vcmp.eq.s32.totalorder %v1170, %v1517
      %vm1576 = vcmp.eq.s32.totalorder %v1171, %v1446
      %vm1577 = vcmp.eq.s32.totalorder %v1171, %v1517
      %vm1578 = vcmp.eq.s32.totalorder %v1172, %v1446
      %vm1579 = vcmp.eq.s32.totalorder %v1172, %v1517
      %vm1580 = vcmp.eq.s32.totalorder %v1173, %v1446
      %vm1581 = vcmp.eq.s32.totalorder %v1173, %v1517
      %v1582 = vsel %vm1518, 1, 0
      %v1583 = vsel %vm1519, 1, 0
      %v1584 = vsel %vm1520, 1, 0
      %v1585 = vsel %vm1521, 1, 0
      %v1586 = vsel %vm1522, 1, 0
      %v1587 = vsel %vm1523, 1, 0
      %v1588 = vsel %vm1524, 1, 0
      %v1589 = vsel %vm1525, 1, 0
      %v1590 = vsel %vm1526, 1, 0
      %v1591 = vsel %vm1527, 1, 0
      %v1592 = vsel %vm1528, 1, 0
      %v1593 = vsel %vm1529, 1, 0
      %v1594 = vsel %vm1530, 1, 0
      %v1595 = vsel %vm1531, 1, 0
      %v1596 = vsel %vm1532, 1, 0
      %v1597 = vsel %vm1533, 1, 0
      %v1598 = vsel %vm1534, 1, 0
      %v1599 = vsel %vm1535, 1, 0
      %v1600 = vsel %vm1536, 1, 0
      %v1601 = vsel %vm1537, 1, 0
      %v1602 = vsel %vm1538, 1, 0
      %v1603 = vsel %vm1539, 1, 0
      %v1604 = vsel %vm1540, 1, 0
      %v1605 = vsel %vm1541, 1, 0
      %v1606 = vsel %vm1542, 1, 0
      %v1607 = vsel %vm1543, 1, 0
      %v1608 = vsel %vm1544, 1, 0
      %v1609 = vsel %vm1545, 1, 0
      %v1610 = vsel %vm1546, 1, 0
      %v1611 = vsel %vm1547, 1, 0
      %v1612 = vsel %vm1548, 1, 0
      %v1613 = vsel %vm1549, 1, 0
      %v1614 = vsel %vm1550, 1, 0
      %v1615 = vsel %vm1551, 1, 0
      %v1616 = vsel %vm1552, 1, 0
      %v1617 = vsel %vm1553, 1, 0
      %v1618 = vsel %vm1554, 1, 0
      %v1619 = vsel %vm1555, 1, 0
      %v1620 = vsel %vm1556, 1, 0
      %v1621 = vsel %vm1557, 1, 0
      %v1622 = vsel %vm1558, 1, 0
      %v1623 = vsel %vm1559, 1, 0
      %v1624 = vsel %vm1560, 1, 0
      %v1625 = vsel %vm1561, 1, 0
      %v1626 = vsel %vm1562, 1, 0
      %v1627 = vsel %vm1563, 1, 0
      %v1628 = vsel %vm1564, 1, 0
      %v1629 = vsel %vm1565, 1, 0
      %v1630 = vsel %vm1566, 1, 0
      %v1631 = vsel %vm1567, 1, 0
      %v1632 = vsel %vm1568, 1, 0
      %v1633 = vsel %vm1569, 1, 0
      %v1634 = vsel %vm1570, 1, 0
      %v1635 = vsel %vm1571, 1, 0
      %v1636 = vsel %vm1572, 1, 0
      %v1637 = vsel %vm1573, 1, 0
      %v1638 = vsel %vm1574, 1, 0
      %v1639 = vsel %vm1575, 1, 0
      %v1640 = vsel %vm1576, 1, 0
      %v1641 = vsel %vm1577, 1, 0
      %v1642 = vsel %vm1578, 1, 0
      %v1643 = vsel %vm1579, 1, 0
      %v1644 = vsel %vm1580, 1, 0
      %v1645 = vsel %vm1581, 1, 0
      %v1646 = vcvt.s32.f32 %v1582
      %v1647 = vcvt.s32.f32 %v1583
      %v1648 = vcvt.s32.f32 %v1584
      %v1649 = vcvt.s32.f32 %v1585
      %v1650 = vcvt.s32.f32 %v1586
      %v1651 = vcvt.s32.f32 %v1587
      %v1652 = vcvt.s32.f32 %v1588
      %v1653 = vcvt.s32.f32 %v1589
      %v1654 = vcvt.s32.f32 %v1590
      %v1655 = vcvt.s32.f32 %v1591
      %v1656 = vcvt.s32.f32 %v1592
      %v1657 = vcvt.s32.f32 %v1593
      %v1658 = vcvt.s32.f32 %v1594
      %v1659 = vcvt.s32.f32 %v1595
      %v1660 = vcvt.s32.f32 %v1596
      %v1661 = vcvt.s32.f32 %v1597
      %v1662 = vcvt.s32.f32 %v1598
      %v1663 = vcvt.s32.f32 %v1599
      %v1664 = vcvt.s32.f32 %v1600
      %v1665 = vcvt.s32.f32 %v1601
      %v1666 = vcvt.s32.f32 %v1602
      %v1667 = vcvt.s32.f32 %v1603
      %v1668 = vcvt.s32.f32 %v1604
      %v1669 = vcvt.s32.f32 %v1605
      %v1670 = vcvt.s32.f32 %v1606
      %v1671 = vcvt.s32.f32 %v1607
      %v1672 = vcvt.s32.f32 %v1608
      %v1673 = vcvt.s32.f32 %v1609
      %v1674 = vcvt.s32.f32 %v1610
      %v1675 = vcvt.s32.f32 %v1611
      %v1676 = vcvt.s32.f32 %v1612
      %v1677 = vcvt.s32.f32 %v1613
      %v1678 = vcvt.s32.f32 %v1614
      %v1679 = vcvt.s32.f32 %v1615
      %v1680 = vcvt.s32.f32 %v1616
      %v1681 = vcvt.s32.f32 %v1617
      %v1682 = vcvt.s32.f32 %v1618
      %v1683 = vcvt.s32.f32 %v1619
      %v1684 = vcvt.s32.f32 %v1620
      %v1685 = vcvt.s32.f32 %v1621
      %v1686 = vcvt.s32.f32 %v1622
      %v1687 = vcvt.s32.f32 %v1623
      %v1688 = vcvt.s32.f32 %v1624
      %v1689 = vcvt.s32.f32 %v1625
      %v1690 = vcvt.s32.f32 %v1626
      %v1691 = vcvt.s32.f32 %v1627
      %v1692 = vcvt.s32.f32 %v1628
      %v1693 = vcvt.s32.f32 %v1629
      %v1694 = vcvt.s32.f32 %v1630
      %v1695 = vcvt.s32.f32 %v1631
      %v1696 = vcvt.s32.f32 %v1632
      %v1697 = vcvt.s32.f32 %v1633
      %v1698 = vcvt.s32.f32 %v1634
      %v1699 = vcvt.s32.f32 %v1635
      %v1700 = vcvt.s32.f32 %v1636
      %v1701 = vcvt.s32.f32 %v1637
      %v1702 = vcvt.s32.f32 %v1638
      %v1703 = vcvt.s32.f32 %v1639
      %v1704 = vcvt.s32.f32 %v1640
      %v1705 = vcvt.s32.f32 %v1641
      %v1706 = vcvt.s32.f32 %v1642
      %v1707 = vcvt.s32.f32 %v1643
      %v1708 = vcvt.s32.f32 %v1644
      %v1709 = vcvt.s32.f32 %v1645
      %1710 = vmatprep.subr.mxu0 %v1677
      %1711 = vmatpush1.msra.mxu0 %v1676
      %1712 = vmatprep.subr.mxu0 %v1675
      %1713 = vmatpush1.msra.mxu0 %v1674
      %1714 = vmatprep.subr.mxu0 %v1673
      %1715 = vmatpush1.msra.mxu0 %v1672
      %1716 = vmatprep.subr.mxu0 %v1671
      %1717 = vmatpush1.msra.mxu0 %v1670
      %1718 = vmatprep.subr.mxu0 %v1669
      %1719 = vmatpush1.msra.mxu0 %v1668
      %1720 = vmatprep.subr.mxu0 %v1667
      %1721 = vmatpush1.msra.mxu0 %v1666
      %1722 = vmatprep.subr.mxu0 %v1665
      %1723 = vmatpush1.msra.mxu0 %v1664
      %1724 = vmatprep.subr.mxu0 %v1663
      %1725 = vmatpush1.msra.mxu0 %v1662
      %1726 = vmatprep.subr.mxu0 %v1661
      %1727 = vmatpush1.msra.mxu0 %v1660
      %1728 = vmatprep.subr.mxu0 %v1659
      %1729 = vmatpush1.msra.mxu0 %v1658
      %1730 = vmatprep.subr.mxu0 %v1657
      %1731 = vmatpush1.msra.mxu0 %v1656
      %1732 = vmatprep.subr.mxu0 %v1655
      %1733 = vmatpush1.msra.mxu0 %v1654
      %1734 = vmatprep.subr.mxu0 %v1653
      %1735 = vmatpush1.msra.mxu0 %v1652
      %1736 = vmatprep.subr.mxu0 %v1651
      %1737 = vmatpush1.msra.mxu0 %v1650
      %1738 = vmatprep.subr.mxu0 %v1649
      %1739 = vmatpush1.msra.mxu0 %v1648
      %1740 = vmatprep.subr.mxu0 %v1647
      %1741 = vmatpush1.msra.mxu0 %v1646
      %1742 = vmatprep.subr.mxu0 %v1709
      %1743 = vmatpush2.msra.mxu0 %v1708
      %1744 = vmatprep.subr.mxu0 %v1707
      %1745 = vmatpush2.msra.mxu0 %v1706
      %1746 = vmatprep.subr.mxu0 %v1705
      %1747 = vmatpush2.msra.mxu0 %v1704
      %1748 = vmatprep.subr.mxu0 %v1703
      %1749 = vmatpush2.msra.mxu0 %v1702
      %1750 = vmatprep.subr.mxu0 %v1701
      %1751 = vmatpush2.msra.mxu0 %v1700
      %1752 = vmatprep.subr.mxu0 %v1699
      %1753 = vmatpush2.msra.mxu0 %v1698
      %1754 = vmatprep.subr.mxu0 %v1697
      %1755 = vmatpush2.msra.mxu0 %v1696
      %1756 = vmatprep.subr.mxu0 %v1695
      %1757 = vmatpush2.msra.mxu0 %v1694
      %1758 = vmatprep.subr.mxu0 %v1693
      %1759 = vmatpush2.msra.mxu0 %v1692
      %1760 = vmatprep.subr.mxu0 %v1691
      %1761 = vmatpush2.msra.mxu0 %v1690
      %1762 = vmatprep.subr.mxu0 %v1689
      %1763 = vmatpush2.msra.mxu0 %v1688
      %1764 = vmatprep.subr.mxu0 %v1687
      %1765 = vmatpush2.msra.mxu0 %v1686
      %1766 = vmatprep.subr.mxu0 %v1685
      %1767 = vmatpush2.msra.mxu0 %v1684
      %1768 = vmatprep.subr.mxu0 %v1683
      %1769 = vmatpush2.msra.mxu0 %v1682
      %1770 = vmatprep.subr.mxu0 %v1681
      %1771 = vmatpush2.msra.mxu0 %v1680
      %1772 = vmatprep.subr.mxu0 %v1679
      %1773 = vmatpush2.msra.mxu0 %v1678
      %1774 = vmatprep.mubr.f32.mxu0 %v359
      %1775 = vmatmul.mubr.f32.gmra.mxu0 %v356
      %v1776 = vpop.f32.mrf.mxu0
      %v1777 = vadd.f32 0.0, %v1776
      %v1778 = vpop.f32.mrf.mxu0
      %v1779 = vadd.f32 0.0, %v1778
      %1780 = vdwg.mxu0
      %v1781 = vld [vmem:[#allocation2] sm:$0x3]
      %v1783 = vlaneseq
      %v1784 = vshrl.u32 %v1783, 7
      %v1785 = vsub.s32 0, %v1784
      %v1786 = vrot.slane %v1781, %v1785
      %v1787 = vlaneseq
      %v1788 = vshrl.u32 %v1787, 7
      %v1789 = vsub.s32 1, %v1788
      %v1790 = vrot.slane %v1781, %v1789
      %vm1793 = vcmp.gt.f32.partialorder %v1210, %v1786
      %vm1794 = vcmp.gt.f32.partialorder %v1247, %v1790
      %v1795 = vsel %vm1793, %v1210, %v1786
      %v1796 = vsel %vm1794, %v1247, %v1790
      %v1799 = vcombine.low %v1795, %v1796
      %v1801 = vunpack.c.l.s4 1966171168
      %v1802 = vunpack.c.0.s8 %v1801
      %v1803 = vlaneseq
      %v1804 = vshrl.u32 %v1803, 7
      %v1805 = vsub.s32 %v1802, %v1804
      %v1806 = vrot.slane %v1799, %v1805
      %v1808 = vunpack.c.l.s4 1966171168
      %v1809 = vunpack.c.0.s8 %v1808
      %v1810 = vlaneseq
      %v1811 = vshrl.u32 %v1810, 7
      %v1812 = vsub.s32 %v1809, %v1811
      %v1813 = vrot.slane %v1806, %v1812
      %v1815 = vlaneseq
      %vm1816 = vcmp.ge.s32.totalorder %v1815, 0
      %vm1817 = vcmp.lt.s32.totalorder %v1815, 256
      %vm1818 = vmand %vm1816, %vm1817
      %1819 = vst.msk [vmem:[#allocation2] sm:$0x3] %vm1818, %v1813
      %v1820 = vld [vmem:[#allocation3] sm:$0xff]
      %v1821 = vsel %vm1793, 1, 0
      %v1822 = vsel %vm1794, 1, 0
      %v1823 = vlaneseq
      %v1824 = vshrl.u32 %v1823, 7
      %v1825 = vsub.s32 0, %v1824
      %v1826 = vrot.slane %v1821, %v1825
      %v1827 = vlaneseq
      %v1828 = vshrl.u32 %v1827, 7
      %v1829 = vsub.s32 0, %v1828
      %v1830 = vrot.slane %v1822, %v1829
      %vm1831 = vcmp.eq.s32.totalorder %v1826, 1
      %vm1832 = vcmp.eq.s32.totalorder %v1830, 1
      %v1834 = vcombine.high %v1820, %v1820
      %v1836 = vsel %vm1831, %v1777, %v1820
      %v1837 = vsel %vm1832, %v1779, %v1834
      %v1840 = vcombine.low %v1836, %v1837
      %1842 = vst [vmem:[#allocation3] sm:$0xff] %v1840
      %v1843 = vmax.f32 %v951, %v963
      %v1844 = vmax.f32 %v957, %v969
      %v1845 = vmax.f32 %v1843, %v975
      %v1846 = vmax.f32 %v1844, %v981
      %v1847 = vmax.f32 %v1845, %v987
      %v1848 = vmax.f32 %v1846, %v993
      %v1849 = vmax.f32 %v1847, %v999
      %v1850 = vmax.f32 %v1848, %v1005
      %v1851 = vmax.f32 %v1849, %v1011
      %v1852 = vmax.f32 %v1850, %v1017
      %v1853 = vmax.f32 %v1851, %v1023
      %v1854 = vmax.f32 %v1852, %v1029
      %v1855 = vmax.f32 %v1853, %v1035
      %v1856 = vmax.f32 %v1854, %v1041
      %v1857 = vmax.f32 %v1855, %v1047
      %v1858 = vmax.f32 %v1856, %v1053
      %v1859 = vmax.f32 %v1857, %v1059
      %v1860 = vmax.f32 %v1858, %v1065
      %v1861 = vmax.f32 %v1859, %v1071
      %v1862 = vmax.f32 %v1860, %v1077
      %v1863 = vmax.f32 %v1861, %v1083
      %v1864 = vmax.f32 %v1862, %v1089
      %v1865 = vmax.f32 %v1863, %v1095
      %v1866 = vmax.f32 %v1864, %v1101
      %v1867 = vmax.f32 %v1865, %v1107
      %v1868 = vmax.f32 %v1866, %v1113
      %v1869 = vmax.f32 %v1867, %v1119
      %v1870 = vmax.f32 %v1868, %v1125
      %v1871 = vmax.f32 %v1869, %v1131
      %v1872 = vmax.f32 %v1870, %v1137
      %v1873 = vmax.f32 %v1871, %v1872
      %v1874 = vrot.slane %v1873, 4
      %v1875 = vmax.f32 %v1873, %v1874
      %v1876 = vrot.slane %v1875, 2
      %v1877 = vmax.f32 %v1875, %v1876
      %v1878 = vrot.slane %v1877, 1
      %v1879 = vmax.f32 %v1877, %v1878
      %v1880 = vmax.f32 %v953, %v965
      %v1881 = vmax.f32 %v959, %v971
      %v1882 = vmax.f32 %v1880, %v977
      %v1883 = vmax.f32 %v1881, %v983
      %v1884 = vmax.f32 %v1882, %v989
      %v1885 = vmax.f32 %v1883, %v995
      %v1886 = vmax.f32 %v1884, %v1001
      %v1887 = vmax.f32 %v1885, %v1007
      %v1888 = vmax.f32 %v1886, %v1013
      %v1889 = vmax.f32 %v1887, %v1019
      %v1890 = vmax.f32 %v1888, %v1025
      %v1891 = vmax.f32 %v1889, %v1031
      %v1892 = vmax.f32 %v1890, %v1037
      %v1893 = vmax.f32 %v1891, %v1043
      %v1894 = vmax.f32 %v1892, %v1049
      %v1895 = vmax.f32 %v1893, %v1055
      %v1896 = vmax.f32 %v1894, %v1061
      %v1897 = vmax.f32 %v1895, %v1067
      %v1898 = vmax.f32 %v1896, %v1073
      %v1899 = vmax.f32 %v1897, %v1079
      %v1900 = vmax.f32 %v1898, %v1085
      %v1901 = vmax.f32 %v1899, %v1091
      %v1902 = vmax.f32 %v1900, %v1097
      %v1903 = vmax.f32 %v1901, %v1103
      %v1904 = vmax.f32 %v1902, %v1109
      %v1905 = vmax.f32 %v1903, %v1115
      %v1906 = vmax.f32 %v1904, %v1121
      %v1907 = vmax.f32 %v1905, %v1127
      %v1908 = vmax.f32 %v1906, %v1133
      %v1909 = vmax.f32 %v1907, %v1139
      %v1910 = vmax.f32 %v1908, %v1909
      %v1911 = vrot.slane %v1910, 4
      %v1912 = vmax.f32 %v1910, %v1911
      %v1913 = vrot.slane %v1912, 2
      %v1914 = vmax.f32 %v1912, %v1913
      %v1915 = vrot.slane %v1914, 1
      %v1916 = vmax.f32 %v1914, %v1915
      %vm1917 = vcmp.eq.f32.partialorder %v951, %v1879
      %vm1918 = vcmp.eq.f32.partialorder %v953, %v1916
      %vm1919 = vcmp.eq.f32.partialorder %v957, %v1879
      %vm1920 = vcmp.eq.f32.partialorder %v959, %v1916
      %vm1921 = vcmp.eq.f32.partialorder %v963, %v1879
      %vm1922 = vcmp.eq.f32.partialorder %v965, %v1916
      %vm1923 = vcmp.eq.f32.partialorder %v969, %v1879
      %vm1924 = vcmp.eq.f32.partialorder %v971, %v1916
      %vm1925 = vcmp.eq.f32.partialorder %v975, %v1879
      %vm1926 = vcmp.eq.f32.partialorder %v977, %v1916
      %vm1927 = vcmp.eq.f32.partialorder %v981, %v1879
      %vm1928 = vcmp.eq.f32.partialorder %v983, %v1916
      %vm1929 = vcmp.eq.f32.partialorder %v987, %v1879
      %vm1930 = vcmp.eq.f32.partialorder %v989, %v1916
      %vm1931 = vcmp.eq.f32.partialorder %v993, %v1879
      %vm1932 = vcmp.eq.f32.partialorder %v995, %v1916
      %vm1933 = vcmp.eq.f32.partialorder %v999, %v1879
      %vm1934 = vcmp.eq.f32.partialorder %v1001, %v1916
      %vm1935 = vcmp.eq.f32.partialorder %v1005, %v1879
      %vm1936 = vcmp.eq.f32.partialorder %v1007, %v1916
      %vm1937 = vcmp.eq.f32.partialorder %v1011, %v1879
      %vm1938 = vcmp.eq.f32.partialorder %v1013, %v1916
      %vm1939 = vcmp.eq.f32.partialorder %v1017, %v1879
      %vm1940 = vcmp.eq.f32.partialorder %v1019, %v1916
      %vm1941 = vcmp.eq.f32.partialorder %v1023, %v1879
      %vm1942 = vcmp.eq.f32.partialorder %v1025, %v1916
      %vm1943 = vcmp.eq.f32.partialorder %v1029, %v1879
      %vm1944 = vcmp.eq.f32.partialorder %v1031, %v1916
      %vm1945 = vcmp.eq.f32.partialorder %v1035, %v1879
      %vm1946 = vcmp.eq.f32.partialorder %v1037, %v1916
      %vm1947 = vcmp.eq.f32.partialorder %v1041, %v1879
      %vm1948 = vcmp.eq.f32.partialorder %v1043, %v1916
      %vm1949 = vcmp.eq.f32.partialorder %v1047, %v1879
      %vm1950 = vcmp.eq.f32.partialorder %v1049, %v1916
      %vm1951 = vcmp.eq.f32.partialorder %v1053, %v1879
      %vm1952 = vcmp.eq.f32.partialorder %v1055, %v1916
      %vm1953 = vcmp.eq.f32.partialorder %v1059, %v1879
      %vm1954 = vcmp.eq.f32.partialorder %v1061, %v1916
      %vm1955 = vcmp.eq.f32.partialorder %v1065, %v1879
      %vm1956 = vcmp.eq.f32.partialorder %v1067, %v1916
      %vm1957 = vcmp.eq.f32.partialorder %v1071, %v1879
      %vm1958 = vcmp.eq.f32.partialorder %v1073, %v1916
      %vm1959 = vcmp.eq.f32.partialorder %v1077, %v1879
      %vm1960 = vcmp.eq.f32.partialorder %v1079, %v1916
      %vm1961 = vcmp.eq.f32.partialorder %v1083, %v1879
      %vm1962 = vcmp.eq.f32.partialorder %v1085, %v1916
      %vm1963 = vcmp.eq.f32.partialorder %v1089, %v1879
      %vm1964 = vcmp.eq.f32.partialorder %v1091, %v1916
      %vm1965 = vcmp.eq.f32.partialorder %v1095, %v1879
      %vm1966 = vcmp.eq.f32.partialorder %v1097, %v1916
      %vm1967 = vcmp.eq.f32.partialorder %v1101, %v1879
      %vm1968 = vcmp.eq.f32.partialorder %v1103, %v1916
      %vm1969 = vcmp.eq.f32.partialorder %v1107, %v1879
      %vm1970 = vcmp.eq.f32.partialorder %v1109, %v1916
      %vm1971 = vcmp.eq.f32.partialorder %v1113, %v1879
      %vm1972 = vcmp.eq.f32.partialorder %v1115, %v1916
      %vm1973 = vcmp.eq.f32.partialorder %v1119, %v1879
      %vm1974 = vcmp.eq.f32.partialorder %v1121, %v1916
      %vm1975 = vcmp.eq.f32.partialorder %v1125, %v1879
      %vm1976 = vcmp.eq.f32.partialorder %v1127, %v1916
      %vm1977 = vcmp.eq.f32.partialorder %v1131, %v1879
      %vm1978 = vcmp.eq.f32.partialorder %v1133, %v1916
      %vm1979 = vcmp.eq.f32.partialorder %v1137, %v1879
      %vm1980 = vcmp.eq.f32.partialorder %v1139, %v1916
      %v1981 = vsel %vm1917, %v1142, 256
      %v1982 = vsel %vm1918, %v1142, 256
      %v1983 = vsel %vm1919, %v1143, 256
      %v1984 = vsel %vm1920, %v1143, 256
      %v1985 = vsel %vm1921, %v1144, 256
      %v1986 = vsel %vm1922, %v1144, 256
      %v1987 = vsel %vm1923, %v1145, 256
      %v1988 = vsel %vm1924, %v1145, 256
      %v1989 = vsel %vm1925, %v1146, 256
      %v1990 = vsel %vm1926, %v1146, 256
      %v1991 = vsel %vm1927, %v1147, 256
      %v1992 = vsel %vm1928, %v1147, 256
      %v1993 = vsel %vm1929, %v1148, 256
      %v1994 = vsel %vm1930, %v1148, 256
      %v1995 = vsel %vm1931, %v1149, 256
      %v1996 = vsel %vm1932, %v1149, 256
      %v1997 = vsel %vm1933, %v1150, 256
      %v1998 = vsel %vm1934, %v1150, 256
      %v1999 = vsel %vm1935, %v1151, 256
      %v2000 = vsel %vm1936, %v1151, 256
      %v2001 = vsel %vm1937, %v1152, 256
      %v2002 = vsel %vm1938, %v1152, 256
      %v2003 = vsel %vm1939, %v1153, 256
      %v2004 = vsel %vm1940, %v1153, 256
      %v2005 = vsel %vm1941, %v1154, 256
      %v2006 = vsel %vm1942, %v1154, 256
      %v2007 = vsel %vm1943, %v1155, 256
      %v2008 = vsel %vm1944, %v1155, 256
      %v2009 = vsel %vm1945, %v1156, 256
      %v2010 = vsel %vm1946, %v1156, 256
      %v2011 = vsel %vm1947, %v1157, 256
      %v2012 = vsel %vm1948, %v1157, 256
      %v2013 = vsel %vm1949, %v1158, 256
      %v2014 = vsel %vm1950, %v1158, 256
      %v2015 = vsel %vm1951, %v1159, 256
      %v2016 = vsel %vm1952, %v1159, 256
      %v2017 = vsel %vm1953, %v1160, 256
      %v2018 = vsel %vm1954, %v1160, 256
      %v2019 = vsel %vm1955, %v1161, 256
      %v2020 = vsel %vm1956, %v1161, 256
      %v2021 = vsel %vm1957, %v1162, 256
      %v2022 = vsel %vm1958, %v1162, 256
      %v2023 = vsel %vm1959, %v1163, 256
      %v2024 = vsel %vm1960, %v1163, 256
      %v2025 = vsel %vm1961, %v1164, 256
      %v2026 = vsel %vm1962, %v1164, 256
      %v2027 = vsel %vm1963, %v1165, 256
      %v2028 = vsel %vm1964, %v1165, 256
      %v2029 = vsel %vm1965, %v1166, 256
      %v2030 = vsel %vm1966, %v1166, 256
      %v2031 = vsel %vm1967, %v1167, 256
      %v2032 = vsel %vm1968, %v1167, 256
      %v2033 = vsel %vm1969, %v1168, 256
      %v2034 = vsel %vm1970, %v1168, 256
      %v2035 = vsel %vm1971, %v1169, 256
      %v2036 = vsel %vm1972, %v1169, 256
      %v2037 = vsel %vm1973, %v1170, 256
      %v2038 = vsel %vm1974, %v1170, 256
      %v2039 = vsel %vm1975, %v1171, 256
      %v2040 = vsel %vm1976, %v1171, 256
      %v2041 = vsel %vm1977, %v1172, 256
      %v2042 = vsel %vm1978, %v1172, 256
      %v2043 = vsel %vm1979, %v1173, 256
      %v2044 = vsel %vm1980, %v1173, 256
      %vm2045 = vcmp.lt.s32.totalorder %v1981, %v1985
      %v2046 = vsel %vm2045, %v1981, %v1985
      %vm2047 = vcmp.lt.s32.totalorder %v1983, %v1987
      %v2048 = vsel %vm2047, %v1983, %v1987
      %vm2049 = vcmp.lt.s32.totalorder %v2046, %v1989
      %v2050 = vsel %vm2049, %v2046, %v1989
      %vm2051 = vcmp.lt.s32.totalorder %v2048, %v1991
      %v2052 = vsel %vm2051, %v2048, %v1991
      %vm2053 = vcmp.lt.s32.totalorder %v2050, %v1993
      %v2054 = vsel %vm2053, %v2050, %v1993
      %vm2055 = vcmp.lt.s32.totalorder %v2052, %v1995
      %v2056 = vsel %vm2055, %v2052, %v1995
      %vm2057 = vcmp.lt.s32.totalorder %v2054, %v1997
      %v2058 = vsel %vm2057, %v2054, %v1997
      %vm2059 = vcmp.lt.s32.totalorder %v2056, %v1999
      %v2060 = vsel %vm2059, %v2056, %v1999
      %vm2061 = vcmp.lt.s32.totalorder %v2058, %v2001
      %v2062 = vsel %vm2061, %v2058, %v2001
      %vm2063 = vcmp.lt.s32.totalorder %v2060, %v2003
      %v2064 = vsel %vm2063, %v2060, %v2003
      %vm2065 = vcmp.lt.s32.totalorder %v2062, %v2005
      %v2066 = vsel %vm2065, %v2062, %v2005
      %vm2067 = vcmp.lt.s32.totalorder %v2064, %v2007
      %v2068 = vsel %vm2067, %v2064, %v2007
      %vm2069 = vcmp.lt.s32.totalorder %v2066, %v2009
      %v2070 = vsel %vm2069, %v2066, %v2009
      %vm2071 = vcmp.lt.s32.totalorder %v2068, %v2011
      %v2072 = vsel %vm2071, %v2068, %v2011
      %vm2073 = vcmp.lt.s32.totalorder %v2070, %v2013
      %v2074 = vsel %vm2073, %v2070, %v2013
      %vm2075 = vcmp.lt.s32.totalorder %v2072, %v2015
      %v2076 = vsel %vm2075, %v2072, %v2015
      %vm2077 = vcmp.lt.s32.totalorder %v2074, %v2017
      %v2078 = vsel %vm2077, %v2074, %v2017
      %vm2079 = vcmp.lt.s32.totalorder %v2076, %v2019
      %v2080 = vsel %vm2079, %v2076, %v2019
      %vm2081 = vcmp.lt.s32.totalorder %v2078, %v2021
      %v2082 = vsel %vm2081, %v2078, %v2021
      %vm2083 = vcmp.lt.s32.totalorder %v2080, %v2023
      %v2084 = vsel %vm2083, %v2080, %v2023
      %vm2085 = vcmp.lt.s32.totalorder %v2082, %v2025
      %v2086 = vsel %vm2085, %v2082, %v2025
      %vm2087 = vcmp.lt.s32.totalorder %v2084, %v2027
      %v2088 = vsel %vm2087, %v2084, %v2027
      %vm2089 = vcmp.lt.s32.totalorder %v2086, %v2029
      %v2090 = vsel %vm2089, %v2086, %v2029
      %vm2091 = vcmp.lt.s32.totalorder %v2088, %v2031
      %v2092 = vsel %vm2091, %v2088, %v2031
      %vm2093 = vcmp.lt.s32.totalorder %v2090, %v2033
      %v2094 = vsel %vm2093, %v2090, %v2033
      %vm2095 = vcmp.lt.s32.totalorder %v2092, %v2035
      %v2096 = vsel %vm2095, %v2092, %v2035
      %vm2097 = vcmp.lt.s32.totalorder %v2094, %v2037
      %v2098 = vsel %vm2097, %v2094, %v2037
      %vm2099 = vcmp.lt.s32.totalorder %v2096, %v2039
      %v2100 = vsel %vm2099, %v2096, %v2039
      %vm2101 = vcmp.lt.s32.totalorder %v2098, %v2041
      %v2102 = vsel %vm2101, %v2098, %v2041
      %vm2103 = vcmp.lt.s32.totalorder %v2100, %v2043
      %v2104 = vsel %vm2103, %v2100, %v2043
      %vm2105 = vcmp.lt.s32.totalorder %v2102, %v2104
      %v2106 = vsel %vm2105, %v2102, %v2104
      %v2107 = vrot.slane %v2106, 4
      %vm2108 = vcmp.lt.s32.totalorder %v2106, %v2107
      %v2109 = vsel %vm2108, %v2106, %v2107
      %v2110 = vrot.slane %v2109, 2
      %vm2111 = vcmp.lt.s32.totalorder %v2109, %v2110
      %v2112 = vsel %vm2111, %v2109, %v2110
      %v2113 = vrot.slane %v2112, 1
      %vm2114 = vcmp.lt.s32.totalorder %v2112, %v2113
      %v2115 = vsel %vm2114, %v2112, %v2113
      %vm2116 = vcmp.lt.s32.totalorder %v1982, %v1986
      %v2117 = vsel %vm2116, %v1982, %v1986
      %vm2118 = vcmp.lt.s32.totalorder %v1984, %v1988
      %v2119 = vsel %vm2118, %v1984, %v1988
      %vm2120 = vcmp.lt.s32.totalorder %v2117, %v1990
      %v2121 = vsel %vm2120, %v2117, %v1990
      %vm2122 = vcmp.lt.s32.totalorder %v2119, %v1992
      %v2123 = vsel %vm2122, %v2119, %v1992
      %vm2124 = vcmp.lt.s32.totalorder %v2121, %v1994
      %v2125 = vsel %vm2124, %v2121, %v1994
      %vm2126 = vcmp.lt.s32.totalorder %v2123, %v1996
      %v2127 = vsel %vm2126, %v2123, %v1996
      %vm2128 = vcmp.lt.s32.totalorder %v2125, %v1998
      %v2129 = vsel %vm2128, %v2125, %v1998
      %vm2130 = vcmp.lt.s32.totalorder %v2127, %v2000
      %v2131 = vsel %vm2130, %v2127, %v2000
      %vm2132 = vcmp.lt.s32.totalorder %v2129, %v2002
      %v2133 = vsel %vm2132, %v2129, %v2002
      %vm2134 = vcmp.lt.s32.totalorder %v2131, %v2004
      %v2135 = vsel %vm2134, %v2131, %v2004
      %vm2136 = vcmp.lt.s32.totalorder %v2133, %v2006
      %v2137 = vsel %vm2136, %v2133, %v2006
      %vm2138 = vcmp.lt.s32.totalorder %v2135, %v2008
      %v2139 = vsel %vm2138, %v2135, %v2008
      %vm2140 = vcmp.lt.s32.totalorder %v2137, %v2010
      %v2141 = vsel %vm2140, %v2137, %v2010
      %vm2142 = vcmp.lt.s32.totalorder %v2139, %v2012
      %v2143 = vsel %vm2142, %v2139, %v2012
      %vm2144 = vcmp.lt.s32.totalorder %v2141, %v2014
      %v2145 = vsel %vm2144, %v2141, %v2014
      %vm2146 = vcmp.lt.s32.totalorder %v2143, %v2016
      %v2147 = vsel %vm2146, %v2143, %v2016
      %vm2148 = vcmp.lt.s32.totalorder %v2145, %v2018
      %v2149 = vsel %vm2148, %v2145, %v2018
      %vm2150 = vcmp.lt.s32.totalorder %v2147, %v2020
      %v2151 = vsel %vm2150, %v2147, %v2020
      %vm2152 = vcmp.lt.s32.totalorder %v2149, %v2022
      %v2153 = vsel %vm2152, %v2149, %v2022
      %vm2154 = vcmp.lt.s32.totalorder %v2151, %v2024
      %v2155 = vsel %vm2154, %v2151, %v2024
      %vm2156 = vcmp.lt.s32.totalorder %v2153, %v2026
      %v2157 = vsel %vm2156, %v2153, %v2026
      %vm2158 = vcmp.lt.s32.totalorder %v2155, %v2028
      %v2159 = vsel %vm2158, %v2155, %v2028
      %vm2160 = vcmp.lt.s32.totalorder %v2157, %v2030
      %v2161 = vsel %vm2160, %v2157, %v2030
      %vm2162 = vcmp.lt.s32.totalorder %v2159, %v2032
      %v2163 = vsel %vm2162, %v2159, %v2032
      %vm2164 = vcmp.lt.s32.totalorder %v2161, %v2034
      %v2165 = vsel %vm2164, %v2161, %v2034
      %vm2166 = vcmp.lt.s32.totalorder %v2163, %v2036
      %v2167 = vsel %vm2166, %v2163, %v2036
      %vm2168 = vcmp.lt.s32.totalorder %v2165, %v2038
      %v2169 = vsel %vm2168, %v2165, %v2038
      %vm2170 = vcmp.lt.s32.totalorder %v2167, %v2040
      %v2171 = vsel %vm2170, %v2167, %v2040
      %vm2172 = vcmp.lt.s32.totalorder %v2169, %v2042
      %v2173 = vsel %vm2172, %v2169, %v2042
      %vm2174 = vcmp.lt.s32.totalorder %v2171, %v2044
      %v2175 = vsel %vm2174, %v2171, %v2044
      %vm2176 = vcmp.lt.s32.totalorder %v2173, %v2175
      %v2177 = vsel %vm2176, %v2173, %v2175
      %v2178 = vrot.slane %v2177, 4
      %vm2179 = vcmp.lt.s32.totalorder %v2177, %v2178
      %v2180 = vsel %vm2179, %v2177, %v2178
      %v2181 = vrot.slane %v2180, 2
      %vm2182 = vcmp.lt.s32.totalorder %v2180, %v2181
      %v2183 = vsel %vm2182, %v2180, %v2181
      %v2184 = vrot.slane %v2183, 1
      %vm2185 = vcmp.lt.s32.totalorder %v2183, %v2184
      %v2186 = vsel %vm2185, %v2183, %v2184
      %vm2187 = vcmp.eq.s32.totalorder %v1142, %v2115
      %vm2188 = vcmp.eq.s32.totalorder %v1142, %v2186
      %vm2189 = vcmp.eq.s32.totalorder %v1143, %v2115
      %vm2190 = vcmp.eq.s32.totalorder %v1143, %v2186
      %vm2191 = vcmp.eq.s32.totalorder %v1144, %v2115
      %vm2192 = vcmp.eq.s32.totalorder %v1144, %v2186
      %vm2193 = vcmp.eq.s32.totalorder %v1145, %v2115
      %vm2194 = vcmp.eq.s32.totalorder %v1145, %v2186
      %vm2195 = vcmp.eq.s32.totalorder %v1146, %v2115
      %vm2196 = vcmp.eq.s32.totalorder %v1146, %v2186
      %vm2197 = vcmp.eq.s32.totalorder %v1147, %v2115
      %vm2198 = vcmp.eq.s32.totalorder %v1147, %v2186
      %vm2199 = vcmp.eq.s32.totalorder %v1148, %v2115
      %vm2200 = vcmp.eq.s32.totalorder %v1148, %v2186
      %vm2201 = vcmp.eq.s32.totalorder %v1149, %v2115
      %vm2202 = vcmp.eq.s32.totalorder %v1149, %v2186
      %vm2203 = vcmp.eq.s32.totalorder %v1150, %v2115
      %vm2204 = vcmp.eq.s32.totalorder %v1150, %v2186
      %vm2205 = vcmp.eq.s32.totalorder %v1151, %v2115
      %vm2206 = vcmp.eq.s32.totalorder %v1151, %v2186
      %vm2207 = vcmp.eq.s32.totalorder %v1152, %v2115
      %vm2208 = vcmp.eq.s32.totalorder %v1152, %v2186
      %vm2209 = vcmp.eq.s32.totalorder %v1153, %v2115
      %vm2210 = vcmp.eq.s32.totalorder %v1153, %v2186
      %vm2211 = vcmp.eq.s32.totalorder %v1154, %v2115
      %vm2212 = vcmp.eq.s32.totalorder %v1154, %v2186
      %vm2213 = vcmp.eq.s32.totalorder %v1155, %v2115
      %vm2214 = vcmp.eq.s32.totalorder %v1155, %v2186
      %vm2215 = vcmp.eq.s32.totalorder %v1156, %v2115
      %vm2216 = vcmp.eq.s32.totalorder %v1156, %v2186
      %vm2217 = vcmp.eq.s32.totalorder %v1157, %v2115
      %vm2218 = vcmp.eq.s32.totalorder %v1157, %v2186
      %vm2219 = vcmp.eq.s32.totalorder %v1158, %v2115
      %vm2220 = vcmp.eq.s32.totalorder %v1158, %v2186
      %vm2221 = vcmp.eq.s32.totalorder %v1159, %v2115
      %vm2222 = vcmp.eq.s32.totalorder %v1159, %v2186
      %vm2223 = vcmp.eq.s32.totalorder %v1160, %v2115
      %vm2224 = vcmp.eq.s32.totalorder %v1160, %v2186
      %vm2225 = vcmp.eq.s32.totalorder %v1161, %v2115
      %vm2226 = vcmp.eq.s32.totalorder %v1161, %v2186
      %vm2227 = vcmp.eq.s32.totalorder %v1162, %v2115
      %vm2228 = vcmp.eq.s32.totalorder %v1162, %v2186
      %vm2229 = vcmp.eq.s32.totalorder %v1163, %v2115
      %vm2230 = vcmp.eq.s32.totalorder %v1163, %v2186
      %vm2231 = vcmp.eq.s32.totalorder %v1164, %v2115
      %vm2232 = vcmp.eq.s32.totalorder %v1164, %v2186
      %vm2233 = vcmp.eq.s32.totalorder %v1165, %v2115
      %vm2234 = vcmp.eq.s32.totalorder %v1165, %v2186
      %vm2235 = vcmp.eq.s32.totalorder %v1166, %v2115
      %vm2236 = vcmp.eq.s32.totalorder %v1166, %v2186
      %vm2237 = vcmp.eq.s32.totalorder %v1167, %v2115
      %vm2238 = vcmp.eq.s32.totalorder %v1167, %v2186
      %vm2239 = vcmp.eq.s32.totalorder %v1168, %v2115
      %vm2240 = vcmp.eq.s32.totalorder %v1168, %v2186
      %vm2241 = vcmp.eq.s32.totalorder %v1169, %v2115
      %vm2242 = vcmp.eq.s32.totalorder %v1169, %v2186
      %vm2243 = vcmp.eq.s32.totalorder %v1170, %v2115
      %vm2244 = vcmp.eq.s32.totalorder %v1170, %v2186
      %vm2245 = vcmp.eq.s32.totalorder %v1171, %v2115
      %vm2246 = vcmp.eq.s32.totalorder %v1171, %v2186
      %vm2247 = vcmp.eq.s32.totalorder %v1172, %v2115
      %vm2248 = vcmp.eq.s32.totalorder %v1172, %v2186
      %vm2249 = vcmp.eq.s32.totalorder %v1173, %v2115
      %vm2250 = vcmp.eq.s32.totalorder %v1173, %v2186
      %v2251 = vsel %vm2187, 1, 0
      %v2252 = vsel %vm2188, 1, 0
      %v2253 = vsel %vm2189, 1, 0
      %v2254 = vsel %vm2190, 1, 0
      %v2255 = vsel %vm2191, 1, 0
      %v2256 = vsel %vm2192, 1, 0
      %v2257 = vsel %vm2193, 1, 0
      %v2258 = vsel %vm2194, 1, 0
      %v2259 = vsel %vm2195, 1, 0
      %v2260 = vsel %vm2196, 1, 0
      %v2261 = vsel %vm2197, 1, 0
      %v2262 = vsel %vm2198, 1, 0
      %v2263 = vsel %vm2199, 1, 0
      %v2264 = vsel %vm2200, 1, 0
      %v2265 = vsel %vm2201, 1, 0
      %v2266 = vsel %vm2202, 1, 0
      %v2267 = vsel %vm2203, 1, 0
      %v2268 = vsel %vm2204, 1, 0
      %v2269 = vsel %vm2205, 1, 0
      %v2270 = vsel %vm2206, 1, 0
      %v2271 = vsel %vm2207, 1, 0
      %v2272 = vsel %vm2208, 1, 0
      %v2273 = vsel %vm2209, 1, 0
      %v2274 = vsel %vm2210, 1, 0
      %v2275 = vsel %vm2211, 1, 0
      %v2276 = vsel %vm2212, 1, 0
      %v2277 = vsel %vm2213, 1, 0
      %v2278 = vsel %vm2214, 1, 0
      %v2279 = vsel %vm2215, 1, 0
      %v2280 = vsel %vm2216, 1, 0
      %v2281 = vsel %vm2217, 1, 0
      %v2282 = vsel %vm2218, 1, 0
      %v2283 = vsel %vm2219, 1, 0
      %v2284 = vsel %vm2220, 1, 0
      %v2285 = vsel %vm2221, 1, 0
      %v2286 = vsel %vm2222, 1, 0
      %v2287 = vsel %vm2223, 1, 0
      %v2288 = vsel %vm2224, 1, 0
      %v2289 = vsel %vm2225, 1, 0
      %v2290 = vsel %vm2226, 1, 0
      %v2291 = vsel %vm2227, 1, 0
      %v2292 = vsel %vm2228, 1, 0
      %v2293 = vsel %vm2229, 1, 0
      %v2294 = vsel %vm2230, 1, 0
      %v2295 = vsel %vm2231, 1, 0
      %v2296 = vsel %vm2232, 1, 0
      %v2297 = vsel %vm2233, 1, 0
      %v2298 = vsel %vm2234, 1, 0
      %v2299 = vsel %vm2235, 1, 0
      %v2300 = vsel %vm2236, 1, 0
      %v2301 = vsel %vm2237, 1, 0
      %v2302 = vsel %vm2238, 1, 0
      %v2303 = vsel %vm2239, 1, 0
      %v2304 = vsel %vm2240, 1, 0
      %v2305 = vsel %vm2241, 1, 0
      %v2306 = vsel %vm2242, 1, 0
      %v2307 = vsel %vm2243, 1, 0
      %v2308 = vsel %vm2244, 1, 0
      %v2309 = vsel %vm2245, 1, 0
      %v2310 = vsel %vm2246, 1, 0
      %v2311 = vsel %vm2247, 1, 0
      %v2312 = vsel %vm2248, 1, 0
      %v2313 = vsel %vm2249, 1, 0
      %v2314 = vsel %vm2250, 1, 0
      %v2315 = vcvt.s32.f32 %v2251
      %v2316 = vcvt.s32.f32 %v2252
      %v2317 = vcvt.s32.f32 %v2253
      %v2318 = vcvt.s32.f32 %v2254
      %v2319 = vcvt.s32.f32 %v2255
      %v2320 = vcvt.s32.f32 %v2256
      %v2321 = vcvt.s32.f32 %v2257
      %v2322 = vcvt.s32.f32 %v2258
      %v2323 = vcvt.s32.f32 %v2259
      %v2324 = vcvt.s32.f32 %v2260
      %v2325 = vcvt.s32.f32 %v2261
      %v2326 = vcvt.s32.f32 %v2262
      %v2327 = vcvt.s32.f32 %v2263
      %v2328 = vcvt.s32.f32 %v2264
      %v2329 = vcvt.s32.f32 %v2265
      %v2330 = vcvt.s32.f32 %v2266
      %v2331 = vcvt.s32.f32 %v2267
      %v2332 = vcvt.s32.f32 %v2268
      %v2333 = vcvt.s32.f32 %v2269
      %v2334 = vcvt.s32.f32 %v2270
      %v2335 = vcvt.s32.f32 %v2271
      %v2336 = vcvt.s32.f32 %v2272
      %v2337 = vcvt.s32.f32 %v2273
      %v2338 = vcvt.s32.f32 %v2274
      %v2339 = vcvt.s32.f32 %v2275
      %v2340 = vcvt.s32.f32 %v2276
      %v2341 = vcvt.s32.f32 %v2277
      %v2342 = vcvt.s32.f32 %v2278
      %v2343 = vcvt.s32.f32 %v2279
      %v2344 = vcvt.s32.f32 %v2280
      %v2345 = vcvt.s32.f32 %v2281
      %v2346 = vcvt.s32.f32 %v2282
      %v2347 = vcvt.s32.f32 %v2283
      %v2348 = vcvt.s32.f32 %v2284
      %v2349 = vcvt.s32.f32 %v2285
      %v2350 = vcvt.s32.f32 %v2286
      %v2351 = vcvt.s32.f32 %v2287
      %v2352 = vcvt.s32.f32 %v2288
      %v2353 = vcvt.s32.f32 %v2289
      %v2354 = vcvt.s32.f32 %v2290
      %v2355 = vcvt.s32.f32 %v2291
      %v2356 = vcvt.s32.f32 %v2292
      %v2357 = vcvt.s32.f32 %v2293
      %v2358 = vcvt.s32.f32 %v2294
      %v2359 = vcvt.s32.f32 %v2295
      %v2360 = vcvt.s32.f32 %v2296
      %v2361 = vcvt.s32.f32 %v2297
      %v2362 = vcvt.s32.f32 %v2298
      %v2363 = vcvt.s32.f32 %v2299
      %v2364 = vcvt.s32.f32 %v2300
      %v2365 = vcvt.s32.f32 %v2301
      %v2366 = vcvt.s32.f32 %v2302
      %v2367 = vcvt.s32.f32 %v2303
      %v2368 = vcvt.s32.f32 %v2304
      %v2369 = vcvt.s32.f32 %v2305
      %v2370 = vcvt.s32.f32 %v2306
      %v2371 = vcvt.s32.f32 %v2307
      %v2372 = vcvt.s32.f32 %v2308
      %v2373 = vcvt.s32.f32 %v2309
      %v2374 = vcvt.s32.f32 %v2310
      %v2375 = vcvt.s32.f32 %v2311
      %v2376 = vcvt.s32.f32 %v2312
      %v2377 = vcvt.s32.f32 %v2313
      %v2378 = vcvt.s32.f32 %v2314
      %2379 = vmatprep.subr.mxu0 %v2346
      %2380 = vmatpush1.msra.mxu0 %v2345
      %2381 = vmatprep.subr.mxu0 %v2344
      %2382 = vmatpush1.msra.mxu0 %v2343
      %2383 = vmatprep.subr.mxu0 %v2342
      %2384 = vmatpush1.msra.mxu0 %v2341
      %2385 = vmatprep.subr.mxu0 %v2340
      %2386 = vmatpush1.msra.mxu0 %v2339
      %2387 = vmatprep.subr.mxu0 %v2338
      %2388 = vmatpush1.msra.mxu0 %v2337
      %2389 = vmatprep.subr.mxu0 %v2336
      %2390 = vmatpush1.msra.mxu0 %v2335
      %2391 = vmatprep.subr.mxu0 %v2334
      %2392 = vmatpush1.msra.mxu0 %v2333
      %2393 = vmatprep.subr.mxu0 %v2332
      %2394 = vmatpush1.msra.mxu0 %v2331
      %2395 = vmatprep.subr.mxu0 %v2330
      %2396 = vmatpush1.msra.mxu0 %v2329
      %2397 = vmatprep.subr.mxu0 %v2328
      %2398 = vmatpush1.msra.mxu0 %v2327
      %2399 = vmatprep.subr.mxu0 %v2326
      %2400 = vmatpush1.msra.mxu0 %v2325
      %2401 = vmatprep.subr.mxu0 %v2324
      %2402 = vmatpush1.msra.mxu0 %v2323
      %2403 = vmatprep.subr.mxu0 %v2322
      %2404 = vmatpush1.msra.mxu0 %v2321
      %2405 = vmatprep.subr.mxu0 %v2320
      %2406 = vmatpush1.msra.mxu0 %v2319
      %2407 = vmatprep.subr.mxu0 %v2318
      %2408 = vmatpush1.msra.mxu0 %v2317
      %2409 = vmatprep.subr.mxu0 %v2316
      %2410 = vmatpush1.msra.mxu0 %v2315
      %2411 = vmatprep.subr.mxu0 %v2378
      %2412 = vmatpush2.msra.mxu0 %v2377
      %2413 = vmatprep.subr.mxu0 %v2376
      %2414 = vmatpush2.msra.mxu0 %v2375
      %2415 = vmatprep.subr.mxu0 %v2374
      %2416 = vmatpush2.msra.mxu0 %v2373
      %2417 = vmatprep.subr.mxu0 %v2372
      %2418 = vmatpush2.msra.mxu0 %v2371
      %2419 = vmatprep.subr.mxu0 %v2370
      %2420 = vmatpush2.msra.mxu0 %v2369
      %2421 = vmatprep.subr.mxu0 %v2368
      %2422 = vmatpush2.msra.mxu0 %v2367
      %2423 = vmatprep.subr.mxu0 %v2366
      %2424 = vmatpush2.msra.mxu0 %v2365
      %2425 = vmatprep.subr.mxu0 %v2364
      %2426 = vmatpush2.msra.mxu0 %v2363
      %2427 = vmatprep.subr.mxu0 %v2362
      %2428 = vmatpush2.msra.mxu0 %v2361
      %2429 = vmatprep.subr.mxu0 %v2360
      %2430 = vmatpush2.msra.mxu0 %v2359
      %2431 = vmatprep.subr.mxu0 %v2358
      %2432 = vmatpush2.msra.mxu0 %v2357
      %2433 = vmatprep.subr.mxu0 %v2356
      %2434 = vmatpush2.msra.mxu0 %v2355
      %2435 = vmatprep.subr.mxu0 %v2354
      %2436 = vmatpush2.msra.mxu0 %v2353
      %2437 = vmatprep.subr.mxu0 %v2352
      %2438 = vmatpush2.msra.mxu0 %v2351
      %2439 = vmatprep.subr.mxu0 %v2350
      %2440 = vmatpush2.msra.mxu0 %v2349
      %2441 = vmatprep.subr.mxu0 %v2348
      %2442 = vmatpush2.msra.mxu0 %v2347
      %2443 = vmatprep.mubr.f32.mxu0 %v362
      %2444 = vmatmul.mubr.f32.gmra.mxu0 %v357
      %v2445 = vpop.f32.mrf.mxu0
      %v2446 = vadd.f32 0.0, %v2445
      %v2447 = vpop.f32.mrf.mxu0
      %v2448 = vadd.f32 0.0, %v2447
      %2449 = vdwg.mxu0
      %s2450 = scalar_lea.vmem [#allocation2], 2
      %v2451 = vld [vmem:[%s2450] sm:$0x3]
      %v2453 = vlaneseq
      %v2454 = vshrl.u32 %v2453, 7
      %v2455 = vsub.s32 0, %v2454
      %v2456 = vrot.slane %v2451, %v2455
      %v2457 = vlaneseq
      %v2458 = vshrl.u32 %v2457, 7
      %v2459 = vsub.s32 1, %v2458
      %v2460 = vrot.slane %v2451, %v2459
      %vm2463 = vcmp.gt.f32.partialorder %v1879, %v2456
      %vm2464 = vcmp.gt.f32.partialorder %v1916, %v2460
      %v2465 = vsel %vm2463, %v1879, %v2456
      %v2466 = vsel %vm2464, %v1916, %v2460
      %v2469 = vcombine.low %v2465, %v2466
      %v2471 = vunpack.c.l.s4 1966171168
      %v2472 = vunpack.c.0.s8 %v2471
      %v2473 = vlaneseq
      %v2474 = vshrl.u32 %v2473, 7
      %v2475 = vsub.s32 %v2472, %v2474
      %v2476 = vrot.slane %v2469, %v2475
      %v2478 = vunpack.c.l.s4 1966171168
      %v2479 = vunpack.c.0.s8 %v2478
      %v2480 = vlaneseq
      %v2481 = vshrl.u32 %v2480, 7
      %v2482 = vsub.s32 %v2479, %v2481
      %v2483 = vrot.slane %v2476, %v2482
      %2485 = vst.msk [vmem:[%s2450] sm:$0x3] %vm1818, %v2483
      %s2486 = scalar_lea.vmem [#allocation3], 8
      %v2487 = vld [vmem:[%s2486] sm:$0xff]
      %v2488 = vsel %vm2463, 1, 0
      %v2489 = vsel %vm2464, 1, 0
      %v2490 = vlaneseq
      %v2491 = vshrl.u32 %v2490, 7
      %v2492 = vsub.s32 0, %v2491
      %v2493 = vrot.slane %v2488, %v2492
      %v2494 = vlaneseq
      %v2495 = vshrl.u32 %v2494, 7
      %v2496 = vsub.s32 0, %v2495
      %v2497 = vrot.slane %v2489, %v2496
      %vm2498 = vcmp.eq.s32.totalorder %v2493, 1
      %vm2499 = vcmp.eq.s32.totalorder %v2497, 1
      %v2501 = vcombine.high %v2487, %v2487
      %v2503 = vsel %vm2498, %v2446, %v2487
      %v2504 = vsel %vm2499, %v2448, %v2501
      %v2507 = vcombine.low %v2503, %v2504
      %2509 = vst [vmem:[%s2486] sm:$0xff] %v2507
      // Predicated region
      $region45: #{attention_block_forward.2} parent=39 // pred_check
        %p2510 = pneg %p343
      $region46: #{attention_block_forward.2} parent=39 // pred_check_branch
        %2512 = sbr.rel (%p2510) target = $region48
      $region47: #{attention_block_forward.2} parent=39 // pred_region
        %v2513 = vld [vmem:[%s3] sm:$0xf]
        %v2514 = vld [vmem:[%s4] sm:$0xf]
        %2516 = vset.pattern.permute.xlu0 0
        %2517 = vperm.xlu0 %2516, %v2514
        %v2518 = vpop.permute.xlu0 %2517
        %v2521 = vsel %vm494, %v2513, 0
        %2523 = vmatprep.subr.mxu0 0.0
        %2524 = vmatpush1.msra.mxu0 0.0
        %2525 = vmatprep.subr.mxu0 0.0
        %2526 = vmatpush1.msra.mxu0 0.0
        %2527 = vmatprep.subr.mxu0 0.0
        %2528 = vmatpush1.msra.mxu0 0.0
        %2529 = vmatprep.subr.mxu0 0.0
        %2530 = vmatpush1.msra.mxu0 0.0
        %2531 = vmatprep.subr.mxu0 0.0
        %2532 = vmatpush1.msra.mxu0 0.0
        %2533 = vmatprep.subr.mxu0 0.0
        %2534 = vmatpush1.msra.mxu0 0.0
        %2535 = vmatprep.subr.mxu0 0.0
        %2536 = vmatpush1.msra.mxu0 0.0
        %2537 = vmatprep.subr.mxu0 0.0
        %2538 = vmatpush1.msra.mxu0 0.0
        %2539 = vmatprep.subr.mxu0 0.0
        %2540 = vmatpush1.msra.mxu0 0.0
        %2541 = vmatprep.subr.mxu0 0.0
        %2542 = vmatpush1.msra.mxu0 0.0
        %2543 = vmatprep.subr.mxu0 0.0
        %2544 = vmatpush1.msra.mxu0 0.0
        %2545 = vmatprep.subr.mxu0 0.0
        %2546 = vmatpush1.msra.mxu0 0.0
        %2547 = vmatprep.subr.mxu0 0.0
        %2548 = vmatpush1.msra.mxu0 0.0
        %2549 = vmatprep.subr.mxu0 0.0
        %2550 = vmatpush1.msra.mxu0 0.0
        %2551 = vmatprep.subr.mxu0 0.0
        %2552 = vmatpush1.msra.mxu0 0.0
        %2553 = vmatprep.subr.mxu0 %v690
        %2554 = vmatpush1.msra.mxu0 %v688
        %2555 = vmatprep.subr.mxu0 0.0
        %2556 = vmatpush2.msra.mxu0 0.0
        %2557 = vmatprep.subr.mxu0 0.0
        %2558 = vmatpush2.msra.mxu0 0.0
        %2559 = vmatprep.subr.mxu0 0.0
        %2560 = vmatpush2.msra.mxu0 0.0
        %2561 = vmatprep.subr.mxu0 0.0
        %2562 = vmatpush2.msra.mxu0 0.0
        %2563 = vmatprep.subr.mxu0 0.0
        %2564 = vmatpush2.msra.mxu0 0.0
        %2565 = vmatprep.subr.mxu0 0.0
        %2566 = vmatpush2.msra.mxu0 0.0
        %2567 = vmatprep.subr.mxu0 0.0
        %2568 = vmatpush2.msra.mxu0 0.0
        %2569 = vmatprep.subr.mxu0 0.0
        %2570 = vmatpush2.msra.mxu0 0.0
        %2571 = vmatprep.subr.mxu0 0.0
        %2572 = vmatpush2.msra.mxu0 0.0
        %2573 = vmatprep.subr.mxu0 0.0
        %2574 = vmatpush2.msra.mxu0 0.0
        %2575 = vmatprep.subr.mxu0 0.0
        %2576 = vmatpush2.msra.mxu0 0.0
        %2577 = vmatprep.subr.mxu0 0.0
        %2578 = vmatpush2.msra.mxu0 0.0
        %2579 = vmatprep.subr.mxu0 0.0
        %2580 = vmatpush2.msra.mxu0 0.0
        %2581 = vmatprep.subr.mxu0 0.0
        %2582 = vmatpush2.msra.mxu0 0.0
        %2583 = vmatprep.subr.mxu0 0.0
        %2584 = vmatpush2.msra.mxu0 0.0
        %2585 = vmatprep.subr.mxu0 0.0
        %2586 = vmatpush2.msra.mxu0 0.0
        %2587 = vmatprep.mubr.f32.mxu0 0.0
        %2588 = vmatmul.mubr.f32.gmra.mxu0 %v2521
        %v2589 = vpop.f32.mrf.mxu0
        %v2590 = vadd.f32 %v2518, %v2589
        %v2591 = vpop.f32.mrf.mxu0
        %v2592 = vadd.f32 %v2518, %v2591
        %2593 = vdwg.mxu0
        %v2594 = vld [vmem:[#allocation3] sm:$0xff]
        %2595 = vrot.lane.b32.xlu0 %v2513, 124
        %v2596 = vpop.permute.xlu0 %2595
        %v2598 = vcombine.high %v2594, %v2594
        %v2599 = vsel %vm494, %v2596, 0
        %v2601 = vsel %vm687, %v2594, 0
        %v2603 = vsel %vm687, %v2598, 0
        %2605 = vmatprep.subr.mxu0 0.0
        %2606 = vmatpush1.msra.mxu0 0.0
        %2607 = vmatprep.subr.mxu0 0.0
        %2608 = vmatpush1.msra.mxu0 0.0
        %2609 = vmatprep.subr.mxu0 0.0
        %2610 = vmatpush1.msra.mxu0 0.0
        %2611 = vmatprep.subr.mxu0 0.0
        %2612 = vmatpush1.msra.mxu0 0.0
        %2613 = vmatprep.subr.mxu0 0.0
        %2614 = vmatpush1.msra.mxu0 0.0
        %2615 = vmatprep.subr.mxu0 0.0
        %2616 = vmatpush1.msra.mxu0 0.0
        %2617 = vmatprep.subr.mxu0 0.0
        %2618 = vmatpush1.msra.mxu0 0.0
        %2619 = vmatprep.subr.mxu0 0.0
        %2620 = vmatpush1.msra.mxu0 0.0
        %2621 = vmatprep.subr.mxu0 0.0
        %2622 = vmatpush1.msra.mxu0 0.0
        %2623 = vmatprep.subr.mxu0 0.0
        %2624 = vmatpush1.msra.mxu0 0.0
        %2625 = vmatprep.subr.mxu0 0.0
        %2626 = vmatpush1.msra.mxu0 0.0
        %2627 = vmatprep.subr.mxu0 0.0
        %2628 = vmatpush1.msra.mxu0 0.0
        %2629 = vmatprep.subr.mxu0 0.0
        %2630 = vmatpush1.msra.mxu0 0.0
        %2631 = vmatprep.subr.mxu0 0.0
        %2632 = vmatpush1.msra.mxu0 0.0
        %2633 = vmatprep.subr.mxu0 0.0
        %2634 = vmatpush1.msra.mxu0 0.0
        %2635 = vmatprep.subr.mxu0 %v2603
        %2636 = vmatpush1.msra.mxu0 %v2601
        %2637 = vmatprep.subr.mxu0 0.0
        %2638 = vmatpush2.msra.mxu0 0.0
        %2639 = vmatprep.subr.mxu0 0.0
        %2640 = vmatpush2.msra.mxu0 0.0
        %2641 = vmatprep.subr.mxu0 0.0
        %2642 = vmatpush2.msra.mxu0 0.0
        %2643 = vmatprep.subr.mxu0 0.0
        %2644 = vmatpush2.msra.mxu0 0.0
        %2645 = vmatprep.subr.mxu0 0.0
        %2646 = vmatpush2.msra.mxu0 0.0
        %2647 = vmatprep.subr.mxu0 0.0
        %2648 = vmatpush2.msra.mxu0 0.0
        %2649 = vmatprep.subr.mxu0 0.0
        %2650 = vmatpush2.msra.mxu0 0.0
        %2651 = vmatprep.subr.mxu0 0.0
        %2652 = vmatpush2.msra.mxu0 0.0
        %2653 = vmatprep.subr.mxu0 0.0
        %2654 = vmatpush2.msra.mxu0 0.0
        %2655 = vmatprep.subr.mxu0 0.0
        %2656 = vmatpush2.msra.mxu0 0.0
        %2657 = vmatprep.subr.mxu0 0.0
        %2658 = vmatpush2.msra.mxu0 0.0
        %2659 = vmatprep.subr.mxu0 0.0
        %2660 = vmatpush2.msra.mxu0 0.0
        %2661 = vmatprep.subr.mxu0 0.0
        %2662 = vmatpush2.msra.mxu0 0.0
        %2663 = vmatprep.subr.mxu0 0.0
        %2664 = vmatpush2.msra.mxu0 0.0
        %2665 = vmatprep.subr.mxu0 0.0
        %2666 = vmatpush2.msra.mxu0 0.0
        %2667 = vmatprep.subr.mxu0 0.0
        %2668 = vmatpush2.msra.mxu0 0.0
        %2669 = vmatprep.mubr.f32.mxu0 0.0
        %2670 = vmatmul.mubr.f32.gmra.mxu0 %v2599
        %v2671 = vpop.f32.mrf.mxu0
        %v2672 = vadd.f32 0.0, %v2671
        %v2673 = vpop.f32.mrf.mxu0
        %v2674 = vadd.f32 0.0, %v2673
        %2675 = vdwg.mxu0
        %v2676 = vadd.f32 %v2590, %v2672
        %v2677 = vadd.f32 %v2592, %v2674
        %v2678 = vld [vmem:[#allocation2] sm:$0x3]
        %v2680 = vlaneseq
        %v2681 = vshrl.u32 %v2680, 7
        %v2682 = vsub.s32 0, %v2681
        %v2683 = vrot.slane %v2678, %v2682
        %v2684 = vlaneseq
        %v2685 = vshrl.u32 %v2684, 7
        %v2686 = vsub.s32 1, %v2685
        %v2687 = vrot.slane %v2678, %v2686
        %v2690 = vmul.f32 %v2676, %v2683
        %v2691 = vmul.f32 %v2677, %v2687
        %v2694 = vcombine.low %v2690, %v2691
        %2696 = vst [vmem:[%s341] sm:$0xff] %v2694
        %v2697 = vld [vmem:[%s2486] sm:$0xff]
        %v2699 = vcombine.high %v2697, %v2697
        %v2700 = vsel %vm687, %v2697, 0
        %v2702 = vsel %vm687, %v2699, 0
        %2704 = vmatprep.subr.mxu0 0.0
        %2705 = vmatpush1.msra.mxu0 0.0
        %2706 = vmatprep.subr.mxu0 0.0
        %2707 = vmatpush1.msra.mxu0 0.0
        %2708 = vmatprep.subr.mxu0 0.0
        %2709 = vmatpush1.msra.mxu0 0.0
        %2710 = vmatprep.subr.mxu0 0.0
        %2711 = vmatpush1.msra.mxu0 0.0
        %2712 = vmatprep.subr.mxu0 0.0
        %2713 = vmatpush1.msra.mxu0 0.0
        %2714 = vmatprep.subr.mxu0 0.0
        %2715 = vmatpush1.msra.mxu0 0.0
        %2716 = vmatprep.subr.mxu0 0.0
        %2717 = vmatpush1.msra.mxu0 0.0
        %2718 = vmatprep.subr.mxu0 0.0
        %2719 = vmatpush1.msra.mxu0 0.0
        %2720 = vmatprep.subr.mxu0 0.0
        %2721 = vmatpush1.msra.mxu0 0.0
        %2722 = vmatprep.subr.mxu0 0.0
        %2723 = vmatpush1.msra.mxu0 0.0
        %2724 = vmatprep.subr.mxu0 0.0
        %2725 = vmatpush1.msra.mxu0 0.0
        %2726 = vmatprep.subr.mxu0 0.0
        %2727 = vmatpush1.msra.mxu0 0.0
        %2728 = vmatprep.subr.mxu0 0.0
        %2729 = vmatpush1.msra.mxu0 0.0
        %2730 = vmatprep.subr.mxu0 0.0
        %2731 = vmatpush1.msra.mxu0 0.0
        %2732 = vmatprep.subr.mxu0 0.0
        %2733 = vmatpush1.msra.mxu0 0.0
        %2734 = vmatprep.subr.mxu0 %v2702
        %2735 = vmatpush1.msra.mxu0 %v2700
        %2736 = vmatprep.subr.mxu0 0.0
        %2737 = vmatpush2.msra.mxu0 0.0
        %2738 = vmatprep.subr.mxu0 0.0
        %2739 = vmatpush2.msra.mxu0 0.0
        %2740 = vmatprep.subr.mxu0 0.0
        %2741 = vmatpush2.msra.mxu0 0.0
        %2742 = vmatprep.subr.mxu0 0.0
        %2743 = vmatpush2.msra.mxu0 0.0
        %2744 = vmatprep.subr.mxu0 0.0
        %2745 = vmatpush2.msra.mxu0 0.0
        %2746 = vmatprep.subr.mxu0 0.0
        %2747 = vmatpush2.msra.mxu0 0.0
        %2748 = vmatprep.subr.mxu0 0.0
        %2749 = vmatpush2.msra.mxu0 0.0
        %2750 = vmatprep.subr.mxu0 0.0
        %2751 = vmatpush2.msra.mxu0 0.0
        %2752 = vmatprep.subr.mxu0 0.0
        %2753 = vmatpush2.msra.mxu0 0.0
        %2754 = vmatprep.subr.mxu0 0.0
        %2755 = vmatpush2.msra.mxu0 0.0
        %2756 = vmatprep.subr.mxu0 0.0
        %2757 = vmatpush2.msra.mxu0 0.0
        %2758 = vmatprep.subr.mxu0 0.0
        %2759 = vmatpush2.msra.mxu0 0.0
        %2760 = vmatprep.subr.mxu0 0.0
        %2761 = vmatpush2.msra.mxu0 0.0
        %2762 = vmatprep.subr.mxu0 0.0
        %2763 = vmatpush2.msra.mxu0 0.0
        %2764 = vmatprep.subr.mxu0 0.0
        %2765 = vmatpush2.msra.mxu0 0.0
        %2766 = vmatprep.subr.mxu0 0.0
        %2767 = vmatpush2.msra.mxu0 0.0
        %2768 = vmatprep.mubr.f32.mxu0 0.0
        %2769 = vmatmul.mubr.f32.gmra.mxu0 %v2599
        %v2770 = vpop.f32.mrf.mxu0
        %v2771 = vadd.f32 0.0, %v2770
        %v2772 = vpop.f32.mrf.mxu0
        %v2773 = vadd.f32 0.0, %v2772
        %2774 = vdwg.mxu0
        %v2775 = vadd.f32 %v2590, %v2771
        %v2776 = vadd.f32 %v2592, %v2773
        %v2777 = vld [vmem:[%s2450] sm:$0x3]
        %v2779 = vlaneseq
        %v2780 = vshrl.u32 %v2779, 7
        %v2781 = vsub.s32 0, %v2780
        %v2782 = vrot.slane %v2777, %v2781
        %v2783 = vlaneseq
        %v2784 = vshrl.u32 %v2783, 7
        %v2785 = vsub.s32 1, %v2784
        %v2786 = vrot.slane %v2777, %v2785
        %v2789 = vmul.f32 %v2775, %v2782
        %v2790 = vmul.f32 %v2776, %v2786
        %v2793 = vcombine.low %v2789, %v2790
        %s2795 = scalar_lea.vmem %s341, 8
        %2796 = vst [vmem:[%s2795] sm:$0xff] %v2793
        %s2797 = scalar_lea.vmem %s341, 16
        %2798 = vst [vmem:[%s2797] sm:$0xff] %v355
      $region48: #{attention_block_forward.2} parent=39 // pred_fallthru
        _
      %s2799 = smul.u32 2, %s22
      %p2800 = scmp.lt.s32.totalorder %s21, 1
      %s2801 = scalar_select %p2800, %s21, 1
      %p2802 = scmp.lt.s32.totalorder %s2799, 1
      %s2803 = scalar_select %p2802, %s2799, 1
      %s2804 = smul.addr %s2801, 6
      %s2805 = sadd.s32 %s2803, %s2804
      %s2806 = smul.addr %s2805, 4
      %s2807 = scalar_lea.vmem %s5, %s2806
      // Predicated region
      $region49: #{attention_block_forward.2} parent=39 // pred_check
        %p2808 = pneg %p181
      $region50: #{attention_block_forward.2} parent=39 // pred_check_branch
        %2810 = sbr.rel (%p2808) target = $region52
      $region51: #{attention_block_forward.2} parent=39 // pred_region
        %s2811 = smul.u32 2, %s22
      $region52: #{attention_block_forward.2} parent=39 // pred_fallthru
        _
    $region40: #{attention_block_forward.2} parent=5 // pred_fallthru
      _
    %p2812 = scmp.le.s32.totalorder 2, %s11
    // Predicated region
    $region53: #{attention_block_forward.2} parent=5 // pred_check
      %p2813 = pneg %p2812
    $region54: #{attention_block_forward.2} parent=5 // pred_check_branch
      %2815 = sbr.rel (%p2813) target = $region56
    $region55: #{attention_block_forward.2} parent=5 // pred_region
      %s2816 = ssub.s32 %s11, 2
      // Predicated region
      $region57: #{attention_block_forward.2} parent=55 // pred_check
        %p2817 = pneg %p187
      $region58: #{attention_block_forward.2} parent=55 // pred_check_branch
        %2819 = sbr.rel (%p2817) target = $region60
      $region59: #{attention_block_forward.2} parent=55 // pred_region
        %s2820 = smul.u32 2, %s25
        %p2821 = scmp.lt.s32.totalorder %s24, 1
        %s2822 = scalar_select %p2821, %s24, 1
        %p2823 = scmp.lt.s32.totalorder %s2820, 1
        %s2824 = scalar_select %p2823, %s2820, 1
        %s2825 = smul.addr %s2822, 6
        %s2826 = sadd.s32 %s2824, %s2825
        %s2827 = smul.addr %s2826, 4
        %s2828 = scalar_lea.vmem %s5, %s2827
      $region60: #{attention_block_forward.2} parent=55 // pred_fallthru
        _
    $region56: #{attention_block_forward.2} parent=5 // pred_fallthru
      _
  $region6: #{attention_block_forward.2} parent=0 // loop_footer
    %s15 = sadd.s32 1, %s11
  $region7: #{attention_block_forward.2} parent=0 // loop_footer_branch
    %10 = sbr.rel target = $region3
  $region8: #{attention_block_forward.2} parent=0 // loop_exit
    _

// kernel: attention_block_forward.3
$region0: #{attention_block_forward.3}
  #allocation0 [shape = 'u32[]', space=smem, size = 0x4, offset = 0x4, fixed_abs, tag = 'smem constant byte address 0x4 - core index']
  #allocation1 [shape = 'u32[144,128]{1,0:T(1,128)}', space=vmem, size = 0x12000, scoped, tag = 'internal scratch']
  #allocation2 [shape = 'f32[12,326]{1,0:T(8,128)}', space=vmem, size = 0x6000, scoped, tag = 'scratch operand']
  %s0 = inlined_call_operand.vmem [shape: f32[2,12,16,16], index: 0, kind: input, shape index: {}]
  %s1 = inlined_call_operand.vmem [shape: f32[2,1,12,16], index: 1, kind: input, shape index: {}, may-alias: {1,2}]
  %s2 = inlined_call_operand.vmem [shape: f32[2,1,12,16], index: 2, kind: input, shape index: {}, may-alias: {1,2}]
  %s3 = inlined_call_operand.vmem [shape: f32[9,4,12], index: 3, kind: input, shape index: {}]
  %s4 = inlined_call_operand.vmem [shape: f32[4,1], index: 4, kind: input, shape index: {}]
  %s5 = inlined_call_operand.vmem [shape: f32[4,1], index: 5, kind: input, shape index: {}]
  %s6 = inlined_call_operand.vmem [shape: f32[2,1,4,288], index: 6, kind: output, shape index: {}]
  %s7 = sld [smem:[#allocation0]]
  $region57: #{attention_block_forward.3} parent=0
    _
  %s9 = ssub.s32 1, %s7
  %s10 = scalar_select 0, %s9, %s7
  loop: start=0, step=1, limit=4
  $region2: #{attention_block_forward.3} parent=0 // loop_pre_header
    _
  $region3: #{attention_block_forward.3} parent=0 // loop_header
    %s12 = sphi 0, %s16
    %p13 = scmp.ge.s32.totalorder %s12, 4
    %s19 = sphi 0, %s31
    %s20 = sphi 0, %s27
    %s21 = sphi 0, %s19
    %s22 = sphi 0, %s20
    %s23 = sphi 0, %s21
    %s24 = sphi 0, %s22
    %s36 = sphi 0, %s38
    %s39 = sphi 0, %s36
    %s40 = sphi 0, %s39
    %s56 = sphi 0, %s40
    %s64 = sphi 0, %s66
    %s67 = sphi 0, %s64
    %s68 = sphi 0, %s67
    %s84 = sphi 0, %s68
    %s92 = sphi 0, %s94
    %s95 = sphi 0, %s92
    %s96 = sphi 0, %s95
    %s112 = sphi 0, %s96
    %s116 = sphi 0, %s116
    %s118 = sphi 0, %s116
    %s119 = sphi 0, %s118
    %s133 = sphi 0, %s119
    %s137 = sphi 0, %s137
    %s139 = sphi 0, %s137
    %s140 = sphi 0, %s139
    %s154 = sphi 0, %s140
    %s158 = sphi 0, %s158
    %s160 = sphi 0, %s158
    %s161 = sphi 0, %s160
    %s175 = sphi 0, %s161
    %s183 = sphi 0, %s185
    %s186 = sphi 0, %s183
    %s187 = sphi 0, %s186
    %s203 = sphi 0, %s187
  $region4: #{attention_block_forward.3} parent=0 // loop_header_branch
    %15 = sbr.rel (%p13) target = $region8
  $region5: #{attention_block_forward.3} parent=0 // loop_body
    %s17 = ssub.s32 %s12, 1
    %s18 = ssub.s32 %s12, 2
    %s25 = sadd.s32 1, %s20
    %p26 = scmp.ge.s32.totalorder %s25, 1
    %s27 = scalar_select %p26, 0, %s25
    %s28 = sadd.s32 1, %s19
    %s29 = scalar_select %p26, %s28, %s19
    %p30 = scmp.ge.s32.totalorder %s29, 2
    %s31 = scalar_select %p30, 0, %s29
    %s32 = ssub.s32 %s19, %s31
    %s33 = ssub.s32 %s20, %s27
    %s34 = sor.u32 %s32, %s33
    %p35 = scmp.eq.s32.totalorder %s34, 0
    %s37 = sadd.s32 %s36, 1
    %s38 = scalar_select %p35, %s36, %s37
    %p41 = pneg %p35
    %p42 = scmp.eq.s32.totalorder %s12, 1
    %p43 = por %p41, %p42
    %p44 = scmp.ne.s32.totalorder %s36, %s39
    %p45 = scmp.eq.s32.totalorder %s12, 0
    %p46 = por %p44, %p45
    %p47 = scmp.ne.s32.totalorder %s36, %s39
    %p48 = scmp.eq.s32.totalorder %s17, 1
    %p49 = por %p47, %p48
    %p50 = scmp.ne.s32.totalorder %s39, %s40
    %p51 = scmp.eq.s32.totalorder %s17, 0
    %p52 = por %p50, %p51
    %p53 = scmp.ne.s32.totalorder %s39, %s40
    %p54 = scmp.eq.s32.totalorder %s18, 1
    %p55 = por %p53, %p54
    %p57 = scmp.ne.s32.totalorder %s40, %s56
    %p58 = scmp.eq.s32.totalorder %s18, 0
    %p59 = por %p57, %p58
    %s60 = ssub.s32 %s19, %s31
    %s61 = ssub.s32 %s20, %s27
    %s62 = sor.u32 %s60, %s61
    %p63 = scmp.eq.s32.totalorder %s62, 0
    %s65 = sadd.s32 %s64, 1
    %s66 = scalar_select %p63, %s64, %s65
    %p69 = pneg %p63
    %p70 = scmp.eq.s32.totalorder %s12, 1
    %p71 = por %p69, %p70
    %p72 = scmp.ne.s32.totalorder %s64, %s67
    %p73 = scmp.eq.s32.totalorder %s12, 0
    %p74 = por %p72, %p73
    %p75 = scmp.ne.s32.totalorder %s64, %s67
    %p76 = scmp.eq.s32.totalorder %s17, 1
    %p77 = por %p75, %p76
    %p78 = scmp.ne.s32.totalorder %s67, %s68
    %p79 = scmp.eq.s32.totalorder %s17, 0
    %p80 = por %p78, %p79
    %p81 = scmp.ne.s32.totalorder %s67, %s68
    %p82 = scmp.eq.s32.totalorder %s18, 1
    %p83 = por %p81, %p82
    %p85 = scmp.ne.s32.totalorder %s68, %s84
    %p86 = scmp.eq.s32.totalorder %s18, 0
    %p87 = por %p85, %p86
    %s88 = ssub.s32 %s19, %s31
    %s89 = ssub.s32 %s20, %s27
    %s90 = sor.u32 %s88, %s89
    %p91 = scmp.eq.s32.totalorder %s90, 0
    %s93 = sadd.s32 %s92, 1
    %s94 = scalar_select %p91, %s92, %s93
    %p97 = pneg %p91
    %p98 = scmp.eq.s32.totalorder %s12, 1
    %p99 = por %p97, %p98
    %p100 = scmp.ne.s32.totalorder %s92, %s95
    %p101 = scmp.eq.s32.totalorder %s12, 0
    %p102 = por %p100, %p101
    %p103 = scmp.ne.s32.totalorder %s92, %s95
    %p104 = scmp.eq.s32.totalorder %s17, 1
    %p105 = por %p103, %p104
    %p106 = scmp.ne.s32.totalorder %s95, %s96
    %p107 = scmp.eq.s32.totalorder %s17, 0
    %p108 = por %p106, %p107
    %p109 = scmp.ne.s32.totalorder %s95, %s96
    %p110 = scmp.eq.s32.totalorder %s18, 1
    %p111 = por %p109, %p110
    %p113 = scmp.ne.s32.totalorder %s96, %s112
    %p114 = scmp.eq.s32.totalorder %s18, 0
    %p115 = por %p113, %p114
    %s117 = sadd.s32 %s116, 1
    %p120 = scmp.eq.s32.totalorder %s12, 1
    %p121 = scmp.ne.s32.totalorder %s116, %s118
    %p122 = scmp.eq.s32.totalorder %s12, 0
    %p123 = por %p121, %p122
    %p124 = scmp.ne.s32.totalorder %s116, %s118
    %p125 = scmp.eq.s32.totalorder %s17, 1
    %p126 = por %p124, %p125
    %p127 = scmp.ne.s32.totalorder %s118, %s119
    %p128 = scmp.eq.s32.totalorder %s17, 0
    %p129 = por %p127, %p128
    %p130 = scmp.ne.s32.totalorder %s118, %s119
    %p131 = scmp.eq.s32.totalorder %s18, 1
    %p132 = por %p130, %p131
    %p134 = scmp.ne.s32.totalorder %s119, %s133
    %p135 = scmp.eq.s32.totalorder %s18, 0
    %p136 = por %p134, %p135
    %s138 = sadd.s32 %s137, 1
    %p141 = scmp.eq.s32.totalorder %s12, 1
    %p142 = scmp.ne.s32.totalorder %s137, %s139
    %p143 = scmp.eq.s32.totalorder %s12, 0
    %p144 = por %p142, %p143
    %p145 = scmp.ne.s32.totalorder %s137, %s139
    %p146 = scmp.eq.s32.totalorder %s17, 1
    %p147 = por %p145, %p146
    %p148 = scmp.ne.s32.totalorder %s139, %s140
    %p149 = scmp.eq.s32.totalorder %s17, 0
    %p150 = por %p148, %p149
    %p151 = scmp.ne.s32.totalorder %s139, %s140
    %p152 = scmp.eq.s32.totalorder %s18, 1
    %p153 = por %p151, %p152
    %p155 = scmp.ne.s32.totalorder %s140, %s154
    %p156 = scmp.eq.s32.totalorder %s18, 0
    %p157 = por %p155, %p156
    %s159 = sadd.s32 %s158, 1
    %p162 = scmp.eq.s32.totalorder %s12, 1
    %p163 = scmp.ne.s32.totalorder %s158, %s160
    %p164 = scmp.eq.s32.totalorder %s12, 0
    %p165 = por %p163, %p164
    %p166 = scmp.ne.s32.totalorder %s158, %s160
    %p167 = scmp.eq.s32.totalorder %s17, 1
    %p168 = por %p166, %p167
    %p169 = scmp.ne.s32.totalorder %s160, %s161
    %p170 = scmp.eq.s32.totalorder %s17, 0
    %p171 = por %p169, %p170
    %p172 = scmp.ne.s32.totalorder %s160, %s161
    %p173 = scmp.eq.s32.totalorder %s18, 1
    %p174 = por %p172, %p173
    %p176 = scmp.ne.s32.totalorder %s161, %s175
    %p177 = scmp.eq.s32.totalorder %s18, 0
    %p178 = por %p176, %p177
    %s179 = ssub.s32 %s19, %s31
    %s180 = ssub.s32 %s20, %s27
    %s181 = sor.u32 %s179, %s180
    %p182 = scmp.eq.s32.totalorder %s181, 0
    %s184 = sadd.s32 %s183, 1
    %s185 = scalar_select %p182, %s183, %s184
    %p188 = pneg %p182
    %p189 = scmp.eq.s32.totalorder %s12, 1
    %p190 = por %p188, %p189
    %p191 = scmp.ne.s32.totalorder %s183, %s186
    %p192 = scmp.eq.s32.totalorder %s12, 0
    %p193 = por %p191, %p192
    %p194 = scmp.ne.s32.totalorder %s183, %s186
    %p195 = scmp.eq.s32.totalorder %s17, 1
    %p196 = por %p194, %p195
    %p197 = scmp.ne.s32.totalorder %s186, %s187
    %p198 = scmp.eq.s32.totalorder %s17, 0
    %p199 = por %p197, %p198
    %p200 = scmp.ne.s32.totalorder %s186, %s187
    %p201 = scmp.eq.s32.totalorder %s18, 1
    %p202 = por %p200, %p201
    %p204 = scmp.ne.s32.totalorder %s187, %s203
    %p205 = scmp.eq.s32.totalorder %s18, 0
    %p206 = por %p204, %p205
    %p207 = scmp.le.s32.totalorder 1, %s12
    %p208 = scmp.lt.s32.totalorder %s12, 3
    %p209 = pnand %p207, %p208
    %p210 = pneg %p209
    // Predicated region
    $region9: #{attention_block_forward.3} parent=5 // pred_check
      _
    $region10: #{attention_block_forward.3} parent=5 // pred_check_branch
      %212 = sbr.rel (%p209) target = $region12
    $region11: #{attention_block_forward.3} parent=5 // pred_region
      %s213 = ssub.s32 %s12, 1
      // Predicated region
      $region13: #{attention_block_forward.3} parent=11 // pred_check
        %p214 = pneg %p129
      $region14: #{attention_block_forward.3} parent=11 // pred_check_branch
        %216 = sbr.rel (%p214) target = $region16
      $region15: #{attention_block_forward.3} parent=11 // pred_region
        _
      $region16: #{attention_block_forward.3} parent=11 // pred_fallthru
        _
      // Predicated region
      $region17: #{attention_block_forward.3} parent=11 // pred_check
        %p217 = pneg %p150
      $region18: #{attention_block_forward.3} parent=11 // pred_check_branch
        %219 = sbr.rel (%p217) target = $region20
      $region19: #{attention_block_forward.3} parent=11 // pred_region
        _
      $region20: #{attention_block_forward.3} parent=11 // pred_fallthru
        _
      // Predicated region
      $region21: #{attention_block_forward.3} parent=11 // pred_check
        %p220 = pneg %p171
      $region22: #{attention_block_forward.3} parent=11 // pred_check_branch
        %222 = sbr.rel (%p220) target = $region24
      $region23: #{attention_block_forward.3} parent=11 // pred_region
        _
      $region24: #{attention_block_forward.3} parent=11 // pred_fallthru
        _
    $region12: #{attention_block_forward.3} parent=5 // pred_fallthru
      _
    %p223 = scmp.lt.s32.totalorder %s12, 2
    // Predicated region
    $region25: #{attention_block_forward.3} parent=5 // pred_check
      %p224 = pneg %p223
    $region26: #{attention_block_forward.3} parent=5 // pred_check_branch
      %226 = sbr.rel (%p224) target = $region28
    $region27: #{attention_block_forward.3} parent=5 // pred_region
      // Predicated region
      $region29: #{attention_block_forward.3} parent=27 // pred_check
        %p227 = pneg %p46
      $region30: #{attention_block_forward.3} parent=27 // pred_check_branch
        %229 = sbr.rel (%p227) target = $region32
      $region31: #{attention_block_forward.3} parent=27 // pred_region
        %s230 = smul.u32 2, %s20
        %p231 = scmp.lt.s32.totalorder %s19, 1
        %s232 = scalar_select %p231, %s19, 1
        %p233 = scmp.lt.s32.totalorder %s230, 1
        %s234 = scalar_select %p233, %s230, 1
        %s235 = smul.addr %s232, 24
        %s236 = sadd.s32 %s234, %s235
        %s237 = smul.addr %s236, 8
        %s238 = scalar_lea.vmem %s0, %s237
        %s239 = smul.u32 2, %s20
      $region32: #{attention_block_forward.3} parent=27 // pred_fallthru
        _
      // Predicated region
      $region33: #{attention_block_forward.3} parent=27 // pred_check
        %p240 = pneg %p74
      $region34: #{attention_block_forward.3} parent=27 // pred_check_branch
        %242 = sbr.rel (%p240) target = $region36
      $region35: #{attention_block_forward.3} parent=27 // pred_region
        %p243 = scmp.lt.s32.totalorder %s19, 1
        %s244 = scalar_select %p243, %s19, 1
        %p245 = scmp.lt.s32.totalorder %s20, 0
        %s246 = scalar_select %p245, %s20, 0
        %s247 = smul.addr %s246, 2
        %s248 = smul.addr %s244, 2
        %s249 = sadd.s32 %s247, %s248
        %s250 = smul.addr %s249, 8
        %s251 = scalar_lea.vmem %s1, %s250
      $region36: #{attention_block_forward.3} parent=27 // pred_fallthru
        _
      // Predicated region
      $region37: #{attention_block_forward.3} parent=27 // pred_check
        %p252 = pneg %p102
      $region38: #{attention_block_forward.3} parent=27 // pred_check_branch
        %254 = sbr.rel (%p252) target = $region40
      $region39: #{attention_block_forward.3} parent=27 // pred_region
        %p255 = scmp.lt.s32.totalorder %s19, 1
        %s256 = scalar_select %p255, %s19, 1
        %p257 = scmp.lt.s32.totalorder %s20, 0
        %s258 = scalar_select %p257, %s20, 0
        %s259 = smul.addr %s258, 2
        %s260 = smul.addr %s256, 2
        %s261 = sadd.s32 %s259, %s260
        %s262 = smul.addr %s261, 8
        %s263 = scalar_lea.vmem %s2, %s262
      $region40: #{attention_block_forward.3} parent=27 // pred_fallthru
        _
    $region28: #{attention_block_forward.3} parent=5 // pred_fallthru
      _
    %p264 = scmp.le.s32.totalorder 1, %s12
    %p265 = scmp.lt.s32.totalorder %s12, 3
    %p266 = pnand %p264, %p265
    %p267 = pneg %p266
    // Predicated region
    $region41: #{attention_block_forward.3} parent=5 // pred_check
      _
    $region42: #{attention_block_forward.3} parent=5 // pred_check_branch
      %269 = sbr.rel (%p266) target = $region44
    $region43: #{attention_block_forward.3} parent=5 // pred_region
      %s270 = ssub.s32 %s12, 1
      %s271 = smul.u32 2, %s22
      %p272 = scmp.lt.s32.totalorder %s21, 1
      %s273 = scalar_select %p272, %s21, 1
      %p274 = scmp.lt.s32.totalorder %s271, 1
      %s275 = scalar_select %p274, %s271, 1
      %s276 = smul.addr %s273, 24
      %s277 = sadd.s32 %s275, %s276
      %s278 = smul.addr %s277, 8
      %s279 = scalar_lea.vmem %s0, %s278
      %p280 = pneg %p52
      %p281 = pneg %p49
      %p282 = scmp.lt.s32.totalorder %s21, 1
      %s283 = scalar_select %p282, %s21, 1
      %p284 = scmp.lt.s32.totalorder %s22, 0
      %s285 = scalar_select %p284, %s22, 0
      %s286 = smul.addr %s285, 2
      %s287 = smul.addr %s283, 2
      %s288 = sadd.s32 %s286, %s287
      %s289 = smul.addr %s288, 8
      %s290 = scalar_lea.vmem %s1, %s289
      %p291 = pneg %p80
      %p292 = pneg %p77
      %p293 = scmp.lt.s32.totalorder %s21, 1
      %s294 = scalar_select %p293, %s21, 1
      %p295 = scmp.lt.s32.totalorder %s22, 0
      %s296 = scalar_select %p295, %s22, 0
      %s297 = smul.addr %s296, 2
      %s298 = smul.addr %s294, 2
      %s299 = sadd.s32 %s297, %s298
      %s300 = smul.addr %s299, 8
      %s301 = scalar_lea.vmem %s2, %s300
      %p302 = pneg %p108
      %p303 = pneg %p105
      %p304 = pneg %p129
      %p305 = pneg %p126
      %p306 = pneg %p150
      %p307 = pneg %p147
      %p308 = pneg %p171
      %p309 = pneg %p168
      %p310 = pneg %p199
      %p311 = pneg %p196
      %p312 = scmp.lt.s32.totalorder %s21, 1
      %s313 = scalar_select %p312, %s21, 1
      %p314 = scmp.lt.s32.totalorder %s22, 0
      %s315 = scalar_select %p314, %s22, 0
      %s316 = smul.addr %s315, 3
      %s317 = smul.addr %s313, 3
      %s318 = sadd.s32 %s316, %s317
      %s319 = smul.addr %s318, 4
      %s320 = scalar_lea.vmem %s6, %s319
      %s321 = smul.u32 2, %s22
      %p322 = scmp.lt.s32.totalorder %s21, 1
      %s323 = scalar_select %p322, %s21, 1
      %p324 = scmp.lt.s32.totalorder %s321, 1
      %s325 = scalar_select %p324, %s321, 1
      %s326 = smul.addr %s323, 24
      %s327 = sadd.s32 %s325, %s326
      %s328 = smul.addr %s327, 8
      %s329 = scalar_lea.vmem %s0, %s328
      %s330 = smul.u32 2, %s22
      %p331 = scmp.lt.s32.totalorder %s21, 1
      %s332 = scalar_select %p331, %s21, 1
      %p333 = scmp.lt.s32.totalorder %s22, 0
      %s334 = scalar_select %p333, %s22, 0
      %s335 = smul.addr %s334, 2
      %s336 = smul.addr %s332, 2
      %s337 = sadd.s32 %s335, %s336
      %s338 = smul.addr %s337, 8
      %s339 = scalar_lea.vmem %s1, %s338
      %p340 = scmp.lt.s32.totalorder %s21, 1
      %s341 = scalar_select %p340, %s21, 1
      %p342 = scmp.lt.s32.totalorder %s22, 0
      %s343 = scalar_select %p342, %s22, 0
      %s344 = smul.addr %s343, 2
      %s345 = smul.addr %s341, 2
      %s346 = sadd.s32 %s344, %s345
      %s347 = smul.addr %s346, 8
      %s348 = scalar_lea.vmem %s2, %s347
      %p349 = scmp.lt.s32.totalorder %s21, 1
      %s350 = scalar_select %p349, %s21, 1
      %p351 = scmp.lt.s32.totalorder %s22, 0
      %s352 = scalar_select %p351, %s22, 0
      %s353 = smul.addr %s352, 3
      %s354 = smul.addr %s350, 3
      %s355 = sadd.s32 %s353, %s354
      %s356 = smul.addr %s355, 4
      %s357 = scalar_lea.vmem %s6, %s356
      %358 = vst [vmem:[#allocation2] sm:$0xff] 0.0
      %359 = vst [vmem:[#allocation2 + $0x8] sm:$0xff] 0.0
      %vm360 = vcmask 572416
      %361 = vst.msk [vmem:[#allocation2 + $0x10] sm:$0xff] %vm360, 0.0
      %362 = vst [vmem:[#allocation2 + $0x18] sm:$0xf] 0.0
      %363 = vst [vmem:[#allocation2 + $0x20] sm:$0xf] 0.0
      %vm364 = vcmask 568320
      %365 = vst.msk [vmem:[#allocation2 + $0x28] sm:$0xf] %vm364, 0.0
      %v366 = vld [vmem:[%s339] sm:$0xff]
      %v367 = vld [vmem:[%s339 + $0x8] sm:$0xf]
      %370 = vrot.lane.b32.xlu0 %v366, 2
      %v371 = vpop.permute.xlu0 %370
      %372 = vrot.lane.b32.xlu0 %v367, 2
      %v373 = vpop.permute.xlu0 %372
      %vm376 = vcmask 146448
      %377 = vst.msk [vmem:[#allocation2] sm:$0xff] %vm376, %v371
      %vm378 = vcmask 142352
      %379 = vst.msk [vmem:[#allocation2 + $0x18] sm:$0xf] %vm378, %v373
      %v380 = vld [vmem:[%s329] sm:$0x1]
      %v381 = vld [vmem:[%s329 + $0x10] sm:$0x1]
      %v382 = vld [vmem:[%s329 + $0x20] sm:$0x1]
      %v383 = vld [vmem:[%s329 + $0x30] sm:$0x1]
      %v384 = vld [vmem:[%s329 + $0x40] sm:$0x1]
      %v385 = vld [vmem:[%s329 + $0x50] sm:$0x1]
      %v386 = vld [vmem:[%s329 + $0x60] sm:$0x1]
      %v387 = vld [vmem:[%s329 + $0x70] sm:$0x1]
      %v388 = vld [vmem:[%s329 + $0x80] sm:$0x1]
      %v389 = vld [vmem:[%s329 + $0x90] sm:$0x1]
      %v390 = vld [vmem:[%s329 + $0xa0] sm:$0x1]
      %v391 = vld [vmem:[%s329 + $0xb0] sm:$0x1]
      %v404 = vrot.slane %v381, 7
      %vm405 = vcmask 1041409
      %v406 = vsel %vm405, %v404, %v380
      %v407 = vrot.slane %v382, 6
      %vm408 = vcmask 1042434
      %v409 = vsel %vm408, %v407, %v406
      %v410 = vrot.slane %v383, 5
      %vm411 = vcmask 1043459
      %v412 = vsel %vm411, %v410, %v409
      %v413 = vrot.slane %v384, 4
      %vm414 = vcmask 1044484
      %v415 = vsel %vm414, %v413, %v412
      %v416 = vrot.slane %v385, 3
      %vm417 = vcmask 1045509
      %v418 = vsel %vm417, %v416, %v415
      %v419 = vrot.slane %v386, 2
      %vm420 = vcmask 1046534
      %v421 = vsel %vm420, %v419, %v418
      %v422 = vrot.slane %v387, 1
      %vm423 = vcmask 1047559
      %v424 = vsel %vm423, %v422, %v421
      %v425 = vrot.slane %v389, 7
      %v426 = vsel %vm405, %v425, %v388
      %v427 = vrot.slane %v390, 6
      %v428 = vsel %vm408, %v427, %v426
      %v429 = vrot.slane %v391, 5
      %v430 = vsel %vm411, %v429, %v428
      %431 = vrot.lane.b32.xlu0 %v424, 20
      %v432 = vpop.permute.xlu0 %431
      %433 = vrot.lane.b32.xlu0 %v430, 20
      %v434 = vpop.permute.xlu0 %433
      %vm437 = vcmask 294048
      %438 = vst.msk [vmem:[#allocation2] sm:$0xff] %vm437, %v432
      %vm439 = vcmask 289952
      %440 = vst.msk [vmem:[#allocation2 + $0x18] sm:$0xf] %vm439, %v434
      %v441 = vld [vmem:[%s329 + $0x1] sm:$0x1]
      %v442 = vld [vmem:[%s329 + $0x11] sm:$0x1]
      %v443 = vld [vmem:[%s329 + $0x21] sm:$0x1]
      %v444 = vld [vmem:[%s329 + $0x31] sm:$0x1]
      %v445 = vld [vmem:[%s329 + $0x41] sm:$0x1]
      %v446 = vld [vmem:[%s329 + $0x51] sm:$0x1]
      %v447 = vld [vmem:[%s329 + $0x61] sm:$0x1]
      %v448 = vld [vmem:[%s329 + $0x71] sm:$0x1]
      %v449 = vld [vmem:[%s329 + $0x81] sm:$0x1]
      %v450 = vld [vmem:[%s329 + $0x91] sm:$0x1]
      %v451 = vld [vmem:[%s329 + $0xa1] sm:$0x1]
      %v452 = vld [vmem:[%s329 + $0xb1] sm:$0x1]
      %v465 = vrot.slane %v442, 7
      %v466 = vsel %vm405, %v465, %v441
      %v467 = vrot.slane %v443, 6
      %v468 = vsel %vm408, %v467, %v466
      %v469 = vrot.slane %v444, 5
      %v470 = vsel %vm411, %v469, %v468
      %v471 = vrot.slane %v445, 4
      %v472 = vsel %vm414, %v471, %v470
      %v473 = vrot.slane %v446, 3
      %v474 = vsel %vm417, %v473, %v472
      %v475 = vrot.slane %v447, 2
      %v476 = vsel %vm420, %v475, %v474
      %v477 = vrot.slane %v448, 1
      %v478 = vsel %vm423, %v477, %v476
      %v479 = vrot.slane %v450, 7
      %v480 = vsel %vm405, %v479, %v449
      %v481 = vrot.slane %v451, 6
      %v482 = vsel %vm408, %v481, %v480
      %v483 = vrot.slane %v452, 5
      %v484 = vsel %vm411, %v483, %v482
      %485 = vrot.lane.b32.xlu0 %v478, 38
      %v486 = vpop.permute.xlu0 %485
      %487 = vrot.lane.b32.xlu0 %v484, 38
      %v488 = vpop.permute.xlu0 %487
      %vm491 = vcmask 441648
      %492 = vst.msk [vmem:[#allocation2] sm:$0xff] %vm491, %v486
      %vm493 = vcmask 437552
      %494 = vst.msk [vmem:[#allocation2 + $0x18] sm:$0xf] %vm493, %v488
      %v495 = vld [vmem:[%s329 + $0x2] sm:$0x1]
      %v496 = vld [vmem:[%s329 + $0x12] sm:$0x1]
      %v497 = vld [vmem:[%s329 + $0x22] sm:$0x1]
      %v498 = vld [vmem:[%s329 + $0x32] sm:$0x1]
      %v499 = vld [vmem:[%s329 + $0x42] sm:$0x1]
      %v500 = vld [vmem:[%s329 + $0x52] sm:$0x1]
      %v501 = vld [vmem:[%s329 + $0x62] sm:$0x1]
      %v502 = vld [vmem:[%s329 + $0x72] sm:$0x1]
      %v503 = vld [vmem:[%s329 + $0x82] sm:$0x1]
      %v504 = vld [vmem:[%s329 + $0x92] sm:$0x1]
      %v505 = vld [vmem:[%s329 + $0xa2] sm:$0x1]
      %v506 = vld [vmem:[%s329 + $0xb2] sm:$0x1]
      %v519 = vrot.slane %v496, 7
      %v520 = vsel %vm405, %v519, %v495
      %v521 = vrot.slane %v497, 6
      %v522 = vsel %vm408, %v521, %v520
      %v523 = vrot.slane %v498, 5
      %v524 = vsel %vm411, %v523, %v522
      %v525 = vrot.slane %v499, 4
      %v526 = vsel %vm414, %v525, %v524
      %v527 = vrot.slane %v500, 3
      %v528 = vsel %vm417, %v527, %v526
      %v529 = vrot.slane %v501, 2
      %v530 = vsel %vm420, %v529, %v528
      %v531 = vrot.slane %v502, 1
      %v532 = vsel %vm423, %v531, %v530
      %v533 = vrot.slane %v504, 7
      %v534 = vsel %vm405, %v533, %v503
      %v535 = vrot.slane %v505, 6
      %v536 = vsel %vm408, %v535, %v534
      %v537 = vrot.slane %v506, 5
      %v538 = vsel %vm411, %v537, %v536
      %539 = vrot.lane.b32.xlu0 %v532, 56
      %v540 = vpop.permute.xlu0 %539
      %541 = vrot.lane.b32.xlu0 %v538, 56
      %v542 = vpop.permute.xlu0 %541
      %vm545 = vcmask 589248
      %546 = vst.msk [vmem:[#allocation2] sm:$0xff] %vm545, %v540
      %vm547 = vcmask 585152
      %548 = vst.msk [vmem:[#allocation2 + $0x18] sm:$0xf] %vm547, %v542
      %v549 = vld [vmem:[%s329 + $0x3] sm:$0x1]
      %v550 = vld [vmem:[%s329 + $0x13] sm:$0x1]
      %v551 = vld [vmem:[%s329 + $0x23] sm:$0x1]
      %v552 = vld [vmem:[%s329 + $0x33] sm:$0x1]
      %v553 = vld [vmem:[%s329 + $0x43] sm:$0x1]
      %v554 = vld [vmem:[%s329 + $0x53] sm:$0x1]
      %v555 = vld [vmem:[%s329 + $0x63] sm:$0x1]
      %v556 = vld [vmem:[%s329 + $0x73] sm:$0x1]
      %v557 = vld [vmem:[%s329 + $0x83] sm:$0x1]
      %v558 = vld [vmem:[%s329 + $0x93] sm:$0x1]
      %v559 = vld [vmem:[%s329 + $0xa3] sm:$0x1]
      %v560 = vld [vmem:[%s329 + $0xb3] sm:$0x1]
      %v573 = vrot.slane %v550, 7
      %v574 = vsel %vm405, %v573, %v549
      %v575 = vrot.slane %v551, 6
      %v576 = vsel %vm408, %v575, %v574
      %v577 = vrot.slane %v552, 5
      %v578 = vsel %vm411, %v577, %v576
      %v579 = vrot.slane %v553, 4
      %v580 = vsel %vm414, %v579, %v578
      %v581 = vrot.slane %v554, 3
      %v582 = vsel %vm417, %v581, %v580
      %v583 = vrot.slane %v555, 2
      %v584 = vsel %vm420, %v583, %v582
      %v585 = vrot.slane %v556, 1
      %v586 = vsel %vm423, %v585, %v584
      %v587 = vrot.slane %v558, 7
      %v588 = vsel %vm405, %v587, %v557
      %v589 = vrot.slane %v559, 6
      %v590 = vsel %vm408, %v589, %v588
      %v591 = vrot.slane %v560, 5
      %v592 = vsel %vm411, %v591, %v590
      %593 = vrot.lane.b32.xlu0 %v586, 74
      %v594 = vpop.permute.xlu0 %593
      %595 = vrot.lane.b32.xlu0 %v592, 74
      %v596 = vpop.permute.xlu0 %595
      %vm599 = vcmask 736848
      %600 = vst.msk [vmem:[#allocation2] sm:$0xff] %vm599, %v594
      %vm601 = vcmask 732752
      %602 = vst.msk [vmem:[#allocation2 + $0x18] sm:$0xf] %vm601, %v596
      %v603 = vld [vmem:[%s329 + $0x4] sm:$0x1]
      %v604 = vld [vmem:[%s329 + $0x14] sm:$0x1]
      %v605 = vld [vmem:[%s329 + $0x24] sm:$0x1]
      %v606 = vld [vmem:[%s329 + $0x34] sm:$0x1]
      %v607 = vld [vmem:[%s329 + $0x44] sm:$0x1]
      %v608 = vld [vmem:[%s329 + $0x54] sm:$0x1]
      %v609 = vld [vmem:[%s329 + $0x64] sm:$0x1]
      %v610 = vld [vmem:[%s329 + $0x74] sm:$0x1]
      %v611 = vld [vmem:[%s329 + $0x84] sm:$0x1]
      %v612 = vld [vmem:[%s329 + $0x94] sm:$0x1]
      %v613 = vld [vmem:[%s329 + $0xa4] sm:$0x1]
      %v614 = vld [vmem:[%s329 + $0xb4] sm:$0x1]
      %v627 = vrot.slane %v604, 7
      %v628 = vsel %vm405, %v627, %v603
      %v629 = vrot.slane %v605, 6
      %v630 = vsel %vm408, %v629, %v628
      %v631 = vrot.slane %v606, 5
      %v632 = vsel %vm411, %v631, %v630
      %v633 = vrot.slane %v607, 4
      %v634 = vsel %vm414, %v633, %v632
      %v635 = vrot.slane %v608, 3
      %v636 = vsel %vm417, %v635, %v634
      %v637 = vrot.slane %v609, 2
      %v638 = vsel %vm420, %v637, %v636
      %v639 = vrot.slane %v610, 1
      %v640 = vsel %vm423, %v639, %v638
      %v641 = vrot.slane %v612, 7
      %v642 = vsel %vm405, %v641, %v611
      %v643 = vrot.slane %v613, 6
      %v644 = vsel %vm408, %v643, %v642
      %v645 = vrot.slane %v614, 5
      %v646 = vsel %vm411, %v645, %v644
      %647 = vrot.lane.b32.xlu0 %v640, 92
      %v648 = vpop.permute.xlu0 %647
      %649 = vrot.lane.b32.xlu0 %v646, 92
      %v650 = vpop.permute.xlu0 %649
      %vm653 = vcmask 884448
      %654 = vst.msk [vmem:[#allocation2] sm:$0xff] %vm653, %v648
      %vm655 = vcmask 880352
      %656 = vst.msk [vmem:[#allocation2 + $0x18] sm:$0xf] %vm655, %v650
      %v657 = vld [vmem:[%s329 + $0x5] sm:$0x1]
      %v658 = vld [vmem:[%s329 + $0x15] sm:$0x1]
      %v659 = vld [vmem:[%s329 + $0x25] sm:$0x1]
      %v660 = vld [vmem:[%s329 + $0x35] sm:$0x1]
      %v661 = vld [vmem:[%s329 + $0x45] sm:$0x1]
      %v662 = vld [vmem:[%s329 + $0x55] sm:$0x1]
      %v663 = vld [vmem:[%s329 + $0x65] sm:$0x1]
      %v664 = vld [vmem:[%s329 + $0x75] sm:$0x1]
      %v665 = vld [vmem:[%s329 + $0x85] sm:$0x1]
      %v666 = vld [vmem:[%s329 + $0x95] sm:$0x1]
      %v667 = vld [vmem:[%s329 + $0xa5] sm:$0x1]
      %v668 = vld [vmem:[%s329 + $0xb5] sm:$0x1]
      %v681 = vrot.slane %v658, 7
      %v682 = vsel %vm405, %v681, %v657
      %v683 = vrot.slane %v659, 6
      %v684 = vsel %vm408, %v683, %v682
      %v685 = vrot.slane %v660, 5
      %v686 = vsel %vm411, %v685, %v684
      %v687 = vrot.slane %v661, 4
      %v688 = vsel %vm414, %v687, %v686
      %v689 = vrot.slane %v662, 3
      %v690 = vsel %vm417, %v689, %v688
      %v691 = vrot.slane %v663, 2
      %v692 = vsel %vm420, %v691, %v690
      %v693 = vrot.slane %v664, 1
      %v694 = vsel %vm423, %v693, %v692
      %v695 = vrot.slane %v666, 7
      %v696 = vsel %vm405, %v695, %v665
      %v697 = vrot.slane %v667, 6
      %v698 = vsel %vm408, %v697, %v696
      %v699 = vrot.slane %v668, 5
      %v700 = vsel %vm411, %v699, %v698
      %701 = vrot.lane.b32.xlu0 %v694, 110
      %v702 = vpop.permute.xlu0 %701
      %703 = vrot.lane.b32.xlu0 %v700, 110
      %v704 = vpop.permute.xlu0 %703
      %vm707 = vcmask 1032048
      %708 = vst.msk [vmem:[#allocation2] sm:$0xff] %vm707, %v702
      %vm709 = vcmask 1027952
      %710 = vst.msk [vmem:[#allocation2 + $0x18] sm:$0xf] %vm709, %v704
      %v711 = vld [vmem:[%s329 + $0x6] sm:$0x1]
      %v712 = vld [vmem:[%s329 + $0x16] sm:$0x1]
      %v713 = vld [vmem:[%s329 + $0x26] sm:$0x1]
      %v714 = vld [vmem:[%s329 + $0x36] sm:$0x1]
      %v715 = vld [vmem:[%s329 + $0x46] sm:$0x1]
      %v716 = vld [vmem:[%s329 + $0x56] sm:$0x1]
      %v717 = vld [vmem:[%s329 + $0x66] sm:$0x1]
      %v718 = vld [vmem:[%s329 + $0x76] sm:$0x1]
      %v719 = vld [vmem:[%s329 + $0x86] sm:$0x1]
      %v720 = vld [vmem:[%s329 + $0x96] sm:$0x1]
      %v721 = vld [vmem:[%s329 + $0xa6] sm:$0x1]
      %v722 = vld [vmem:[%s329 + $0xb6] sm:$0x1]
      %v735 = vrot.slane %v712, 7
      %v736 = vsel %vm405, %v735, %v711
      %v737 = vrot.slane %v713, 6
      %v738 = vsel %vm408, %v737, %v736
      %v739 = vrot.slane %v714, 5
      %v740 = vsel %vm411, %v739, %v738
      %v741 = vrot.slane %v715, 4
      %v742 = vsel %vm414, %v741, %v740
      %v743 = vrot.slane %v716, 3
      %v744 = vsel %vm417, %v743, %v742
      %v745 = vrot.slane %v717, 2
      %v746 = vsel %vm420, %v745, %v744
      %v747 = vrot.slane %v718, 1
      %v748 = vsel %vm423, %v747, %v746
      %v749 = vrot.slane %v720, 7
      %v750 = vsel %vm405, %v749, %v719
      %v751 = vrot.slane %v721, 6
      %v752 = vsel %vm408, %v751, %v750
      %v753 = vrot.slane %v722, 5
      %v754 = vsel %vm411, %v753, %v752
      %vm757 = vcmask 130048
      %758 = vst.msk [vmem:[#allocation2 + $0x8] sm:$0xff] %vm757, %v748
      %vm759 = vcmask 125952
      %760 = vst.msk [vmem:[#allocation2 + $0x20] sm:$0xf] %vm759, %v754
      %v761 = vld [vmem:[%s329 + $0x7] sm:$0x1]
      %v762 = vld [vmem:[%s329 + $0x17] sm:$0x1]
      %v763 = vld [vmem:[%s329 + $0x27] sm:$0x1]
      %v764 = vld [vmem:[%s329 + $0x37] sm:$0x1]
      %v765 = vld [vmem:[%s329 + $0x47] sm:$0x1]
      %v766 = vld [vmem:[%s329 + $0x57] sm:$0x1]
      %v767 = vld [vmem:[%s329 + $0x67] sm:$0x1]
      %v768 = vld [vmem:[%s329 + $0x77] sm:$0x1]
      %v769 = vld [vmem:[%s329 + $0x87] sm:$0x1]
      %v770 = vld [vmem:[%s329 + $0x97] sm:$0x1]
      %v771 = vld [vmem:[%s329 + $0xa7] sm:$0x1]
      %v772 = vld [vmem:[%s329 + $0xb7] sm:$0x1]
      %v785 = vrot.slane %v762, 7
      %v786 = vsel %vm405, %v785, %v761
      %v787 = vrot.slane %v763, 6
      %v788 = vsel %vm408, %v787, %v786
      %v789 = vrot.slane %v764, 5
      %v790 = vsel %vm411, %v789, %v788
      %v791 = vrot.slane %v765, 4
      %v792 = vsel %vm414, %v791, %v790
      %v793 = vrot.slane %v766, 3
      %v794 = vsel %vm417, %v793, %v792
      %v795 = vrot.slane %v767, 2
      %v796 = vsel %vm420, %v795, %v794
      %v797 = vrot.slane %v768, 1
      %v798 = vsel %vm423, %v797, %v796
      %v799 = vrot.slane %v770, 7
      %v800 = vsel %vm405, %v799, %v769
      %v801 = vrot.slane %v771, 6
      %v802 = vsel %vm408, %v801, %v800
      %v803 = vrot.slane %v772, 5
      %v804 = vsel %vm411, %v803, %v802
      %805 = vrot.lane.b32.xlu0 %v798, 18
      %v806 = vpop.permute.xlu0 %805
      %807 = vrot.lane.b32.xlu0 %v804, 18
      %v808 = vpop.permute.xlu0 %807
      %vm811 = vcmask 277648
      %812 = vst.msk [vmem:[#allocation2 + $0x8] sm:$0xff] %vm811, %v806
      %vm813 = vcmask 273552
      %814 = vst.msk [vmem:[#allocation2 + $0x20] sm:$0xf] %vm813, %v808
      %v815 = vld [vmem:[%s329 + $0x8] sm:$0x1]
      %v816 = vld [vmem:[%s329 + $0x18] sm:$0x1]
      %v817 = vld [vmem:[%s329 + $0x28] sm:$0x1]
      %v818 = vld [vmem:[%s329 + $0x38] sm:$0x1]
      %v819 = vld [vmem:[%s329 + $0x48] sm:$0x1]
      %v820 = vld [vmem:[%s329 + $0x58] sm:$0x1]
      %v821 = vld [vmem:[%s329 + $0x68] sm:$0x1]
      %v822 = vld [vmem:[%s329 + $0x78] sm:$0x1]
      %v823 = vld [vmem:[%s329 + $0x88] sm:$0x1]
      %v824 = vld [vmem:[%s329 + $0x98] sm:$0x1]
      %v825 = vld [vmem:[%s329 + $0xa8] sm:$0x1]
      %v826 = vld [vmem:[%s329 + $0xb8] sm:$0x1]
      %v839 = vrot.slane %v816, 7
      %v840 = vsel %vm405, %v839, %v815
      %v841 = vrot.slane %v817, 6
      %v842 = vsel %vm408, %v841, %v840
      %v843 = vrot.slane %v818, 5
      %v844 = vsel %vm411, %v843, %v842
      %v845 = vrot.slane %v819, 4
      %v846 = vsel %vm414, %v845, %v844
      %v847 = vrot.slane %v820, 3
      %v848 = vsel %vm417, %v847, %v846
      %v849 = vrot.slane %v821, 2
      %v850 = vsel %vm420, %v849, %v848
      %v851 = vrot.slane %v822, 1
      %v852 = vsel %vm423, %v851, %v850
      %v853 = vrot.slane %v824, 7
      %v854 = vsel %vm405, %v853, %v823
      %v855 = vrot.slane %v825, 6
      %v856 = vsel %vm408, %v855, %v854
      %v857 = vrot.slane %v826, 5
      %v858 = vsel %vm411, %v857, %v856
      %859 = vrot.lane.b32.xlu0 %v852, 36
      %v860 = vpop.permute.xlu0 %859
      %861 = vrot.lane.b32.xlu0 %v858, 36
      %v862 = vpop.permute.xlu0 %861
      %vm865 = vcmask 425248
      %866 = vst.msk [vmem:[#allocation2 + $0x8] sm:$0xff] %vm865, %v860
      %vm867 = vcmask 421152
      %868 = vst.msk [vmem:[#allocation2 + $0x20] sm:$0xf] %vm867, %v862
      %v869 = vld [vmem:[%s329 + $0x9] sm:$0x1]
      %v870 = vld [vmem:[%s329 + $0x19] sm:$0x1]
      %v871 = vld [vmem:[%s329 + $0x29] sm:$0x1]
      %v872 = vld [vmem:[%s329 + $0x39] sm:$0x1]
      %v873 = vld [vmem:[%s329 + $0x49] sm:$0x1]
      %v874 = vld [vmem:[%s329 + $0x59] sm:$0x1]
      %v875 = vld [vmem:[%s329 + $0x69] sm:$0x1]
      %v876 = vld [vmem:[%s329 + $0x79] sm:$0x1]
      %v877 = vld [vmem:[%s329 + $0x89] sm:$0x1]
      %v878 = vld [vmem:[%s329 + $0x99] sm:$0x1]
      %v879 = vld [vmem:[%s329 + $0xa9] sm:$0x1]
      %v880 = vld [vmem:[%s329 + $0xb9] sm:$0x1]
      %v893 = vrot.slane %v870, 7
      %v894 = vsel %vm405, %v893, %v869
      %v895 = vrot.slane %v871, 6
      %v896 = vsel %vm408, %v895, %v894
      %v897 = vrot.slane %v872, 5
      %v898 = vsel %vm411, %v897, %v896
      %v899 = vrot.slane %v873, 4
      %v900 = vsel %vm414, %v899, %v898
      %v901 = vrot.slane %v874, 3
      %v902 = vsel %vm417, %v901, %v900
      %v903 = vrot.slane %v875, 2
      %v904 = vsel %vm420, %v903, %v902
      %v905 = vrot.slane %v876, 1
      %v906 = vsel %vm423, %v905, %v904
      %v907 = vrot.slane %v878, 7
      %v908 = vsel %vm405, %v907, %v877
      %v909 = vrot.slane %v879, 6
      %v910 = vsel %vm408, %v909, %v908
      %v911 = vrot.slane %v880, 5
      %v912 = vsel %vm411, %v911, %v910
      %913 = vrot.lane.b32.xlu0 %v906, 54
      %v914 = vpop.permute.xlu0 %913
      %915 = vrot.lane.b32.xlu0 %v912, 54
      %v916 = vpop.permute.xlu0 %915
      %vm919 = vcmask 572848
      %920 = vst.msk [vmem:[#allocation2 + $0x8] sm:$0xff] %vm919, %v914
      %vm921 = vcmask 568752
      %922 = vst.msk [vmem:[#allocation2 + $0x20] sm:$0xf] %vm921, %v916
      %v923 = vld [vmem:[%s329 + $0xa] sm:$0x1]
      %v924 = vld [vmem:[%s329 + $0x1a] sm:$0x1]
      %v925 = vld [vmem:[%s329 + $0x2a] sm:$0x1]
      %v926 = vld [vmem:[%s329 + $0x3a] sm:$0x1]
      %v927 = vld [vmem:[%s329 + $0x4a] sm:$0x1]
      %v928 = vld [vmem:[%s329 + $0x5a] sm:$0x1]
      %v929 = vld [vmem:[%s329 + $0x6a] sm:$0x1]
      %v930 = vld [vmem:[%s329 + $0x7a] sm:$0x1]
      %v931 = vld [vmem:[%s329 + $0x8a] sm:$0x1]
      %v932 = vld [vmem:[%s329 + $0x9a] sm:$0x1]
      %v933 = vld [vmem:[%s329 + $0xaa] sm:$0x1]
      %v934 = vld [vmem:[%s329 + $0xba] sm:$0x1]
      %v947 = vrot.slane %v924, 7
      %v948 = vsel %vm405, %v947, %v923
      %v949 = vrot.slane %v925, 6
      %v950 = vsel %vm408, %v949, %v948
      %v951 = vrot.slane %v926, 5
      %v952 = vsel %vm411, %v951, %v950
      %v953 = vrot.slane %v927, 4
      %v954 = vsel %vm414, %v953, %v952
      %v955 = vrot.slane %v928, 3
      %v956 = vsel %vm417, %v955, %v954
      %v957 = vrot.slane %v929, 2
      %v958 = vsel %vm420, %v957, %v956
      %v959 = vrot.slane %v930, 1
      %v960 = vsel %vm423, %v959, %v958
      %v961 = vrot.slane %v932, 7
      %v962 = vsel %vm405, %v961, %v931
      %v963 = vrot.slane %v933, 6
      %v964 = vsel %vm408, %v963, %v962
      %v965 = vrot.slane %v934, 5
      %v966 = vsel %vm411, %v965, %v964
      %967 = vrot.lane.b32.xlu0 %v960, 72
      %v968 = vpop.permute.xlu0 %967
      %969 = vrot.lane.b32.xlu0 %v966, 72
      %v970 = vpop.permute.xlu0 %969
      %vm973 = vcmask 720448
      %974 = vst.msk [vmem:[#allocation2 + $0x8] sm:$0xff] %vm973, %v968
      %vm975 = vcmask 716352
      %976 = vst.msk [vmem:[#allocation2 + $0x20] sm:$0xf] %vm975, %v970
      %v977 = vld [vmem:[%s329 + $0xb] sm:$0x1]
      %v978 = vld [vmem:[%s329 + $0x1b] sm:$0x1]
      %v979 = vld [vmem:[%s329 + $0x2b] sm:$0x1]
      %v980 = vld [vmem:[%s329 + $0x3b] sm:$0x1]
      %v981 = vld [vmem:[%s329 + $0x4b] sm:$0x1]
      %v982 = vld [vmem:[%s329 + $0x5b] sm:$0x1]
      %v983 = vld [vmem:[%s329 + $0x6b] sm:$0x1]
      %v984 = vld [vmem:[%s329 + $0x7b] sm:$0x1]
      %v985 = vld [vmem:[%s329 + $0x8b] sm:$0x1]
      %v986 = vld [vmem:[%s329 + $0x9b] sm:$0x1]
      %v987 = vld [vmem:[%s329 + $0xab] sm:$0x1]
      %v988 = vld [vmem:[%s329 + $0xbb] sm:$0x1]
      %v1001 = vrot.slane %v978, 7
      %v1002 = vsel %vm405, %v1001, %v977
      %v1003 = vrot.slane %v979, 6
      %v1004 = vsel %vm408, %v1003, %v1002
      %v1005 = vrot.slane %v980, 5
      %v1006 = vsel %vm411, %v1005, %v1004
      %v1007 = vrot.slane %v981, 4
      %v1008 = vsel %vm414, %v1007, %v1006
      %v1009 = vrot.slane %v982, 3
      %v1010 = vsel %vm417, %v1009, %v1008
      %v1011 = vrot.slane %v983, 2
      %v1012 = vsel %vm420, %v1011, %v1010
      %v1013 = vrot.slane %v984, 1
      %v1014 = vsel %vm423, %v1013, %v1012
      %v1015 = vrot.slane %v986, 7
      %v1016 = vsel %vm405, %v1015, %v985
      %v1017 = vrot.slane %v987, 6
      %v1018 = vsel %vm408, %v1017, %v1016
      %v1019 = vrot.slane %v988, 5
      %v1020 = vsel %vm411, %v1019, %v1018
      %1021 = vrot.lane.b32.xlu0 %v1014, 90
      %v1022 = vpop.permute.xlu0 %1021
      %1023 = vrot.lane.b32.xlu0 %v1020, 90
      %v1024 = vpop.permute.xlu0 %1023
      %vm1027 = vcmask 868048
      %1028 = vst.msk [vmem:[#allocation2 + $0x8] sm:$0xff] %vm1027, %v1022
      %vm1029 = vcmask 863952
      %1030 = vst.msk [vmem:[#allocation2 + $0x20] sm:$0xf] %vm1029, %v1024
      %v1031 = vld [vmem:[%s329 + $0xc] sm:$0x1]
      %v1032 = vld [vmem:[%s329 + $0x1c] sm:$0x1]
      %v1033 = vld [vmem:[%s329 + $0x2c] sm:$0x1]
      %v1034 = vld [vmem:[%s329 + $0x3c] sm:$0x1]
      %v1035 = vld [vmem:[%s329 + $0x4c] sm:$0x1]
      %v1036 = vld [vmem:[%s329 + $0x5c] sm:$0x1]
      %v1037 = vld [vmem:[%s329 + $0x6c] sm:$0x1]
      %v1038 = vld [vmem:[%s329 + $0x7c] sm:$0x1]
      %v1039 = vld [vmem:[%s329 + $0x8c] sm:$0x1]
      %v1040 = vld [vmem:[%s329 + $0x9c] sm:$0x1]
      %v1041 = vld [vmem:[%s329 + $0xac] sm:$0x1]
      %v1042 = vld [vmem:[%s329 + $0xbc] sm:$0x1]
      %v1055 = vrot.slane %v1032, 7
      %v1056 = vsel %vm405, %v1055, %v1031
      %v1057 = vrot.slane %v1033, 6
      %v1058 = vsel %vm408, %v1057, %v1056
      %v1059 = vrot.slane %v1034, 5
      %v1060 = vsel %vm411, %v1059, %v1058
      %v1061 = vrot.slane %v1035, 4
      %v1062 = vsel %vm414, %v1061, %v1060
      %v1063 = vrot.slane %v1036, 3
      %v1064 = vsel %vm417, %v1063, %v1062
      %v1065 = vrot.slane %v1037, 2
      %v1066 = vsel %vm420, %v1065, %v1064
      %v1067 = vrot.slane %v1038, 1
      %v1068 = vsel %vm423, %v1067, %v1066
      %v1069 = vrot.slane %v1040, 7
      %v1070 = vsel %vm405, %v1069, %v1039
      %v1071 = vrot.slane %v1041, 6
      %v1072 = vsel %vm408, %v1071, %v1070
      %v1073 = vrot.slane %v1042, 5
      %v1074 = vsel %vm411, %v1073, %v1072
      %1075 = vrot.lane.b32.xlu0 %v1068, 108
      %v1076 = vpop.permute.xlu0 %1075
      %1077 = vrot.lane.b32.xlu0 %v1074, 108
      %v1078 = vpop.permute.xlu0 %1077
      %vm1081 = vcmask 1015648
      %1082 = vst.msk [vmem:[#allocation2 + $0x8] sm:$0xff] %vm1081, %v1076
      %vm1083 = vcmask 1011552
      %1084 = vst.msk [vmem:[#allocation2 + $0x20] sm:$0xf] %vm1083, %v1078
      %v1085 = vld [vmem:[%s329 + $0xd] sm:$0x1]
      %v1086 = vld [vmem:[%s329 + $0x1d] sm:$0x1]
      %v1087 = vld [vmem:[%s329 + $0x2d] sm:$0x1]
      %v1088 = vld [vmem:[%s329 + $0x3d] sm:$0x1]
      %v1089 = vld [vmem:[%s329 + $0x4d] sm:$0x1]
      %v1090 = vld [vmem:[%s329 + $0x5d] sm:$0x1]
      %v1091 = vld [vmem:[%s329 + $0x6d] sm:$0x1]
      %v1092 = vld [vmem:[%s329 + $0x7d] sm:$0x1]
      %v1093 = vld [vmem:[%s329 + $0x8d] sm:$0x1]
      %v1094 = vld [vmem:[%s329 + $0x9d] sm:$0x1]
      %v1095 = vld [vmem:[%s329 + $0xad] sm:$0x1]
      %v1096 = vld [vmem:[%s329 + $0xbd] sm:$0x1]
      %v1109 = vrot.slane %v1086, 7
      %v1110 = vsel %vm405, %v1109, %v1085
      %v1111 = vrot.slane %v1087, 6
      %v1112 = vsel %vm408, %v1111, %v1110
      %v1113 = vrot.slane %v1088, 5
      %v1114 = vsel %vm411, %v1113, %v1112
      %v1115 = vrot.slane %v1089, 4
      %v1116 = vsel %vm414, %v1115, %v1114
      %v1117 = vrot.slane %v1090, 3
      %v1118 = vsel %vm417, %v1117, %v1116
      %v1119 = vrot.slane %v1091, 2
      %v1120 = vsel %vm420, %v1119, %v1118
      %v1121 = vrot.slane %v1092, 1
      %v1122 = vsel %vm423, %v1121, %v1120
      %v1123 = vrot.slane %v1094, 7
      %v1124 = vsel %vm405, %v1123, %v1093
      %v1125 = vrot.slane %v1095, 6
      %v1126 = vsel %vm408, %v1125, %v1124
      %v1127 = vrot.slane %v1096, 5
      %v1128 = vsel %vm411, %v1127, %v1126
      %1129 = vrot.lane.b32.xlu0 %v1122, 126
      %v1130 = vpop.permute.xlu0 %1129
      %1131 = vrot.lane.b32.xlu0 %v1128, 126
      %v1132 = vpop.permute.xlu0 %1131
      %vm1135 = vcmask 1048560
      %1136 = vst.msk [vmem:[#allocation2 + $0x8] sm:$0xff] %vm1135, %v1130
      %vm1137 = vcmask 113664
      %1138 = vst.msk [vmem:[#allocation2 + $0x10] sm:$0xff] %vm1137, %v1130
      %vm1139 = vcmask 1044464
      %1140 = vst.msk [vmem:[#allocation2 + $0x20] sm:$0xf] %vm1139, %v1132
      %vm1141 = vcmask 109568
      %1142 = vst.msk [vmem:[#allocation2 + $0x28] sm:$0xf] %vm1141, %v1132
      %v1143 = vld [vmem:[%s329 + $0xe] sm:$0x1]
      %v1144 = vld [vmem:[%s329 + $0x1e] sm:$0x1]
      %v1145 = vld [vmem:[%s329 + $0x2e] sm:$0x1]
      %v1146 = vld [vmem:[%s329 + $0x3e] sm:$0x1]
      %v1147 = vld [vmem:[%s329 + $0x4e] sm:$0x1]
      %v1148 = vld [vmem:[%s329 + $0x5e] sm:$0x1]
      %v1149 = vld [vmem:[%s329 + $0x6e] sm:$0x1]
      %v1150 = vld [vmem:[%s329 + $0x7e] sm:$0x1]
      %v1151 = vld [vmem:[%s329 + $0x8e] sm:$0x1]
      %v1152 = vld [vmem:[%s329 + $0x9e] sm:$0x1]
      %v1153 = vld [vmem:[%s329 + $0xae] sm:$0x1]
      %v1154 = vld [vmem:[%s329 + $0xbe] sm:$0x1]
      %v1167 = vrot.slane %v1144, 7
      %v1168 = vsel %vm405, %v1167, %v1143
      %v1169 = vrot.slane %v1145, 6
      %v1170 = vsel %vm408, %v1169, %v1168
      %v1171 = vrot.slane %v1146, 5
      %v1172 = vsel %vm411, %v1171, %v1170
      %v1173 = vrot.slane %v1147, 4
      %v1174 = vsel %vm414, %v1173, %v1172
      %v1175 = vrot.slane %v1148, 3
      %v1176 = vsel %vm417, %v1175, %v1174
      %v1177 = vrot.slane %v1149, 2
      %v1178 = vsel %vm420, %v1177, %v1176
      %v1179 = vrot.slane %v1150, 1
      %v1180 = vsel %vm423, %v1179, %v1178
      %v1181 = vrot.slane %v1152, 7
      %v1182 = vsel %vm405, %v1181, %v1151
      %v1183 = vrot.slane %v1153, 6
      %v1184 = vsel %vm408, %v1183, %v1182
      %v1185 = vrot.slane %v1154, 5
      %v1186 = vsel %vm411, %v1185, %v1184
      %1187 = vrot.lane.b32.xlu0 %v1180, 16
      %v1188 = vpop.permute.xlu0 %1187
      %1189 = vrot.lane.b32.xlu0 %v1186, 16
      %v1190 = vpop.permute.xlu0 %1189
      %vm1193 = vcmask 261248
      %1194 = vst.msk [vmem:[#allocation2 + $0x10] sm:$0xff] %vm1193, %v1188
      %vm1195 = vcmask 257152
      %1196 = vst.msk [vmem:[#allocation2 + $0x28] sm:$0xf] %vm1195, %v1190
      %v1197 = vld [vmem:[%s329 + $0xf] sm:$0x1]
      %v1198 = vld [vmem:[%s329 + $0x1f] sm:$0x1]
      %v1199 = vld [vmem:[%s329 + $0x2f] sm:$0x1]
      %v1200 = vld [vmem:[%s329 + $0x3f] sm:$0x1]
      %v1201 = vld [vmem:[%s329 + $0x4f] sm:$0x1]
      %v1202 = vld [vmem:[%s329 + $0x5f] sm:$0x1]
      %v1203 = vld [vmem:[%s329 + $0x6f] sm:$0x1]
      %v1204 = vld [vmem:[%s329 + $0x7f] sm:$0x1]
      %v1205 = vld [vmem:[%s329 + $0x8f] sm:$0x1]
      %v1206 = vld [vmem:[%s329 + $0x9f] sm:$0x1]
      %v1207 = vld [vmem:[%s329 + $0xaf] sm:$0x1]
      %v1208 = vld [vmem:[%s329 + $0xbf] sm:$0x1]
      %v1221 = vrot.slane %v1198, 7
      %v1222 = vsel %vm405, %v1221, %v1197
      %v1223 = vrot.slane %v1199, 6
      %v1224 = vsel %vm408, %v1223, %v1222
      %v1225 = vrot.slane %v1200, 5
      %v1226 = vsel %vm411, %v1225, %v1224
      %v1227 = vrot.slane %v1201, 4
      %v1228 = vsel %vm414, %v1227, %v1226
      %v1229 = vrot.slane %v1202, 3
      %v1230 = vsel %vm417, %v1229, %v1228
      %v1231 = vrot.slane %v1203, 2
      %v1232 = vsel %vm420, %v1231, %v1230
      %v1233 = vrot.slane %v1204, 1
      %v1234 = vsel %vm423, %v1233, %v1232
      %v1235 = vrot.slane %v1206, 7
      %v1236 = vsel %vm405, %v1235, %v1205
      %v1237 = vrot.slane %v1207, 6
      %v1238 = vsel %vm408, %v1237, %v1236
      %v1239 = vrot.slane %v1208, 5
      %v1240 = vsel %vm411, %v1239, %v1238
      %1241 = vrot.lane.b32.xlu0 %v1234, 34
      %v1242 = vpop.permute.xlu0 %1241
      %1243 = vrot.lane.b32.xlu0 %v1240, 34
      %v1244 = vpop.permute.xlu0 %1243
      %vm1247 = vcmask 408848
      %1248 = vst.msk [vmem:[#allocation2 + $0x10] sm:$0xff] %vm1247, %v1242
      %vm1249 = vcmask 404752
      %1250 = vst.msk [vmem:[#allocation2 + $0x28] sm:$0xf] %vm1249, %v1244
      %v1251 = vld [vmem:[%s348] sm:$0xff]
      %v1252 = vld [vmem:[%s348 + $0x8] sm:$0xf]
      %1255 = vrot.lane.b32.xlu0 %v1251, 52
      %v1256 = vpop.permute.xlu0 %1255
      %1257 = vrot.lane.b32.xlu0 %v1252, 52
      %v1258 = vpop.permute.xlu0 %1257
      %vm1261 = vcmask 556448
      %1262 = vst.msk [vmem:[#allocation2 + $0x10] sm:$0xff] %vm1261, %v1256
      %vm1263 = vcmask 552352
      %1264 = vst.msk [vmem:[#allocation2 + $0x28] sm:$0xf] %vm1263, %v1258
      %v1265 = vld [vmem:[#allocation2] sm:$0xff]
      %v1266 = vld [vmem:[#allocation2 + $0x8] sm:$0xff]
      %v1267 = vld [vmem:[#allocation2 + $0x10] sm:$0xff]
      %v1268 = vld [vmem:[#allocation2 + $0x18] sm:$0xf]
      %v1269 = vld [vmem:[#allocation2 + $0x20] sm:$0xf]
      %v1270 = vld [vmem:[#allocation2 + $0x28] sm:$0xf]
      %v1271 = vld [vmem:[%s3] sm:$0xf]
      %s1272 = scalar_lea.vmem %s3, 4
      %v1273 = vld [vmem:[%s1272] sm:$0xf]
      %1280 = vrot.lane.b32.xlu0 %v1265, 127
      %v1281 = vpop.permute.xlu0 %1280
      %1282 = vrot.lane.b32.xlu0 %v1266, 127
      %v1283 = vpop.permute.xlu0 %1282
      %1284 = vrot.lane.b32.xlu0 %v1267, 127
      %v1285 = vpop.permute.xlu0 %1284
      %1286 = vrot.lane.b32.xlu0 %v1268, 127
      %v1287 = vpop.permute.xlu0 %1286
      %1288 = vrot.lane.b32.xlu0 %v1269, 127
      %v1289 = vpop.permute.xlu0 %1288
      %1290 = vrot.lane.b32.xlu0 %v1270, 127
      %v1291 = vpop.permute.xlu0 %1290
      %vm1292 = vcmask 1039360
      %v1293 = vsel %vm1292, %v1281, %v1283
      %v1294 = vsel %vm1292, %v1283, %v1285
      %v1295 = vsel %vm1292, %v1287, %v1289
      %v1296 = vsel %vm1292, %v1289, %v1291
      %vm1300 = vcmask 97280
      %v1302 = vsel %vm1300, %v1273, 0
      %vm1304 = vcmask 1043456
      %v1305 = vsel %vm1304, %v1295, 0
      %v1307 = vsel %vm1304, %v1296, 0
      %v1309 = vsel %vm1304, %v1291, 0
      %1311 = vmatprep.subr.mxu0 0.0
      %1312 = vmatpush1.msra.mxu0 0.0
      %1313 = vmatprep.subr.mxu0 0.0
      %1314 = vmatpush1.msra.mxu0 0.0
      %1315 = vmatprep.subr.mxu0 0.0
      %1316 = vmatpush1.msra.mxu0 0.0
      %1317 = vmatprep.subr.mxu0 0.0
      %1318 = vmatpush1.msra.mxu0 0.0
      %1319 = vmatprep.subr.mxu0 0.0
      %1320 = vmatpush1.msra.mxu0 0.0
      %1321 = vmatprep.subr.mxu0 0.0
      %1322 = vmatpush1.msra.mxu0 0.0
      %1323 = vmatprep.subr.mxu0 0.0
      %1324 = vmatpush1.msra.mxu0 0.0
      %1325 = vmatprep.subr.mxu0 0.0
      %1326 = vmatpush1.msra.mxu0 0.0
      %1327 = vmatprep.subr.mxu0 0.0
      %1328 = vmatpush1.msra.mxu0 0.0
      %1329 = vmatprep.subr.mxu0 0.0
      %1330 = vmatpush1.msra.mxu0 0.0
      %1331 = vmatprep.subr.mxu0 0.0
      %1332 = vmatpush1.msra.mxu0 0.0
      %1333 = vmatprep.subr.mxu0 0.0
      %1334 = vmatpush1.msra.mxu0 0.0
      %1335 = vmatprep.subr.mxu0 0.0
      %1336 = vmatpush1.msra.mxu0 0.0
      %1337 = vmatprep.subr.mxu0 0.0
      %1338 = vmatpush1.msra.mxu0 0.0
      %1339 = vmatprep.subr.mxu0 %v1307
      %1340 = vmatpush1.msra.mxu0 %v1305
      %1341 = vmatprep.subr.mxu0 %v1294
      %1342 = vmatpush1.msra.mxu0 %v1293
      %1343 = vmatprep.subr.mxu0 0.0
      %1344 = vmatpush2.msra.mxu0 0.0
      %1345 = vmatprep.subr.mxu0 0.0
      %1346 = vmatpush2.msra.mxu0 0.0
      %1347 = vmatprep.subr.mxu0 0.0
      %1348 = vmatpush2.msra.mxu0 0.0
      %1349 = vmatprep.subr.mxu0 0.0
      %1350 = vmatpush2.msra.mxu0 0.0
      %1351 = vmatprep.subr.mxu0 0.0
      %1352 = vmatpush2.msra.mxu0 0.0
      %1353 = vmatprep.subr.mxu0 0.0
      %1354 = vmatpush2.msra.mxu0 0.0
      %1355 = vmatprep.subr.mxu0 0.0
      %1356 = vmatpush2.msra.mxu0 0.0
      %1357 = vmatprep.subr.mxu0 0.0
      %1358 = vmatpush2.msra.mxu0 0.0
      %1359 = vmatprep.subr.mxu0 0.0
      %1360 = vmatpush2.msra.mxu0 0.0
      %1361 = vmatprep.subr.mxu0 0.0
      %1362 = vmatpush2.msra.mxu0 0.0
      %1363 = vmatprep.subr.mxu0 0.0
      %1364 = vmatpush2.msra.mxu0 0.0
      %1365 = vmatprep.subr.mxu0 0.0
      %1366 = vmatpush2.msra.mxu0 0.0
      %1367 = vmatprep.subr.mxu0 0.0
      %1368 = vmatpush2.msra.mxu0 0.0
      %1369 = vmatprep.subr.mxu0 0.0
      %1370 = vmatpush2.msra.mxu0 0.0
      %1371 = vmatprep.subr.mxu0 0.0
      %1372 = vmatpush2.msra.mxu0 0.0
      %1373 = vmatprep.subr.mxu0 0.0
      %1374 = vmatpush2.msra.mxu0 0.0
      %1375 = vmatprep.mubr.f32.mxu0 0.0
      %1376 = vmatmul.mubr.f32.gmra.mxu0 %v1302
      %v1377 = vpop.f32.mrf.mxu0
      %v1378 = vadd.f32 0.0, %v1377
      %v1379 = vpop.f32.mrf.mxu0
      %v1380 = vadd.f32 0.0, %v1379
      %1381 = vdwg.mxu0
      %1382 = vmatprep.subr.mxu0 0.0
      %1383 = vmatpush1.msra.mxu0 0.0
      %1384 = vmatprep.subr.mxu0 0.0
      %1385 = vmatpush1.msra.mxu0 0.0
      %1386 = vmatprep.subr.mxu0 0.0
      %1387 = vmatpush1.msra.mxu0 0.0
      %1388 = vmatprep.subr.mxu0 0.0
      %1389 = vmatpush1.msra.mxu0 0.0
      %1390 = vmatprep.subr.mxu0 0.0
      %1391 = vmatpush1.msra.mxu0 0.0
      %1392 = vmatprep.subr.mxu0 0.0
      %1393 = vmatpush1.msra.mxu0 0.0
      %1394 = vmatprep.subr.mxu0 0.0
      %1395 = vmatpush1.msra.mxu0 0.0
      %1396 = vmatprep.subr.mxu0 0.0
      %1397 = vmatpush1.msra.mxu0 0.0
      %1398 = vmatprep.subr.mxu0 0.0
      %1399 = vmatpush1.msra.mxu0 0.0
      %1400 = vmatprep.subr.mxu0 0.0
      %1401 = vmatpush1.msra.mxu0 0.0
      %1402 = vmatprep.subr.mxu0 0.0
      %1403 = vmatpush1.msra.mxu0 0.0
      %1404 = vmatprep.subr.mxu0 0.0
      %1405 = vmatpush1.msra.mxu0 0.0
      %1406 = vmatprep.subr.mxu0 0.0
      %1407 = vmatpush1.msra.mxu0 0.0
      %1408 = vmatprep.subr.mxu0 0.0
      %1409 = vmatpush1.msra.mxu0 0.0
      %1410 = vmatprep.subr.mxu0 0.0
      %1411 = vmatpush1.msra.mxu0 %v1309
      %1412 = vmatprep.subr.mxu0 0.0
      %1413 = vmatpush1.msra.mxu0 %v1285
      %1414 = vmatprep.subr.mxu0 0.0
      %1415 = vmatpush2.msra.mxu0 0.0
      %1416 = vmatprep.subr.mxu0 0.0
      %1417 = vmatpush2.msra.mxu0 0.0
      %1418 = vmatprep.subr.mxu0 0.0
      %1419 = vmatpush2.msra.mxu0 0.0
      %1420 = vmatprep.subr.mxu0 0.0
      %1421 = vmatpush2.msra.mxu0 0.0
      %1422 = vmatprep.subr.mxu0 0.0
      %1423 = vmatpush2.msra.mxu0 0.0
      %1424 = vmatprep.subr.mxu0 0.0
      %1425 = vmatpush2.msra.mxu0 0.0
      %1426 = vmatprep.subr.mxu0 0.0
      %1427 = vmatpush2.msra.mxu0 0.0
      %1428 = vmatprep.subr.mxu0 0.0
      %1429 = vmatpush2.msra.mxu0 0.0
      %1430 = vmatprep.subr.mxu0 0.0
      %1431 = vmatpush2.msra.mxu0 0.0
      %1432 = vmatprep.subr.mxu0 0.0
      %1433 = vmatpush2.msra.mxu0 0.0
      %1434 = vmatprep.subr.mxu0 0.0
      %1435 = vmatpush2.msra.mxu0 0.0
      %1436 = vmatprep.subr.mxu0 0.0
      %1437 = vmatpush2.msra.mxu0 0.0
      %1438 = vmatprep.subr.mxu0 0.0
      %1439 = vmatpush2.msra.mxu0 0.0
      %1440 = vmatprep.subr.mxu0 0.0
      %1441 = vmatpush2.msra.mxu0 0.0
      %1442 = vmatprep.subr.mxu0 0.0
      %1443 = vmatpush2.msra.mxu0 0.0
      %1444 = vmatprep.subr.mxu0 0.0
      %1445 = vmatpush2.msra.mxu0 0.0
      %1446 = vmatprep.mubr.f32.mxu0 0.0
      %1447 = vmatmul.mubr.f32.gmra.mxu0 %v1302
      %v1448 = vpop.f32.mrf.mxu0
      %v1449 = vadd.f32 0.0, %v1448
      %v1450 = vpop.f32.mrf.mxu0
      %1451 = vdwg.mxu0
      %v1453 = vsel %vm1300, %v1271, 0
      %v1455 = vsel %vm1304, %v1268, 0
      %v1457 = vsel %vm1304, %v1269, 0
      %v1459 = vsel %vm1304, %v1270, 0
      %1461 = vmatprep.subr.mxu0 0.0
      %1462 = vmatpush1.msra.mxu0 0.0
      %1463 = vmatprep.subr.mxu0 0.0
      %1464 = vmatpush1.msra.mxu0 0.0
      %1465 = vmatprep.subr.mxu0 0.0
      %1466 = vmatpush1.msra.mxu0 0.0
      %1467 = vmatprep.subr.mxu0 0.0
      %1468 = vmatpush1.msra.mxu0 0.0
      %1469 = vmatprep.subr.mxu0 0.0
      %1470 = vmatpush1.msra.mxu0 0.0
      %1471 = vmatprep.subr.mxu0 0.0
      %1472 = vmatpush1.msra.mxu0 0.0
      %1473 = vmatprep.subr.mxu0 0.0
      %1474 = vmatpush1.msra.mxu0 0.0
      %1475 = vmatprep.subr.mxu0 0.0
      %1476 = vmatpush1.msra.mxu0 0.0
      %1477 = vmatprep.subr.mxu0 0.0
      %1478 = vmatpush1.msra.mxu0 0.0
      %1479 = vmatprep.subr.mxu0 0.0
      %1480 = vmatpush1.msra.mxu0 0.0
      %1481 = vmatprep.subr.mxu0 0.0
      %1482 = vmatpush1.msra.mxu0 0.0
      %1483 = vmatprep.subr.mxu0 0.0
      %1484 = vmatpush1.msra.mxu0 0.0
      %1485 = vmatprep.subr.mxu0 0.0
      %1486 = vmatpush1.msra.mxu0 0.0
      %1487 = vmatprep.subr.mxu0 0.0
      %1488 = vmatpush1.msra.mxu0 0.0
      %1489 = vmatprep.subr.mxu0 %v1457
      %1490 = vmatpush1.msra.mxu0 %v1455
      %1491 = vmatprep.subr.mxu0 %v1266
      %1492 = vmatpush1.msra.mxu0 %v1265
      %1493 = vmatprep.subr.mxu0 0.0
      %1494 = vmatpush2.msra.mxu0 0.0
      %1495 = vmatprep.subr.mxu0 0.0
      %1496 = vmatpush2.msra.mxu0 0.0
      %1497 = vmatprep.subr.mxu0 0.0
      %1498 = vmatpush2.msra.mxu0 0.0
      %1499 = vmatprep.subr.mxu0 0.0
      %1500 = vmatpush2.msra.mxu0 0.0
      %1501 = vmatprep.subr.mxu0 0.0
      %1502 = vmatpush2.msra.mxu0 0.0
      %1503 = vmatprep.subr.mxu0 0.0
      %1504 = vmatpush2.msra.mxu0 0.0
      %1505 = vmatprep.subr.mxu0 0.0
      %1506 = vmatpush2.msra.mxu0 0.0
      %1507 = vmatprep.subr.mxu0 0.0
      %1508 = vmatpush2.msra.mxu0 0.0
      %1509 = vmatprep.subr.mxu0 0.0
      %1510 = vmatpush2.msra.mxu0 0.0
      %1511 = vmatprep.subr.mxu0 0.0
      %1512 = vmatpush2.msra.mxu0 0.0
      %1513 = vmatprep.subr.mxu0 0.0
      %1514 = vmatpush2.msra.mxu0 0.0
      %1515 = vmatprep.subr.mxu0 0.0
      %1516 = vmatpush2.msra.mxu0 0.0
      %1517 = vmatprep.subr.mxu0 0.0
      %1518 = vmatpush2.msra.mxu0 0.0
      %1519 = vmatprep.subr.mxu0 0.0
      %1520 = vmatpush2.msra.mxu0 0.0
      %1521 = vmatprep.subr.mxu0 0.0
      %1522 = vmatpush2.msra.mxu0 0.0
      %1523 = vmatprep.subr.mxu0 0.0
      %1524 = vmatpush2.msra.mxu0 0.0
      %1525 = vmatprep.mubr.f32.mxu0 0.0
      %1526 = vmatmul.mubr.f32.gmra.mxu0 %v1453
      %v1527 = vpop.f32.mrf.mxu0
      %v1528 = vadd.f32 %v1378, %v1527
      %v1529 = vpop.f32.mrf.mxu0
      %v1530 = vadd.f32 %v1380, %v1529
      %1531 = vdwg.mxu0
      %1532 = vmatprep.subr.mxu0 0.0
      %1533 = vmatpush1.msra.mxu0 0.0
      %1534 = vmatprep.subr.mxu0 0.0
      %1535 = vmatpush1.msra.mxu0 0.0
      %1536 = vmatprep.subr.mxu0 0.0
      %1537 = vmatpush1.msra.mxu0 0.0
      %1538 = vmatprep.subr.mxu0 0.0
      %1539 = vmatpush1.msra.mxu0 0.0
      %1540 = vmatprep.subr.mxu0 0.0
      %1541 = vmatpush1.msra.mxu0 0.0
      %1542 = vmatprep.subr.mxu0 0.0
      %1543 = vmatpush1.msra.mxu0 0.0
      %1544 = vmatprep.subr.mxu0 0.0
      %1545 = vmatpush1.msra.mxu0 0.0
      %1546 = vmatprep.subr.mxu0 0.0
      %1547 = vmatpush1.msra.mxu0 0.0
      %1548 = vmatprep.subr.mxu0 0.0
      %1549 = vmatpush1.msra.mxu0 0.0
      %1550 = vmatprep.subr.mxu0 0.0
      %1551 = vmatpush1.msra.mxu0 0.0
      %1552 = vmatprep.subr.mxu0 0.0
      %1553 = vmatpush1.msra.mxu0 0.0
      %1554 = vmatprep.subr.mxu0 0.0
      %1555 = vmatpush1.msra.mxu0 0.0
      %1556 = vmatprep.subr.mxu0 0.0
      %1557 = vmatpush1.msra.mxu0 0.0
      %1558 = vmatprep.subr.mxu0 0.0
      %1559 = vmatpush1.msra.mxu0 0.0
      %1560 = vmatprep.subr.mxu0 0.0
      %1561 = vmatpush1.msra.mxu0 %v1459
      %1562 = vmatprep.subr.mxu0 0.0
      %1563 = vmatpush1.msra.mxu0 %v1267
      %1564 = vmatprep.subr.mxu0 0.0
      %1565 = vmatpush2.msra.mxu0 0.0
      %1566 = vmatprep.subr.mxu0 0.0
      %1567 = vmatpush2.msra.mxu0 0.0
      %1568 = vmatprep.subr.mxu0 0.0
      %1569 = vmatpush2.msra.mxu0 0.0
      %1570 = vmatprep.subr.mxu0 0.0
      %1571 = vmatpush2.msra.mxu0 0.0
      %1572 = vmatprep.subr.mxu0 0.0
      %1573 = vmatpush2.msra.mxu0 0.0
      %1574 = vmatprep.subr.mxu0 0.0
      %1575 = vmatpush2.msra.mxu0 0.0
      %1576 = vmatprep.subr.mxu0 0.0
      %1577 = vmatpush2.msra.mxu0 0.0
      %1578 = vmatprep.subr.mxu0 0.0
      %1579 = vmatpush2.msra.mxu0 0.0
      %1580 = vmatprep.subr.mxu0 0.0
      %1581 = vmatpush2.msra.mxu0 0.0
      %1582 = vmatprep.subr.mxu0 0.0
      %1583 = vmatpush2.msra.mxu0 0.0
      %1584 = vmatprep.subr.mxu0 0.0
      %1585 = vmatpush2.msra.mxu0 0.0
      %1586 = vmatprep.subr.mxu0 0.0
      %1587 = vmatpush2.msra.mxu0 0.0
      %1588 = vmatprep.subr.mxu0 0.0
      %1589 = vmatpush2.msra.mxu0 0.0
      %1590 = vmatprep.subr.mxu0 0.0
      %1591 = vmatpush2.msra.mxu0 0.0
      %1592 = vmatprep.subr.mxu0 0.0
      %1593 = vmatpush2.msra.mxu0 0.0
      %1594 = vmatprep.subr.mxu0 0.0
      %1595 = vmatpush2.msra.mxu0 0.0
      %1596 = vmatprep.mubr.f32.mxu0 0.0
      %1597 = vmatmul.mubr.f32.gmra.mxu0 %v1453
      %v1598 = vpop.f32.mrf.mxu0
      %v1599 = vadd.f32 %v1449, %v1598
      %v1600 = vpop.f32.mrf.mxu0
      %1601 = vdwg.mxu0
      %s1602 = scalar_lea.vmem %s3, 8
      %v1603 = vld [vmem:[%s1602] sm:$0xf]
      %1604 = vrot.lane.b32.xlu0 %v1265, 126
      %v1605 = vpop.permute.xlu0 %1604
      %1606 = vrot.lane.b32.xlu0 %v1266, 126
      %v1607 = vpop.permute.xlu0 %1606
      %1608 = vrot.lane.b32.xlu0 %v1267, 126
      %v1609 = vpop.permute.xlu0 %1608
      %1610 = vrot.lane.b32.xlu0 %v1268, 126
      %v1611 = vpop.permute.xlu0 %1610
      %1612 = vrot.lane.b32.xlu0 %v1269, 126
      %v1613 = vpop.permute.xlu0 %1612
      %1614 = vrot.lane.b32.xlu0 %v1270, 126
      %v1615 = vpop.permute.xlu0 %1614
      %vm1616 = vcmask 1031168
      %v1617 = vsel %vm1616, %v1605, %v1607
      %v1618 = vsel %vm1616, %v1607, %v1609
      %v1619 = vsel %vm1616, %v1611, %v1613
      %v1620 = vsel %vm1616, %v1613, %v1615
      %v1625 = vsel %vm1300, %v1603, 0
      %v1627 = vsel %vm1304, %v1619, 0
      %v1629 = vsel %vm1304, %v1620, 0
      %v1631 = vsel %vm1304, %v1615, 0
      %1633 = vmatprep.subr.mxu0 0.0
      %1634 = vmatpush1.msra.mxu0 0.0
      %1635 = vmatprep.subr.mxu0 0.0
      %1636 = vmatpush1.msra.mxu0 0.0
      %1637 = vmatprep.subr.mxu0 0.0
      %1638 = vmatpush1.msra.mxu0 0.0
      %1639 = vmatprep.subr.mxu0 0.0
      %1640 = vmatpush1.msra.mxu0 0.0
      %1641 = vmatprep.subr.mxu0 0.0
      %1642 = vmatpush1.msra.mxu0 0.0
      %1643 = vmatprep.subr.mxu0 0.0
      %1644 = vmatpush1.msra.mxu0 0.0
      %1645 = vmatprep.subr.mxu0 0.0
      %1646 = vmatpush1.msra.mxu0 0.0
      %1647 = vmatprep.subr.mxu0 0.0
      %1648 = vmatpush1.msra.mxu0 0.0
      %1649 = vmatprep.subr.mxu0 0.0
      %1650 = vmatpush1.msra.mxu0 0.0
      %1651 = vmatprep.subr.mxu0 0.0
      %1652 = vmatpush1.msra.mxu0 0.0
      %1653 = vmatprep.subr.mxu0 0.0
      %1654 = vmatpush1.msra.mxu0 0.0
      %1655 = vmatprep.subr.mxu0 0.0
      %1656 = vmatpush1.msra.mxu0 0.0
      %1657 = vmatprep.subr.mxu0 0.0
      %1658 = vmatpush1.msra.mxu0 0.0
      %1659 = vmatprep.subr.mxu0 0.0
      %1660 = vmatpush1.msra.mxu0 0.0
      %1661 = vmatprep.subr.mxu0 %v1629
      %1662 = vmatpush1.msra.mxu0 %v1627
      %1663 = vmatprep.subr.mxu0 %v1618
      %1664 = vmatpush1.msra.mxu0 %v1617
      %1665 = vmatprep.subr.mxu0 0.0
      %1666 = vmatpush2.msra.mxu0 0.0
      %1667 = vmatprep.subr.mxu0 0.0
      %1668 = vmatpush2.msra.mxu0 0.0
      %1669 = vmatprep.subr.mxu0 0.0
      %1670 = vmatpush2.msra.mxu0 0.0
      %1671 = vmatprep.subr.mxu0 0.0
      %1672 = vmatpush2.msra.mxu0 0.0
      %1673 = vmatprep.subr.mxu0 0.0
      %1674 = vmatpush2.msra.mxu0 0.0
      %1675 = vmatprep.subr.mxu0 0.0
      %1676 = vmatpush2.msra.mxu0 0.0
      %1677 = vmatprep.subr.mxu0 0.0
      %1678 = vmatpush2.msra.mxu0 0.0
      %1679 = vmatprep.subr.mxu0 0.0
      %1680 = vmatpush2.msra.mxu0 0.0
      %1681 = vmatprep.subr.mxu0 0.0
      %1682 = vmatpush2.msra.mxu0 0.0
      %1683 = vmatprep.subr.mxu0 0.0
      %1684 = vmatpush2.msra.mxu0 0.0
      %1685 = vmatprep.subr.mxu0 0.0
      %1686 = vmatpush2.msra.mxu0 0.0
      %1687 = vmatprep.subr.mxu0 0.0
      %1688 = vmatpush2.msra.mxu0 0.0
      %1689 = vmatprep.subr.mxu0 0.0
      %1690 = vmatpush2.msra.mxu0 0.0
      %1691 = vmatprep.subr.mxu0 0.0
      %1692 = vmatpush2.msra.mxu0 0.0
      %1693 = vmatprep.subr.mxu0 0.0
      %1694 = vmatpush2.msra.mxu0 0.0
      %1695 = vmatprep.subr.mxu0 0.0
      %1696 = vmatpush2.msra.mxu0 0.0
      %1697 = vmatprep.mubr.f32.mxu0 0.0
      %1698 = vmatmul.mubr.f32.gmra.mxu0 %v1625
      %v1699 = vpop.f32.mrf.mxu0
      %v1700 = vadd.f32 0.0, %v1699
      %v1701 = vpop.f32.mrf.mxu0
      %v1702 = vadd.f32 0.0, %v1701
      %1703 = vdwg.mxu0
      %1704 = vmatprep.subr.mxu0 0.0
      %1705 = vmatpush1.msra.mxu0 0.0
      %1706 = vmatprep.subr.mxu0 0.0
      %1707 = vmatpush1.msra.mxu0 0.0
      %1708 = vmatprep.subr.mxu0 0.0
      %1709 = vmatpush1.msra.mxu0 0.0
      %1710 = vmatprep.subr.mxu0 0.0
      %1711 = vmatpush1.msra.mxu0 0.0
      %1712 = vmatprep.subr.mxu0 0.0
      %1713 = vmatpush1.msra.mxu0 0.0
      %1714 = vmatprep.subr.mxu0 0.0
      %1715 = vmatpush1.msra.mxu0 0.0
      %1716 = vmatprep.subr.mxu0 0.0
      %1717 = vmatpush1.msra.mxu0 0.0
      %1718 = vmatprep.subr.mxu0 0.0
      %1719 = vmatpush1.msra.mxu0 0.0
      %1720 = vmatprep.subr.mxu0 0.0
      %1721 = vmatpush1.msra.mxu0 0.0
      %1722 = vmatprep.subr.mxu0 0.0
      %1723 = vmatpush1.msra.mxu0 0.0
      %1724 = vmatprep.subr.mxu0 0.0
      %1725 = vmatpush1.msra.mxu0 0.0
      %1726 = vmatprep.subr.mxu0 0.0
      %1727 = vmatpush1.msra.mxu0 0.0
      %1728 = vmatprep.subr.mxu0 0.0
      %1729 = vmatpush1.msra.mxu0 0.0
      %1730 = vmatprep.subr.mxu0 0.0
      %1731 = vmatpush1.msra.mxu0 0.0
      %1732 = vmatprep.subr.mxu0 0.0
      %1733 = vmatpush1.msra.mxu0 %v1631
      %1734 = vmatprep.subr.mxu0 0.0
      %1735 = vmatpush1.msra.mxu0 %v1609
      %1736 = vmatprep.subr.mxu0 0.0
      %1737 = vmatpush2.msra.mxu0 0.0
      %1738 = vmatprep.subr.mxu0 0.0
      %1739 = vmatpush2.msra.mxu0 0.0
      %1740 = vmatprep.subr.mxu0 0.0
      %1741 = vmatpush2.msra.mxu0 0.0
      %1742 = vmatprep.subr.mxu0 0.0
      %1743 = vmatpush2.msra.mxu0 0.0
      %1744 = vmatprep.subr.mxu0 0.0
      %1745 = vmatpush2.msra.mxu0 0.0
      %1746 = vmatprep.subr.mxu0 0.0
      %1747 = vmatpush2.msra.mxu0 0.0
      %1748 = vmatprep.subr.mxu0 0.0
      %1749 = vmatpush2.msra.mxu0 0.0
      %1750 = vmatprep.subr.mxu0 0.0
      %1751 = vmatpush2.msra.mxu0 0.0
      %1752 = vmatprep.subr.mxu0 0.0
      %1753 = vmatpush2.msra.mxu0 0.0
      %1754 = vmatprep.subr.mxu0 0.0
      %1755 = vmatpush2.msra.mxu0 0.0
      %1756 = vmatprep.subr.mxu0 0.0
      %1757 = vmatpush2.msra.mxu0 0.0
      %1758 = vmatprep.subr.mxu0 0.0
      %1759 = vmatpush2.msra.mxu0 0.0
      %1760 = vmatprep.subr.mxu0 0.0
      %1761 = vmatpush2.msra.mxu0 0.0
      %1762 = vmatprep.subr.mxu0 0.0
      %1763 = vmatpush2.msra.mxu0 0.0
      %1764 = vmatprep.subr.mxu0 0.0
      %1765 = vmatpush2.msra.mxu0 0.0
      %1766 = vmatprep.subr.mxu0 0.0
      %1767 = vmatpush2.msra.mxu0 0.0
      %1768 = vmatprep.mubr.f32.mxu0 0.0
      %1769 = vmatmul.mubr.f32.gmra.mxu0 %v1625
      %v1770 = vpop.f32.mrf.mxu0
      %v1771 = vadd.f32 0.0, %v1770
      %v1772 = vpop.f32.mrf.mxu0
      %1773 = vdwg.mxu0
      %v1774 = vadd.f32 %v1528, %v1700
      %v1775 = vadd.f32 %v1530, %v1702
      %v1776 = vadd.f32 %v1599, %v1771
      %s1777 = scalar_lea.vmem %s3, 12
      %v1778 = vld [vmem:[%s1777] sm:$0xf]
      %1779 = vrot.lane.b32.xlu0 %v1265, 110
      %v1780 = vpop.permute.xlu0 %1779
      %1781 = vrot.lane.b32.xlu0 %v1266, 110
      %v1782 = vpop.permute.xlu0 %1781
      %1783 = vrot.lane.b32.xlu0 %v1267, 110
      %v1784 = vpop.permute.xlu0 %1783
      %1785 = vrot.lane.b32.xlu0 %v1268, 110
      %v1786 = vpop.permute.xlu0 %1785
      %1787 = vrot.lane.b32.xlu0 %v1269, 110
      %v1788 = vpop.permute.xlu0 %1787
      %1789 = vrot.lane.b32.xlu0 %v1270, 110
      %v1790 = vpop.permute.xlu0 %1789
      %vm1791 = vcmask 900096
      %v1792 = vsel %vm1791, %v1780, %v1782
      %v1793 = vsel %vm1791, %v1782, %v1784
      %v1794 = vsel %vm1791, %v1786, %v1788
      %v1795 = vsel %vm1791, %v1788, %v1790
      %v1800 = vsel %vm1300, %v1778, 0
      %v1802 = vsel %vm1304, %v1794, 0
      %v1804 = vsel %vm1304, %v1795, 0
      %v1806 = vsel %vm1304, %v1790, 0
      %1808 = vmatprep.subr.mxu0 0.0
      %1809 = vmatpush1.msra.mxu0 0.0
      %1810 = vmatprep.subr.mxu0 0.0
      %1811 = vmatpush1.msra.mxu0 0.0
      %1812 = vmatprep.subr.mxu0 0.0
      %1813 = vmatpush1.msra.mxu0 0.0
      %1814 = vmatprep.subr.mxu0 0.0
      %1815 = vmatpush1.msra.mxu0 0.0
      %1816 = vmatprep.subr.mxu0 0.0
      %1817 = vmatpush1.msra.mxu0 0.0
      %1818 = vmatprep.subr.mxu0 0.0
      %1819 = vmatpush1.msra.mxu0 0.0
      %1820 = vmatprep.subr.mxu0 0.0
      %1821 = vmatpush1.msra.mxu0 0.0
      %1822 = vmatprep.subr.mxu0 0.0
      %1823 = vmatpush1.msra.mxu0 0.0
      %1824 = vmatprep.subr.mxu0 0.0
      %1825 = vmatpush1.msra.mxu0 0.0
      %1826 = vmatprep.subr.mxu0 0.0
      %1827 = vmatpush1.msra.mxu0 0.0
      %1828 = vmatprep.subr.mxu0 0.0
      %1829 = vmatpush1.msra.mxu0 0.0
      %1830 = vmatprep.subr.mxu0 0.0
      %1831 = vmatpush1.msra.mxu0 0.0
      %1832 = vmatprep.subr.mxu0 0.0
      %1833 = vmatpush1.msra.mxu0 0.0
      %1834 = vmatprep.subr.mxu0 0.0
      %1835 = vmatpush1.msra.mxu0 0.0
      %1836 = vmatprep.subr.mxu0 %v1804
      %1837 = vmatpush1.msra.mxu0 %v1802
      %1838 = vmatprep.subr.mxu0 %v1793
      %1839 = vmatpush1.msra.mxu0 %v1792
      %1840 = vmatprep.subr.mxu0 0.0
      %1841 = vmatpush2.msra.mxu0 0.0
      %1842 = vmatprep.subr.mxu0 0.0
      %1843 = vmatpush2.msra.mxu0 0.0
      %1844 = vmatprep.subr.mxu0 0.0
      %1845 = vmatpush2.msra.mxu0 0.0
      %1846 = vmatprep.subr.mxu0 0.0
      %1847 = vmatpush2.msra.mxu0 0.0
      %1848 = vmatprep.subr.mxu0 0.0
      %1849 = vmatpush2.msra.mxu0 0.0
      %1850 = vmatprep.subr.mxu0 0.0
      %1851 = vmatpush2.msra.mxu0 0.0
      %1852 = vmatprep.subr.mxu0 0.0
      %1853 = vmatpush2.msra.mxu0 0.0
      %1854 = vmatprep.subr.mxu0 0.0
      %1855 = vmatpush2.msra.mxu0 0.0
      %1856 = vmatprep.subr.mxu0 0.0
      %1857 = vmatpush2.msra.mxu0 0.0
      %1858 = vmatprep.subr.mxu0 0.0
      %1859 = vmatpush2.msra.mxu0 0.0
      %1860 = vmatprep.subr.mxu0 0.0
      %1861 = vmatpush2.msra.mxu0 0.0
      %1862 = vmatprep.subr.mxu0 0.0
      %1863 = vmatpush2.msra.mxu0 0.0
      %1864 = vmatprep.subr.mxu0 0.0
      %1865 = vmatpush2.msra.mxu0 0.0
      %1866 = vmatprep.subr.mxu0 0.0
      %1867 = vmatpush2.msra.mxu0 0.0
      %1868 = vmatprep.subr.mxu0 0.0
      %1869 = vmatpush2.msra.mxu0 0.0
      %1870 = vmatprep.subr.mxu0 0.0
      %1871 = vmatpush2.msra.mxu0 0.0
      %1872 = vmatprep.mubr.f32.mxu0 0.0
      %1873 = vmatmul.mubr.f32.gmra.mxu0 %v1800
      %v1874 = vpop.f32.mrf.mxu0
      %v1875 = vadd.f32 0.0, %v1874
      %v1876 = vpop.f32.mrf.mxu0
      %v1877 = vadd.f32 0.0, %v1876
      %1878 = vdwg.mxu0
      %1879 = vmatprep.subr.mxu0 0.0
      %1880 = vmatpush1.msra.mxu0 0.0
      %1881 = vmatprep.subr.mxu0 0.0
      %1882 = vmatpush1.msra.mxu0 0.0
      %1883 = vmatprep.subr.mxu0 0.0
      %1884 = vmatpush1.msra.mxu0 0.0
      %1885 = vmatprep.subr.mxu0 0.0
      %1886 = vmatpush1.msra.mxu0 0.0
      %1887 = vmatprep.subr.mxu0 0.0
      %1888 = vmatpush1.msra.mxu0 0.0
      %1889 = vmatprep.subr.mxu0 0.0
      %1890 = vmatpush1.msra.mxu0 0.0
      %1891 = vmatprep.subr.mxu0 0.0
      %1892 = vmatpush1.msra.mxu0 0.0
      %1893 = vmatprep.subr.mxu0 0.0
      %1894 = vmatpush1.msra.mxu0 0.0
      %1895 = vmatprep.subr.mxu0 0.0
      %1896 = vmatpush1.msra.mxu0 0.0
      %1897 = vmatprep.subr.mxu0 0.0
      %1898 = vmatpush1.msra.mxu0 0.0
      %1899 = vmatprep.subr.mxu0 0.0
      %1900 = vmatpush1.msra.mxu0 0.0
      %1901 = vmatprep.subr.mxu0 0.0
      %1902 = vmatpush1.msra.mxu0 0.0
      %1903 = vmatprep.subr.mxu0 0.0
      %1904 = vmatpush1.msra.mxu0 0.0
      %1905 = vmatprep.subr.mxu0 0.0
      %1906 = vmatpush1.msra.mxu0 0.0
      %1907 = vmatprep.subr.mxu0 0.0
      %1908 = vmatpush1.msra.mxu0 %v1806
      %1909 = vmatprep.subr.mxu0 0.0
      %1910 = vmatpush1.msra.mxu0 %v1784
      %1911 = vmatprep.subr.mxu0 0.0
      %1912 = vmatpush2.msra.mxu0 0.0
      %1913 = vmatprep.subr.mxu0 0.0
      %1914 = vmatpush2.msra.mxu0 0.0
      %1915 = vmatprep.subr.mxu0 0.0
      %1916 = vmatpush2.msra.mxu0 0.0
      %1917 = vmatprep.subr.mxu0 0.0
      %1918 = vmatpush2.msra.mxu0 0.0
      %1919 = vmatprep.subr.mxu0 0.0
      %1920 = vmatpush2.msra.mxu0 0.0
      %1921 = vmatprep.subr.mxu0 0.0
      %1922 = vmatpush2.msra.mxu0 0.0
      %1923 = vmatprep.subr.mxu0 0.0
      %1924 = vmatpush2.msra.mxu0 0.0
      %1925 = vmatprep.subr.mxu0 0.0
      %1926 = vmatpush2.msra.mxu0 0.0
      %1927 = vmatprep.subr.mxu0 0.0
      %1928 = vmatpush2.msra.mxu0 0.0
      %1929 = vmatprep.subr.mxu0 0.0
      %1930 = vmatpush2.msra.mxu0 0.0
      %1931 = vmatprep.subr.mxu0 0.0
      %1932 = vmatpush2.msra.mxu0 0.0
      %1933 = vmatprep.subr.mxu0 0.0
      %1934 = vmatpush2.msra.mxu0 0.0
      %1935 = vmatprep.subr.mxu0 0.0
      %1936 = vmatpush2.msra.mxu0 0.0
      %1937 = vmatprep.subr.mxu0 0.0
      %1938 = vmatpush2.msra.mxu0 0.0
      %1939 = vmatprep.subr.mxu0 0.0
      %1940 = vmatpush2.msra.mxu0 0.0
      %1941 = vmatprep.subr.mxu0 0.0
      %1942 = vmatpush2.msra.mxu0 0.0
      %1943 = vmatprep.mubr.f32.mxu0 0.0
      %1944 = vmatmul.mubr.f32.gmra.mxu0 %v1800
      %v1945 = vpop.f32.mrf.mxu0
      %v1946 = vadd.f32 0.0, %v1945
      %v1947 = vpop.f32.mrf.mxu0
      %1948 = vdwg.mxu0
      %v1949 = vadd.f32 %v1774, %v1875
      %v1950 = vadd.f32 %v1775, %v1877
      %v1951 = vadd.f32 %v1776, %v1946
      %s1952 = scalar_lea.vmem %s3, 16
      %v1953 = vld [vmem:[%s1952] sm:$0xf]
      %1954 = vrot.lane.b32.xlu0 %v1265, 109
      %v1955 = vpop.permute.xlu0 %1954
      %1956 = vrot.lane.b32.xlu0 %v1266, 109
      %v1957 = vpop.permute.xlu0 %1956
      %1958 = vrot.lane.b32.xlu0 %v1267, 109
      %v1959 = vpop.permute.xlu0 %1958
      %1960 = vrot.lane.b32.xlu0 %v1268, 109
      %v1961 = vpop.permute.xlu0 %1960
      %1962 = vrot.lane.b32.xlu0 %v1269, 109
      %v1963 = vpop.permute.xlu0 %1962
      %1964 = vrot.lane.b32.xlu0 %v1270, 109
      %v1965 = vpop.permute.xlu0 %1964
      %vm1966 = vcmask 891904
      %v1967 = vsel %vm1966, %v1955, %v1957
      %v1968 = vsel %vm1966, %v1957, %v1959
      %v1969 = vsel %vm1966, %v1961, %v1963
      %v1970 = vsel %vm1966, %v1963, %v1965
      %v1975 = vsel %vm1300, %v1953, 0
      %v1977 = vsel %vm1304, %v1969, 0
      %v1979 = vsel %vm1304, %v1970, 0
      %v1981 = vsel %vm1304, %v1965, 0
      %1983 = vmatprep.subr.mxu0 0.0
      %1984 = vmatpush1.msra.mxu0 0.0
      %1985 = vmatprep.subr.mxu0 0.0
      %1986 = vmatpush1.msra.mxu0 0.0
      %1987 = vmatprep.subr.mxu0 0.0
      %1988 = vmatpush1.msra.mxu0 0.0
      %1989 = vmatprep.subr.mxu0 0.0
      %1990 = vmatpush1.msra.mxu0 0.0
      %1991 = vmatprep.subr.mxu0 0.0
      %1992 = vmatpush1.msra.mxu0 0.0
      %1993 = vmatprep.subr.mxu0 0.0
      %1994 = vmatpush1.msra.mxu0 0.0
      %1995 = vmatprep.subr.mxu0 0.0
      %1996 = vmatpush1.msra.mxu0 0.0
      %1997 = vmatprep.subr.mxu0 0.0
      %1998 = vmatpush1.msra.mxu0 0.0
      %1999 = vmatprep.subr.mxu0 0.0
      %2000 = vmatpush1.msra.mxu0 0.0
      %2001 = vmatprep.subr.mxu0 0.0
      %2002 = vmatpush1.msra.mxu0 0.0
      %2003 = vmatprep.subr.mxu0 0.0
      %2004 = vmatpush1.msra.mxu0 0.0
      %2005 = vmatprep.subr.mxu0 0.0
      %2006 = vmatpush1.msra.mxu0 0.0
      %2007 = vmatprep.subr.mxu0 0.0
      %2008 = vmatpush1.msra.mxu0 0.0
      %2009 = vmatprep.subr.mxu0 0.0
      %2010 = vmatpush1.msra.mxu0 0.0
      %2011 = vmatprep.subr.mxu0 %v1979
      %2012 = vmatpush1.msra.mxu0 %v1977
      %2013 = vmatprep.subr.mxu0 %v1968
      %2014 = vmatpush1.msra.mxu0 %v1967
      %2015 = vmatprep.subr.mxu0 0.0
      %2016 = vmatpush2.msra.mxu0 0.0
      %2017 = vmatprep.subr.mxu0 0.0
      %2018 = vmatpush2.msra.mxu0 0.0
      %2019 = vmatprep.subr.mxu0 0.0
      %2020 = vmatpush2.msra.mxu0 0.0
      %2021 = vmatprep.subr.mxu0 0.0
      %2022 = vmatpush2.msra.mxu0 0.0
      %2023 = vmatprep.subr.mxu0 0.0
      %2024 = vmatpush2.msra.mxu0 0.0
      %2025 = vmatprep.subr.mxu0 0.0
      %2026 = vmatpush2.msra.mxu0 0.0
      %2027 = vmatprep.subr.mxu0 0.0
      %2028 = vmatpush2.msra.mxu0 0.0
      %2029 = vmatprep.subr.mxu0 0.0
      %2030 = vmatpush2.msra.mxu0 0.0
      %2031 = vmatprep.subr.mxu0 0.0
      %2032 = vmatpush2.msra.mxu0 0.0
      %2033 = vmatprep.subr.mxu0 0.0
      %2034 = vmatpush2.msra.mxu0 0.0
      %2035 = vmatprep.subr.mxu0 0.0
      %2036 = vmatpush2.msra.mxu0 0.0
      %2037 = vmatprep.subr.mxu0 0.0
      %2038 = vmatpush2.msra.mxu0 0.0
      %2039 = vmatprep.subr.mxu0 0.0
      %2040 = vmatpush2.msra.mxu0 0.0
      %2041 = vmatprep.subr.mxu0 0.0
      %2042 = vmatpush2.msra.mxu0 0.0
      %2043 = vmatprep.subr.mxu0 0.0
      %2044 = vmatpush2.msra.mxu0 0.0
      %2045 = vmatprep.subr.mxu0 0.0
      %2046 = vmatpush2.msra.mxu0 0.0
      %2047 = vmatprep.mubr.f32.mxu0 0.0
      %2048 = vmatmul.mubr.f32.gmra.mxu0 %v1975
      %v2049 = vpop.f32.mrf.mxu0
      %v2050 = vadd.f32 0.0, %v2049
      %v2051 = vpop.f32.mrf.mxu0
      %v2052 = vadd.f32 0.0, %v2051
      %2053 = vdwg.mxu0
      %2054 = vmatprep.subr.mxu0 0.0
      %2055 = vmatpush1.msra.mxu0 0.0
      %2056 = vmatprep.subr.mxu0 0.0
      %2057 = vmatpush1.msra.mxu0 0.0
      %2058 = vmatprep.subr.mxu0 0.0
      %2059 = vmatpush1.msra.mxu0 0.0
      %2060 = vmatprep.subr.mxu0 0.0
      %2061 = vmatpush1.msra.mxu0 0.0
      %2062 = vmatprep.subr.mxu0 0.0
      %2063 = vmatpush1.msra.mxu0 0.0
      %2064 = vmatprep.subr.mxu0 0.0
      %2065 = vmatpush1.msra.mxu0 0.0
      %2066 = vmatprep.subr.mxu0 0.0
      %2067 = vmatpush1.msra.mxu0 0.0
      %2068 = vmatprep.subr.mxu0 0.0
      %2069 = vmatpush1.msra.mxu0 0.0
      %2070 = vmatprep.subr.mxu0 0.0
      %2071 = vmatpush1.msra.mxu0 0.0
      %2072 = vmatprep.subr.mxu0 0.0
      %2073 = vmatpush1.msra.mxu0 0.0
      %2074 = vmatprep.subr.mxu0 0.0
      %2075 = vmatpush1.msra.mxu0 0.0
      %2076 = vmatprep.subr.mxu0 0.0
      %2077 = vmatpush1.msra.mxu0 0.0
      %2078 = vmatprep.subr.mxu0 0.0
      %2079 = vmatpush1.msra.mxu0 0.0
      %2080 = vmatprep.subr.mxu0 0.0
      %2081 = vmatpush1.msra.mxu0 0.0
      %2082 = vmatprep.subr.mxu0 0.0
      %2083 = vmatpush1.msra.mxu0 %v1981
      %2084 = vmatprep.subr.mxu0 0.0
      %2085 = vmatpush1.msra.mxu0 %v1959
      %2086 = vmatprep.subr.mxu0 0.0
      %2087 = vmatpush2.msra.mxu0 0.0
      %2088 = vmatprep.subr.mxu0 0.0
      %2089 = vmatpush2.msra.mxu0 0.0
      %2090 = vmatprep.subr.mxu0 0.0
      %2091 = vmatpush2.msra.mxu0 0.0
      %2092 = vmatprep.subr.mxu0 0.0
      %2093 = vmatpush2.msra.mxu0 0.0
      %2094 = vmatprep.subr.mxu0 0.0
      %2095 = vmatpush2.msra.mxu0 0.0
      %2096 = vmatprep.subr.mxu0 0.0
      %2097 = vmatpush2.msra.mxu0 0.0
      %2098 = vmatprep.subr.mxu0 0.0
      %2099 = vmatpush2.msra.mxu0 0.0
      %2100 = vmatprep.subr.mxu0 0.0
      %2101 = vmatpush2.msra.mxu0 0.0
      %2102 = vmatprep.subr.mxu0 0.0
      %2103 = vmatpush2.msra.mxu0 0.0
      %2104 = vmatprep.subr.mxu0 0.0
      %2105 = vmatpush2.msra.mxu0 0.0
      %2106 = vmatprep.subr.mxu0 0.0
      %2107 = vmatpush2.msra.mxu0 0.0
      %2108 = vmatprep.subr.mxu0 0.0
      %2109 = vmatpush2.msra.mxu0 0.0
      %2110 = vmatprep.subr.mxu0 0.0
      %2111 = vmatpush2.msra.mxu0 0.0
      %2112 = vmatprep.subr.mxu0 0.0
      %2113 = vmatpush2.msra.mxu0 0.0
      %2114 = vmatprep.subr.mxu0 0.0
      %2115 = vmatpush2.msra.mxu0 0.0
      %2116 = vmatprep.subr.mxu0 0.0
      %2117 = vmatpush2.msra.mxu0 0.0
      %2118 = vmatprep.mubr.f32.mxu0 0.0
      %2119 = vmatmul.mubr.f32.gmra.mxu0 %v1975
      %v2120 = vpop.f32.mrf.mxu0
      %v2121 = vadd.f32 0.0, %v2120
      %v2122 = vpop.f32.mrf.mxu0
      %2123 = vdwg.mxu0
      %v2124 = vadd.f32 %v1949, %v2050
      %v2125 = vadd.f32 %v1950, %v2052
      %v2126 = vadd.f32 %v1951, %v2121
      %s2127 = scalar_lea.vmem %s3, 20
      %v2128 = vld [vmem:[%s2127] sm:$0xf]
      %2129 = vrot.lane.b32.xlu0 %v1265, 108
      %v2130 = vpop.permute.xlu0 %2129
      %2131 = vrot.lane.b32.xlu0 %v1266, 108
      %v2132 = vpop.permute.xlu0 %2131
      %2133 = vrot.lane.b32.xlu0 %v1267, 108
      %v2134 = vpop.permute.xlu0 %2133
      %2135 = vrot.lane.b32.xlu0 %v1268, 108
      %v2136 = vpop.permute.xlu0 %2135
      %2137 = vrot.lane.b32.xlu0 %v1269, 108
      %v2138 = vpop.permute.xlu0 %2137
      %2139 = vrot.lane.b32.xlu0 %v1270, 108
      %v2140 = vpop.permute.xlu0 %2139
      %vm2141 = vcmask 883712
      %v2142 = vsel %vm2141, %v2130, %v2132
      %v2143 = vsel %vm2141, %v2132, %v2134
      %v2144 = vsel %vm2141, %v2136, %v2138
      %v2145 = vsel %vm2141, %v2138, %v2140
      %v2150 = vsel %vm1300, %v2128, 0
      %v2152 = vsel %vm1304, %v2144, 0
      %v2154 = vsel %vm1304, %v2145, 0
      %v2156 = vsel %vm1304, %v2140, 0
      %2158 = vmatprep.subr.mxu0 0.0
      %2159 = vmatpush1.msra.mxu0 0.0
      %2160 = vmatprep.subr.mxu0 0.0
      %2161 = vmatpush1.msra.mxu0 0.0
      %2162 = vmatprep.subr.mxu0 0.0
      %2163 = vmatpush1.msra.mxu0 0.0
      %2164 = vmatprep.subr.mxu0 0.0
      %2165 = vmatpush1.msra.mxu0 0.0
      %2166 = vmatprep.subr.mxu0 0.0
      %2167 = vmatpush1.msra.mxu0 0.0
      %2168 = vmatprep.subr.mxu0 0.0
      %2169 = vmatpush1.msra.mxu0 0.0
      %2170 = vmatprep.subr.mxu0 0.0
      %2171 = vmatpush1.msra.mxu0 0.0
      %2172 = vmatprep.subr.mxu0 0.0
      %2173 = vmatpush1.msra.mxu0 0.0
      %2174 = vmatprep.subr.mxu0 0.0
      %2175 = vmatpush1.msra.mxu0 0.0
      %2176 = vmatprep.subr.mxu0 0.0
      %2177 = vmatpush1.msra.mxu0 0.0
      %2178 = vmatprep.subr.mxu0 0.0
      %2179 = vmatpush1.msra.mxu0 0.0
      %2180 = vmatprep.subr.mxu0 0.0
      %2181 = vmatpush1.msra.mxu0 0.0
      %2182 = vmatprep.subr.mxu0 0.0
      %2183 = vmatpush1.msra.mxu0 0.0
      %2184 = vmatprep.subr.mxu0 0.0
      %2185 = vmatpush1.msra.mxu0 0.0
      %2186 = vmatprep.subr.mxu0 %v2154
      %2187 = vmatpush1.msra.mxu0 %v2152
      %2188 = vmatprep.subr.mxu0 %v2143
      %2189 = vmatpush1.msra.mxu0 %v2142
      %2190 = vmatprep.subr.mxu0 0.0
      %2191 = vmatpush2.msra.mxu0 0.0
      %2192 = vmatprep.subr.mxu0 0.0
      %2193 = vmatpush2.msra.mxu0 0.0
      %2194 = vmatprep.subr.mxu0 0.0
      %2195 = vmatpush2.msra.mxu0 0.0
      %2196 = vmatprep.subr.mxu0 0.0
      %2197 = vmatpush2.msra.mxu0 0.0
      %2198 = vmatprep.subr.mxu0 0.0
      %2199 = vmatpush2.msra.mxu0 0.0
      %2200 = vmatprep.subr.mxu0 0.0
      %2201 = vmatpush2.msra.mxu0 0.0
      %2202 = vmatprep.subr.mxu0 0.0
      %2203 = vmatpush2.msra.mxu0 0.0
      %2204 = vmatprep.subr.mxu0 0.0
      %2205 = vmatpush2.msra.mxu0 0.0
      %2206 = vmatprep.subr.mxu0 0.0
      %2207 = vmatpush2.msra.mxu0 0.0
      %2208 = vmatprep.subr.mxu0 0.0
      %2209 = vmatpush2.msra.mxu0 0.0
      %2210 = vmatprep.subr.mxu0 0.0
      %2211 = vmatpush2.msra.mxu0 0.0
      %2212 = vmatprep.subr.mxu0 0.0
      %2213 = vmatpush2.msra.mxu0 0.0
      %2214 = vmatprep.subr.mxu0 0.0
      %2215 = vmatpush2.msra.mxu0 0.0
      %2216 = vmatprep.subr.mxu0 0.0
      %2217 = vmatpush2.msra.mxu0 0.0
      %2218 = vmatprep.subr.mxu0 0.0
      %2219 = vmatpush2.msra.mxu0 0.0
      %2220 = vmatprep.subr.mxu0 0.0
      %2221 = vmatpush2.msra.mxu0 0.0
      %2222 = vmatprep.mubr.f32.mxu0 0.0
      %2223 = vmatmul.mubr.f32.gmra.mxu0 %v2150
      %v2224 = vpop.f32.mrf.mxu0
      %v2225 = vadd.f32 0.0, %v2224
      %v2226 = vpop.f32.mrf.mxu0
      %v2227 = vadd.f32 0.0, %v2226
      %2228 = vdwg.mxu0
      %2229 = vmatprep.subr.mxu0 0.0
      %2230 = vmatpush1.msra.mxu0 0.0
      %2231 = vmatprep.subr.mxu0 0.0
      %2232 = vmatpush1.msra.mxu0 0.0
      %2233 = vmatprep.subr.mxu0 0.0
      %2234 = vmatpush1.msra.mxu0 0.0
      %2235 = vmatprep.subr.mxu0 0.0
      %2236 = vmatpush1.msra.mxu0 0.0
      %2237 = vmatprep.subr.mxu0 0.0
      %2238 = vmatpush1.msra.mxu0 0.0
      %2239 = vmatprep.subr.mxu0 0.0
      %2240 = vmatpush1.msra.mxu0 0.0
      %2241 = vmatprep.subr.mxu0 0.0
      %2242 = vmatpush1.msra.mxu0 0.0
      %2243 = vmatprep.subr.mxu0 0.0
      %2244 = vmatpush1.msra.mxu0 0.0
      %2245 = vmatprep.subr.mxu0 0.0
      %2246 = vmatpush1.msra.mxu0 0.0
      %2247 = vmatprep.subr.mxu0 0.0
      %2248 = vmatpush1.msra.mxu0 0.0
      %2249 = vmatprep.subr.mxu0 0.0
      %2250 = vmatpush1.msra.mxu0 0.0
      %2251 = vmatprep.subr.mxu0 0.0
      %2252 = vmatpush1.msra.mxu0 0.0
      %2253 = vmatprep.subr.mxu0 0.0
      %2254 = vmatpush1.msra.mxu0 0.0
      %2255 = vmatprep.subr.mxu0 0.0
      %2256 = vmatpush1.msra.mxu0 0.0
      %2257 = vmatprep.subr.mxu0 0.0
      %2258 = vmatpush1.msra.mxu0 %v2156
      %2259 = vmatprep.subr.mxu0 0.0
      %2260 = vmatpush1.msra.mxu0 %v2134
      %2261 = vmatprep.subr.mxu0 0.0
      %2262 = vmatpush2.msra.mxu0 0.0
      %2263 = vmatprep.subr.mxu0 0.0
      %2264 = vmatpush2.msra.mxu0 0.0
      %2265 = vmatprep.subr.mxu0 0.0
      %2266 = vmatpush2.msra.mxu0 0.0
      %2267 = vmatprep.subr.mxu0 0.0
      %2268 = vmatpush2.msra.mxu0 0.0
      %2269 = vmatprep.subr.mxu0 0.0
      %2270 = vmatpush2.msra.mxu0 0.0
      %2271 = vmatprep.subr.mxu0 0.0
      %2272 = vmatpush2.msra.mxu0 0.0
      %2273 = vmatprep.subr.mxu0 0.0
      %2274 = vmatpush2.msra.mxu0 0.0
      %2275 = vmatprep.subr.mxu0 0.0
      %2276 = vmatpush2.msra.mxu0 0.0
      %2277 = vmatprep.subr.mxu0 0.0
      %2278 = vmatpush2.msra.mxu0 0.0
      %2279 = vmatprep.subr.mxu0 0.0
      %2280 = vmatpush2.msra.mxu0 0.0
      %2281 = vmatprep.subr.mxu0 0.0
      %2282 = vmatpush2.msra.mxu0 0.0
      %2283 = vmatprep.subr.mxu0 0.0
      %2284 = vmatpush2.msra.mxu0 0.0
      %2285 = vmatprep.subr.mxu0 0.0
      %2286 = vmatpush2.msra.mxu0 0.0
      %2287 = vmatprep.subr.mxu0 0.0
      %2288 = vmatpush2.msra.mxu0 0.0
      %2289 = vmatprep.subr.mxu0 0.0
      %2290 = vmatpush2.msra.mxu0 0.0
      %2291 = vmatprep.subr.mxu0 0.0
      %2292 = vmatpush2.msra.mxu0 0.0
      %2293 = vmatprep.mubr.f32.mxu0 0.0
      %2294 = vmatmul.mubr.f32.gmra.mxu0 %v2150
      %v2295 = vpop.f32.mrf.mxu0
      %v2296 = vadd.f32 0.0, %v2295
      %v2297 = vpop.f32.mrf.mxu0
      %2298 = vdwg.mxu0
      %v2299 = vadd.f32 %v2124, %v2225
      %v2300 = vadd.f32 %v2125, %v2227
      %v2301 = vadd.f32 %v2126, %v2296
      %s2302 = scalar_lea.vmem %s3, 24
      %v2303 = vld [vmem:[%s2302] sm:$0xf]
      %2304 = vrot.lane.b32.xlu0 %v1265, 92
      %v2305 = vpop.permute.xlu0 %2304
      %2306 = vrot.lane.b32.xlu0 %v1266, 92
      %v2307 = vpop.permute.xlu0 %2306
      %2308 = vrot.lane.b32.xlu0 %v1267, 92
      %v2309 = vpop.permute.xlu0 %2308
      %2310 = vrot.lane.b32.xlu0 %v1268, 92
      %v2311 = vpop.permute.xlu0 %2310
      %2312 = vrot.lane.b32.xlu0 %v1269, 92
      %v2313 = vpop.permute.xlu0 %2312
      %2314 = vrot.lane.b32.xlu0 %v1270, 92
      %v2315 = vpop.permute.xlu0 %2314
      %vm2316 = vcmask 752640
      %v2317 = vsel %vm2316, %v2305, %v2307
      %v2318 = vsel %vm2316, %v2307, %v2309
      %v2319 = vsel %vm2316, %v2311, %v2313
      %v2320 = vsel %vm2316, %v2313, %v2315
      %v2325 = vsel %vm1300, %v2303, 0
      %v2327 = vsel %vm1304, %v2319, 0
      %v2329 = vsel %vm1304, %v2320, 0
      %v2331 = vsel %vm1304, %v2315, 0
      %2333 = vmatprep.subr.mxu0 0.0
      %2334 = vmatpush1.msra.mxu0 0.0
      %2335 = vmatprep.subr.mxu0 0.0
      %2336 = vmatpush1.msra.mxu0 0.0
      %2337 = vmatprep.subr.mxu0 0.0
      %2338 = vmatpush1.msra.mxu0 0.0
      %2339 = vmatprep.subr.mxu0 0.0
      %2340 = vmatpush1.msra.mxu0 0.0
      %2341 = vmatprep.subr.mxu0 0.0
      %2342 = vmatpush1.msra.mxu0 0.0
      %2343 = vmatprep.subr.mxu0 0.0
      %2344 = vmatpush1.msra.mxu0 0.0
      %2345 = vmatprep.subr.mxu0 0.0
      %2346 = vmatpush1.msra.mxu0 0.0
      %2347 = vmatprep.subr.mxu0 0.0
      %2348 = vmatpush1.msra.mxu0 0.0
      %2349 = vmatprep.subr.mxu0 0.0
      %2350 = vmatpush1.msra.mxu0 0.0
      %2351 = vmatprep.subr.mxu0 0.0
      %2352 = vmatpush1.msra.mxu0 0.0
      %2353 = vmatprep.subr.mxu0 0.0
      %2354 = vmatpush1.msra.mxu0 0.0
      %2355 = vmatprep.subr.mxu0 0.0
      %2356 = vmatpush1.msra.mxu0 0.0
      %2357 = vmatprep.subr.mxu0 0.0
      %2358 = vmatpush1.msra.mxu0 0.0
      %2359 = vmatprep.subr.mxu0 0.0
      %2360 = vmatpush1.msra.mxu0 0.0
      %2361 = vmatprep.subr.mxu0 %v2329
      %2362 = vmatpush1.msra.mxu0 %v2327
      %2363 = vmatprep.subr.mxu0 %v2318
      %2364 = vmatpush1.msra.mxu0 %v2317
      %2365 = vmatprep.subr.mxu0 0.0
      %2366 = vmatpush2.msra.mxu0 0.0
      %2367 = vmatprep.subr.mxu0 0.0
      %2368 = vmatpush2.msra.mxu0 0.0
      %2369 = vmatprep.subr.mxu0 0.0
      %2370 = vmatpush2.msra.mxu0 0.0
      %2371 = vmatprep.subr.mxu0 0.0
      %2372 = vmatpush2.msra.mxu0 0.0
      %2373 = vmatprep.subr.mxu0 0.0
      %2374 = vmatpush2.msra.mxu0 0.0
      %2375 = vmatprep.subr.mxu0 0.0
      %2376 = vmatpush2.msra.mxu0 0.0
      %2377 = vmatprep.subr.mxu0 0.0
      %2378 = vmatpush2.msra.mxu0 0.0
      %2379 = vmatprep.subr.mxu0 0.0
      %2380 = vmatpush2.msra.mxu0 0.0
      %2381 = vmatprep.subr.mxu0 0.0
      %2382 = vmatpush2.msra.mxu0 0.0
      %2383 = vmatprep.subr.mxu0 0.0
      %2384 = vmatpush2.msra.mxu0 0.0
      %2385 = vmatprep.subr.mxu0 0.0
      %2386 = vmatpush2.msra.mxu0 0.0
      %2387 = vmatprep.subr.mxu0 0.0
      %2388 = vmatpush2.msra.mxu0 0.0
      %2389 = vmatprep.subr.mxu0 0.0
      %2390 = vmatpush2.msra.mxu0 0.0
      %2391 = vmatprep.subr.mxu0 0.0
      %2392 = vmatpush2.msra.mxu0 0.0
      %2393 = vmatprep.subr.mxu0 0.0
      %2394 = vmatpush2.msra.mxu0 0.0
      %2395 = vmatprep.subr.mxu0 0.0
      %2396 = vmatpush2.msra.mxu0 0.0
      %2397 = vmatprep.mubr.f32.mxu0 0.0
      %2398 = vmatmul.mubr.f32.gmra.mxu0 %v2325
      %v2399 = vpop.f32.mrf.mxu0
      %v2400 = vadd.f32 0.0, %v2399
      %v2401 = vpop.f32.mrf.mxu0
      %v2402 = vadd.f32 0.0, %v2401
      %2403 = vdwg.mxu0
      %2404 = vmatprep.subr.mxu0 0.0
      %2405 = vmatpush1.msra.mxu0 0.0
      %2406 = vmatprep.subr.mxu0 0.0
      %2407 = vmatpush1.msra.mxu0 0.0
      %2408 = vmatprep.subr.mxu0 0.0
      %2409 = vmatpush1.msra.mxu0 0.0
      %2410 = vmatprep.subr.mxu0 0.0
      %2411 = vmatpush1.msra.mxu0 0.0
      %2412 = vmatprep.subr.mxu0 0.0
      %2413 = vmatpush1.msra.mxu0 0.0
      %2414 = vmatprep.subr.mxu0 0.0
      %2415 = vmatpush1.msra.mxu0 0.0
      %2416 = vmatprep.subr.mxu0 0.0
      %2417 = vmatpush1.msra.mxu0 0.0
      %2418 = vmatprep.subr.mxu0 0.0
      %2419 = vmatpush1.msra.mxu0 0.0
      %2420 = vmatprep.subr.mxu0 0.0
      %2421 = vmatpush1.msra.mxu0 0.0
      %2422 = vmatprep.subr.mxu0 0.0
      %2423 = vmatpush1.msra.mxu0 0.0
      %2424 = vmatprep.subr.mxu0 0.0
      %2425 = vmatpush1.msra.mxu0 0.0
      %2426 = vmatprep.subr.mxu0 0.0
      %2427 = vmatpush1.msra.mxu0 0.0
      %2428 = vmatprep.subr.mxu0 0.0
      %2429 = vmatpush1.msra.mxu0 0.0
      %2430 = vmatprep.subr.mxu0 0.0
      %2431 = vmatpush1.msra.mxu0 0.0
      %2432 = vmatprep.subr.mxu0 0.0
      %2433 = vmatpush1.msra.mxu0 %v2331
      %2434 = vmatprep.subr.mxu0 0.0
      %2435 = vmatpush1.msra.mxu0 %v2309
      %2436 = vmatprep.subr.mxu0 0.0
      %2437 = vmatpush2.msra.mxu0 0.0
      %2438 = vmatprep.subr.mxu0 0.0
      %2439 = vmatpush2.msra.mxu0 0.0
      %2440 = vmatprep.subr.mxu0 0.0
      %2441 = vmatpush2.msra.mxu0 0.0
      %2442 = vmatprep.subr.mxu0 0.0
      %2443 = vmatpush2.msra.mxu0 0.0
      %2444 = vmatprep.subr.mxu0 0.0
      %2445 = vmatpush2.msra.mxu0 0.0
      %2446 = vmatprep.subr.mxu0 0.0
      %2447 = vmatpush2.msra.mxu0 0.0
      %2448 = vmatprep.subr.mxu0 0.0
      %2449 = vmatpush2.msra.mxu0 0.0
      %2450 = vmatprep.subr.mxu0 0.0
      %2451 = vmatpush2.msra.mxu0 0.0
      %2452 = vmatprep.subr.mxu0 0.0
      %2453 = vmatpush2.msra.mxu0 0.0
      %2454 = vmatprep.subr.mxu0 0.0
      %2455 = vmatpush2.msra.mxu0 0.0
      %2456 = vmatprep.subr.mxu0 0.0
      %2457 = vmatpush2.msra.mxu0 0.0
      %2458 = vmatprep.subr.mxu0 0.0
      %2459 = vmatpush2.msra.mxu0 0.0
      %2460 = vmatprep.subr.mxu0 0.0
      %2461 = vmatpush2.msra.mxu0 0.0
      %2462 = vmatprep.subr.mxu0 0.0
      %2463 = vmatpush2.msra.mxu0 0.0
      %2464 = vmatprep.subr.mxu0 0.0
      %2465 = vmatpush2.msra.mxu0 0.0
      %2466 = vmatprep.subr.mxu0 0.0
      %2467 = vmatpush2.msra.mxu0 0.0
      %2468 = vmatprep.mubr.f32.mxu0 0.0
      %2469 = vmatmul.mubr.f32.gmra.mxu0 %v2325
      %v2470 = vpop.f32.mrf.mxu0
      %v2471 = vadd.f32 0.0, %v2470
      %v2472 = vpop.f32.mrf.mxu0
      %2473 = vdwg.mxu0
      %v2474 = vadd.f32 %v2299, %v2400
      %v2475 = vadd.f32 %v2300, %v2402
      %v2476 = vadd.f32 %v2301, %v2471
      %s2477 = scalar_lea.vmem %s3, 28
      %v2478 = vld [vmem:[%s2477] sm:$0xf]
      %2479 = vrot.lane.b32.xlu0 %v1265, 91
      %v2480 = vpop.permute.xlu0 %2479
      %2481 = vrot.lane.b32.xlu0 %v1266, 91
      %v2482 = vpop.permute.xlu0 %2481
      %2483 = vrot.lane.b32.xlu0 %v1267, 91
      %v2484 = vpop.permute.xlu0 %2483
      %2485 = vrot.lane.b32.xlu0 %v1268, 91
      %v2486 = vpop.permute.xlu0 %2485
      %2487 = vrot.lane.b32.xlu0 %v1269, 91
      %v2488 = vpop.permute.xlu0 %2487
      %2489 = vrot.lane.b32.xlu0 %v1270, 91
      %v2490 = vpop.permute.xlu0 %2489
      %vm2491 = vcmask 744448
      %v2492 = vsel %vm2491, %v2480, %v2482
      %v2493 = vsel %vm2491, %v2482, %v2484
      %v2494 = vsel %vm2491, %v2486, %v2488
      %v2495 = vsel %vm2491, %v2488, %v2490
      %v2500 = vsel %vm1300, %v2478, 0
      %v2502 = vsel %vm1304, %v2494, 0
      %v2504 = vsel %vm1304, %v2495, 0
      %v2506 = vsel %vm1304, %v2490, 0
      %2508 = vmatprep.subr.mxu0 0.0
      %2509 = vmatpush1.msra.mxu0 0.0
      %2510 = vmatprep.subr.mxu0 0.0
      %2511 = vmatpush1.msra.mxu0 0.0
      %2512 = vmatprep.subr.mxu0 0.0
      %2513 = vmatpush1.msra.mxu0 0.0
      %2514 = vmatprep.subr.mxu0 0.0
      %2515 = vmatpush1.msra.mxu0 0.0
      %2516 = vmatprep.subr.mxu0 0.0
      %2517 = vmatpush1.msra.mxu0 0.0
      %2518 = vmatprep.subr.mxu0 0.0
      %2519 = vmatpush1.msra.mxu0 0.0
      %2520 = vmatprep.subr.mxu0 0.0
      %2521 = vmatpush1.msra.mxu0 0.0
      %2522 = vmatprep.subr.mxu0 0.0
      %2523 = vmatpush1.msra.mxu0 0.0
      %2524 = vmatprep.subr.mxu0 0.0
      %2525 = vmatpush1.msra.mxu0 0.0
      %2526 = vmatprep.subr.mxu0 0.0
      %2527 = vmatpush1.msra.mxu0 0.0
      %2528 = vmatprep.subr.mxu0 0.0
      %2529 = vmatpush1.msra.mxu0 0.0
      %2530 = vmatprep.subr.mxu0 0.0
      %2531 = vmatpush1.msra.mxu0 0.0
      %2532 = vmatprep.subr.mxu0 0.0
      %2533 = vmatpush1.msra.mxu0 0.0
      %2534 = vmatprep.subr.mxu0 0.0
      %2535 = vmatpush1.msra.mxu0 0.0
      %2536 = vmatprep.subr.mxu0 %v2504
      %2537 = vmatpush1.msra.mxu0 %v2502
      %2538 = vmatprep.subr.mxu0 %v2493
      %2539 = vmatpush1.msra.mxu0 %v2492
      %2540 = vmatprep.subr.mxu0 0.0
      %2541 = vmatpush2.msra.mxu0 0.0
      %2542 = vmatprep.subr.mxu0 0.0
      %2543 = vmatpush2.msra.mxu0 0.0
      %2544 = vmatprep.subr.mxu0 0.0
      %2545 = vmatpush2.msra.mxu0 0.0
      %2546 = vmatprep.subr.mxu0 0.0
      %2547 = vmatpush2.msra.mxu0 0.0
      %2548 = vmatprep.subr.mxu0 0.0
      %2549 = vmatpush2.msra.mxu0 0.0
      %2550 = vmatprep.subr.mxu0 0.0
      %2551 = vmatpush2.msra.mxu0 0.0
      %2552 = vmatprep.subr.mxu0 0.0
      %2553 = vmatpush2.msra.mxu0 0.0
      %2554 = vmatprep.subr.mxu0 0.0
      %2555 = vmatpush2.msra.mxu0 0.0
      %2556 = vmatprep.subr.mxu0 0.0
      %2557 = vmatpush2.msra.mxu0 0.0
      %2558 = vmatprep.subr.mxu0 0.0
      %2559 = vmatpush2.msra.mxu0 0.0
      %2560 = vmatprep.subr.mxu0 0.0
      %2561 = vmatpush2.msra.mxu0 0.0
      %2562 = vmatprep.subr.mxu0 0.0
      %2563 = vmatpush2.msra.mxu0 0.0
      %2564 = vmatprep.subr.mxu0 0.0
      %2565 = vmatpush2.msra.mxu0 0.0
      %2566 = vmatprep.subr.mxu0 0.0
      %2567 = vmatpush2.msra.mxu0 0.0
      %2568 = vmatprep.subr.mxu0 0.0
      %2569 = vmatpush2.msra.mxu0 0.0
      %2570 = vmatprep.subr.mxu0 0.0
      %2571 = vmatpush2.msra.mxu0 0.0
      %2572 = vmatprep.mubr.f32.mxu0 0.0
      %2573 = vmatmul.mubr.f32.gmra.mxu0 %v2500
      %v2574 = vpop.f32.mrf.mxu0
      %v2575 = vadd.f32 0.0, %v2574
      %v2576 = vpop.f32.mrf.mxu0
      %v2577 = vadd.f32 0.0, %v2576
      %2578 = vdwg.mxu0
      %2579 = vmatprep.subr.mxu0 0.0
      %2580 = vmatpush1.msra.mxu0 0.0
      %2581 = vmatprep.subr.mxu0 0.0
      %2582 = vmatpush1.msra.mxu0 0.0
      %2583 = vmatprep.subr.mxu0 0.0
      %2584 = vmatpush1.msra.mxu0 0.0
      %2585 = vmatprep.subr.mxu0 0.0
      %2586 = vmatpush1.msra.mxu0 0.0
      %2587 = vmatprep.subr.mxu0 0.0
      %2588 = vmatpush1.msra.mxu0 0.0
      %2589 = vmatprep.subr.mxu0 0.0
      %2590 = vmatpush1.msra.mxu0 0.0
      %2591 = vmatprep.subr.mxu0 0.0
      %2592 = vmatpush1.msra.mxu0 0.0
      %2593 = vmatprep.subr.mxu0 0.0
      %2594 = vmatpush1.msra.mxu0 0.0
      %2595 = vmatprep.subr.mxu0 0.0
      %2596 = vmatpush1.msra.mxu0 0.0
      %2597 = vmatprep.subr.mxu0 0.0
      %2598 = vmatpush1.msra.mxu0 0.0
      %2599 = vmatprep.subr.mxu0 0.0
      %2600 = vmatpush1.msra.mxu0 0.0
      %2601 = vmatprep.subr.mxu0 0.0
      %2602 = vmatpush1.msra.mxu0 0.0
      %2603 = vmatprep.subr.mxu0 0.0
      %2604 = vmatpush1.msra.mxu0 0.0
      %2605 = vmatprep.subr.mxu0 0.0
      %2606 = vmatpush1.msra.mxu0 0.0
      %2607 = vmatprep.subr.mxu0 0.0
      %2608 = vmatpush1.msra.mxu0 %v2506
      %2609 = vmatprep.subr.mxu0 0.0
      %2610 = vmatpush1.msra.mxu0 %v2484
      %2611 = vmatprep.subr.mxu0 0.0
      %2612 = vmatpush2.msra.mxu0 0.0
      %2613 = vmatprep.subr.mxu0 0.0
      %2614 = vmatpush2.msra.mxu0 0.0
      %2615 = vmatprep.subr.mxu0 0.0
      %2616 = vmatpush2.msra.mxu0 0.0
      %2617 = vmatprep.subr.mxu0 0.0
      %2618 = vmatpush2.msra.mxu0 0.0
      %2619 = vmatprep.subr.mxu0 0.0
      %2620 = vmatpush2.msra.mxu0 0.0
      %2621 = vmatprep.subr.mxu0 0.0
      %2622 = vmatpush2.msra.mxu0 0.0
      %2623 = vmatprep.subr.mxu0 0.0
      %2624 = vmatpush2.msra.mxu0 0.0
      %2625 = vmatprep.subr.mxu0 0.0
      %2626 = vmatpush2.msra.mxu0 0.0
      %2627 = vmatprep.subr.mxu0 0.0
      %2628 = vmatpush2.msra.mxu0 0.0
      %2629 = vmatprep.subr.mxu0 0.0
      %2630 = vmatpush2.msra.mxu0 0.0
      %2631 = vmatprep.subr.mxu0 0.0
      %2632 = vmatpush2.msra.mxu0 0.0
      %2633 = vmatprep.subr.mxu0 0.0
      %2634 = vmatpush2.msra.mxu0 0.0
      %2635 = vmatprep.subr.mxu0 0.0
      %2636 = vmatpush2.msra.mxu0 0.0
      %2637 = vmatprep.subr.mxu0 0.0
      %2638 = vmatpush2.msra.mxu0 0.0
      %2639 = vmatprep.subr.mxu0 0.0
      %2640 = vmatpush2.msra.mxu0 0.0
      %2641 = vmatprep.subr.mxu0 0.0
      %2642 = vmatpush2.msra.mxu0 0.0
      %2643 = vmatprep.mubr.f32.mxu0 0.0
      %2644 = vmatmul.mubr.f32.gmra.mxu0 %v2500
      %v2645 = vpop.f32.mrf.mxu0
      %v2646 = vadd.f32 0.0, %v2645
      %v2647 = vpop.f32.mrf.mxu0
      %2648 = vdwg.mxu0
      %v2649 = vadd.f32 %v2474, %v2575
      %v2650 = vadd.f32 %v2475, %v2577
      %v2651 = vadd.f32 %v2476, %v2646
      %s2652 = scalar_lea.vmem %s3, 32
      %v2653 = vld [vmem:[%s2652] sm:$0xf]
      %2654 = vrot.lane.b32.xlu0 %v1265, 90
      %v2655 = vpop.permute.xlu0 %2654
      %2656 = vrot.lane.b32.xlu0 %v1266, 90
      %v2657 = vpop.permute.xlu0 %2656
      %2658 = vrot.lane.b32.xlu0 %v1267, 90
      %v2659 = vpop.permute.xlu0 %2658
      %2660 = vrot.lane.b32.xlu0 %v1268, 90
      %v2661 = vpop.permute.xlu0 %2660
      %2662 = vrot.lane.b32.xlu0 %v1269, 90
      %v2663 = vpop.permute.xlu0 %2662
      %2664 = vrot.lane.b32.xlu0 %v1270, 90
      %v2665 = vpop.permute.xlu0 %2664
      %vm2666 = vcmask 736256
      %v2667 = vsel %vm2666, %v2655, %v2657
      %v2668 = vsel %vm2666, %v2657, %v2659
      %v2669 = vsel %vm2666, %v2661, %v2663
      %v2670 = vsel %vm2666, %v2663, %v2665
      %v2675 = vsel %vm1300, %v2653, 0
      %v2677 = vsel %vm1304, %v2669, 0
      %v2679 = vsel %vm1304, %v2670, 0
      %v2681 = vsel %vm1304, %v2665, 0
      %2683 = vmatprep.subr.mxu0 0.0
      %2684 = vmatpush1.msra.mxu0 0.0
      %2685 = vmatprep.subr.mxu0 0.0
      %2686 = vmatpush1.msra.mxu0 0.0
      %2687 = vmatprep.subr.mxu0 0.0
      %2688 = vmatpush1.msra.mxu0 0.0
      %2689 = vmatprep.subr.mxu0 0.0
      %2690 = vmatpush1.msra.mxu0 0.0
      %2691 = vmatprep.subr.mxu0 0.0
      %2692 = vmatpush1.msra.mxu0 0.0
      %2693 = vmatprep.subr.mxu0 0.0
      %2694 = vmatpush1.msra.mxu0 0.0
      %2695 = vmatprep.subr.mxu0 0.0
      %2696 = vmatpush1.msra.mxu0 0.0
      %2697 = vmatprep.subr.mxu0 0.0
      %2698 = vmatpush1.msra.mxu0 0.0
      %2699 = vmatprep.subr.mxu0 0.0
      %2700 = vmatpush1.msra.mxu0 0.0
      %2701 = vmatprep.subr.mxu0 0.0
      %2702 = vmatpush1.msra.mxu0 0.0
      %2703 = vmatprep.subr.mxu0 0.0
      %2704 = vmatpush1.msra.mxu0 0.0
      %2705 = vmatprep.subr.mxu0 0.0
      %2706 = vmatpush1.msra.mxu0 0.0
      %2707 = vmatprep.subr.mxu0 0.0
      %2708 = vmatpush1.msra.mxu0 0.0
      %2709 = vmatprep.subr.mxu0 0.0
      %2710 = vmatpush1.msra.mxu0 0.0
      %2711 = vmatprep.subr.mxu0 %v2679
      %2712 = vmatpush1.msra.mxu0 %v2677
      %2713 = vmatprep.subr.mxu0 %v2668
      %2714 = vmatpush1.msra.mxu0 %v2667
      %2715 = vmatprep.subr.mxu0 0.0
      %2716 = vmatpush2.msra.mxu0 0.0
      %2717 = vmatprep.subr.mxu0 0.0
      %2718 = vmatpush2.msra.mxu0 0.0
      %2719 = vmatprep.subr.mxu0 0.0
      %2720 = vmatpush2.msra.mxu0 0.0
      %2721 = vmatprep.subr.mxu0 0.0
      %2722 = vmatpush2.msra.mxu0 0.0
      %2723 = vmatprep.subr.mxu0 0.0
      %2724 = vmatpush2.msra.mxu0 0.0
      %2725 = vmatprep.subr.mxu0 0.0
      %2726 = vmatpush2.msra.mxu0 0.0
      %2727 = vmatprep.subr.mxu0 0.0
      %2728 = vmatpush2.msra.mxu0 0.0
      %2729 = vmatprep.subr.mxu0 0.0
      %2730 = vmatpush2.msra.mxu0 0.0
      %2731 = vmatprep.subr.mxu0 0.0
      %2732 = vmatpush2.msra.mxu0 0.0
      %2733 = vmatprep.subr.mxu0 0.0
      %2734 = vmatpush2.msra.mxu0 0.0
      %2735 = vmatprep.subr.mxu0 0.0
      %2736 = vmatpush2.msra.mxu0 0.0
      %2737 = vmatprep.subr.mxu0 0.0
      %2738 = vmatpush2.msra.mxu0 0.0
      %2739 = vmatprep.subr.mxu0 0.0
      %2740 = vmatpush2.msra.mxu0 0.0
      %2741 = vmatprep.subr.mxu0 0.0
      %2742 = vmatpush2.msra.mxu0 0.0
      %2743 = vmatprep.subr.mxu0 0.0
      %2744 = vmatpush2.msra.mxu0 0.0
      %2745 = vmatprep.subr.mxu0 0.0
      %2746 = vmatpush2.msra.mxu0 0.0
      %2747 = vmatprep.mubr.f32.mxu0 0.0
      %2748 = vmatmul.mubr.f32.gmra.mxu0 %v2675
      %v2749 = vpop.f32.mrf.mxu0
      %v2750 = vadd.f32 0.0, %v2749
      %v2751 = vpop.f32.mrf.mxu0
      %v2752 = vadd.f32 0.0, %v2751
      %2753 = vdwg.mxu0
      %2754 = vmatprep.subr.mxu0 0.0
      %2755 = vmatpush1.msra.mxu0 0.0
      %2756 = vmatprep.subr.mxu0 0.0
      %2757 = vmatpush1.msra.mxu0 0.0
      %2758 = vmatprep.subr.mxu0 0.0
      %2759 = vmatpush1.msra.mxu0 0.0
      %2760 = vmatprep.subr.mxu0 0.0
      %2761 = vmatpush1.msra.mxu0 0.0
      %2762 = vmatprep.subr.mxu0 0.0
      %2763 = vmatpush1.msra.mxu0 0.0
      %2764 = vmatprep.subr.mxu0 0.0
      %2765 = vmatpush1.msra.mxu0 0.0
      %2766 = vmatprep.subr.mxu0 0.0
      %2767 = vmatpush1.msra.mxu0 0.0
      %2768 = vmatprep.subr.mxu0 0.0
      %2769 = vmatpush1.msra.mxu0 0.0
      %2770 = vmatprep.subr.mxu0 0.0
      %2771 = vmatpush1.msra.mxu0 0.0
      %2772 = vmatprep.subr.mxu0 0.0
      %2773 = vmatpush1.msra.mxu0 0.0
      %2774 = vmatprep.subr.mxu0 0.0
      %2775 = vmatpush1.msra.mxu0 0.0
      %2776 = vmatprep.subr.mxu0 0.0
      %2777 = vmatpush1.msra.mxu0 0.0
      %2778 = vmatprep.subr.mxu0 0.0
      %2779 = vmatpush1.msra.mxu0 0.0
      %2780 = vmatprep.subr.mxu0 0.0
      %2781 = vmatpush1.msra.mxu0 0.0
      %2782 = vmatprep.subr.mxu0 0.0
      %2783 = vmatpush1.msra.mxu0 %v2681
      %2784 = vmatprep.subr.mxu0 0.0
      %2785 = vmatpush1.msra.mxu0 %v2659
      %2786 = vmatprep.subr.mxu0 0.0
      %2787 = vmatpush2.msra.mxu0 0.0
      %2788 = vmatprep.subr.mxu0 0.0
      %2789 = vmatpush2.msra.mxu0 0.0
      %2790 = vmatprep.subr.mxu0 0.0
      %2791 = vmatpush2.msra.mxu0 0.0
      %2792 = vmatprep.subr.mxu0 0.0
      %2793 = vmatpush2.msra.mxu0 0.0
      %2794 = vmatprep.subr.mxu0 0.0
      %2795 = vmatpush2.msra.mxu0 0.0
      %2796 = vmatprep.subr.mxu0 0.0
      %2797 = vmatpush2.msra.mxu0 0.0
      %2798 = vmatprep.subr.mxu0 0.0
      %2799 = vmatpush2.msra.mxu0 0.0
      %2800 = vmatprep.subr.mxu0 0.0
      %2801 = vmatpush2.msra.mxu0 0.0
      %2802 = vmatprep.subr.mxu0 0.0
      %2803 = vmatpush2.msra.mxu0 0.0
      %2804 = vmatprep.subr.mxu0 0.0
      %2805 = vmatpush2.msra.mxu0 0.0
      %2806 = vmatprep.subr.mxu0 0.0
      %2807 = vmatpush2.msra.mxu0 0.0
      %2808 = vmatprep.subr.mxu0 0.0
      %2809 = vmatpush2.msra.mxu0 0.0
      %2810 = vmatprep.subr.mxu0 0.0
      %2811 = vmatpush2.msra.mxu0 0.0
      %2812 = vmatprep.subr.mxu0 0.0
      %2813 = vmatpush2.msra.mxu0 0.0
      %2814 = vmatprep.subr.mxu0 0.0
      %2815 = vmatpush2.msra.mxu0 0.0
      %2816 = vmatprep.subr.mxu0 0.0
      %2817 = vmatpush2.msra.mxu0 0.0
      %2818 = vmatprep.mubr.f32.mxu0 0.0
      %2819 = vmatmul.mubr.f32.gmra.mxu0 %v2675
      %v2820 = vpop.f32.mrf.mxu0
      %v2821 = vadd.f32 0.0, %v2820
      %v2822 = vpop.f32.mrf.mxu0
      %2823 = vdwg.mxu0
      %v2824 = vadd.f32 %v2649, %v2750
      %v2825 = vadd.f32 %v2650, %v2752
      %v2826 = vadd.f32 %v2651, %v2821
      %v2827 = vld [vmem:[%s4] sm:$0xf]
      %2829 = vset.pattern.permute.xlu0 0
      %2830 = vperm.xlu0 %2829, %v2827
      %v2831 = vpop.permute.xlu0 %2830
      %v2833 = vmul.f32 %v2824, %v2831
      %v2834 = vmul.f32 %v2825, %v2831
      %v2835 = vmul.f32 %v2826, %v2831
      %v2836 = vld [vmem:[%s5] sm:$0xf]
      %2838 = vset.pattern.permute.xlu0 0
      %2839 = vperm.xlu0 %2838, %v2836
      %v2840 = vpop.permute.xlu0 %2839
      %v2842 = vadd.f32 %v2833, %v2840
      %v2843 = vadd.f32 %v2834, %v2840
      %v2844 = vadd.f32 %v2835, %v2840
      %v2845 = vmax.f32 %v2842, 0.0
      %v2846 = vmax.f32 %v2843, 0.0
      %v2847 = vmax.f32 %v2844, 0.0
      %v2850 = vcombine.low %v2845, %v2846
      %2852 = vst [vmem:[%s357] sm:$0xff] %v2850
      %vm2853 = vcmask 257024
      %2854 = vst.msk [vmem:[%s357 + $0x8] sm:$0xf] %vm2853, %v2847
      %p2855 = scmp.lt.s32.totalorder %s21, 1
      %s2856 = scalar_select %p2855, %s21, 1
      %p2857 = scmp.lt.s32.totalorder %s22, 0
      %s2858 = scalar_select %p2857, %s22, 0
      %s2859 = smul.addr %s2858, 3
      %s2860 = smul.addr %s2856, 3
      %s2861 = sadd.s32 %s2859, %s2860
      %s2862 = smul.addr %s2861, 4
      %s2863 = scalar_lea.vmem %s6, %s2862
      // Predicated region
      $region45: #{attention_block_forward.3} parent=43 // pred_check
        %p2864 = pneg %p196
      $region46: #{attention_block_forward.3} parent=43 // pred_check_branch
        %2866 = sbr.rel (%p2864) target = $region48
      $region47: #{attention_block_forward.3} parent=43 // pred_region
        _
      $region48: #{attention_block_forward.3} parent=43 // pred_fallthru
        _
    $region44: #{attention_block_forward.3} parent=5 // pred_fallthru
      _
    %p2867 = scmp.le.s32.totalorder 2, %s12
    // Predicated region
    $region49: #{attention_block_forward.3} parent=5 // pred_check
      %p2868 = pneg %p2867
    $region50: #{attention_block_forward.3} parent=5 // pred_check_branch
      %2870 = sbr.rel (%p2868) target = $region52
    $region51: #{attention_block_forward.3} parent=5 // pred_region
      %s2871 = ssub.s32 %s12, 2
      // Predicated region
      $region53: #{attention_block_forward.3} parent=51 // pred_check
        %p2872 = pneg %p202
      $region54: #{attention_block_forward.3} parent=51 // pred_check_branch
        %2874 = sbr.rel (%p2872) target = $region56
      $region55: #{attention_block_forward.3} parent=51 // pred_region
        %p2875 = scmp.lt.s32.totalorder %s23, 1
        %s2876 = scalar_select %p2875, %s23, 1
        %p2877 = scmp.lt.s32.totalorder %s24, 0
        %s2878 = scalar_select %p2877, %s24, 0
        %s2879 = smul.addr %s2878, 3
        %s2880 = smul.addr %s2876, 3
        %s2881 = sadd.s32 %s2879, %s2880
        %s2882 = smul.addr %s2881, 4
        %s2883 = scalar_lea.vmem %s6, %s2882
      $region56: #{attention_block_forward.3} parent=51 // pred_fallthru
        _
    $region52: #{attention_block_forward.3} parent=5 // pred_fallthru
      _
  $region6: #{attention_block_forward.3} parent=0 // loop_footer
    %s16 = sadd.s32 1, %s12
  $region7: #{attention_block_forward.3} parent=0 // loop_footer_branch
    %11 = sbr.rel target = $region3
  $region8: #{attention_block_forward.3} parent=0 // loop_exit
    _

</llo_original>
